<compile_context>
chip_gen: v6e
topology: v6e:2x2x1
jax: 0.10.0
libtpu: 0.0.40
codegen_flags: <defaults>
</compile_context>

<pallas_src>
import functools

import jax
import jax.numpy as jnp
from jax.experimental import pallas as pl
from jax.experimental.pallas import tpu as pltpu


# --------------------------------------------------------------------------- #
# Batched gate-input projection:  out[d] = X @ W[d] + b[d]
#   X: (M, K), W: (D, K, 4H), b: (D, 4H) -> (D, M, 4H)
# One MXU-friendly matmul per (direction, row-tile) instead of per timestep.
# --------------------------------------------------------------------------- #
def _gate_proj_kernel(x_ref, w_ref, b_ref, o_ref):
    o_ref[0] = (
        jnp.dot(x_ref[...], w_ref[0], preferred_element_type=jnp.float32)
        + b_ref[0]
    )


def _gate_input_projection(x2d, w_stacked, b_stacked, *, block_m=256):
    M, K = x2d.shape
    D, _, G = w_stacked.shape
    bm = min(M, block_m)                      # row tile (full M at toy sizes)
    return pl.pallas_call(
        _gate_proj_kernel,
        out_shape=jax.ShapeDtypeStruct((D, M, G), jnp.float32),
        grid_spec=pltpu.PrefetchScalarGridSpec(
            num_scalar_prefetch=0,
            grid=(D, pl.cdiv(M, bm)),
            in_specs=[
                pl.BlockSpec((bm, K), lambda d, m: (m, 0)),
                pl.BlockSpec((1, K, G), lambda d, m: (d, 0, 0)),
                pl.BlockSpec((1, 1, G), lambda d, m: (d, 0, 0)),
            ],
            out_specs=pl.BlockSpec((1, bm, G), lambda d, m: (d, m, 0)),
        ),
        compiler_params=pltpu.CompilerParams(
            dimension_semantics=("parallel", "parallel")),
    )(x2d, w_stacked, b_stacked.reshape(D, 1, G))


# --------------------------------------------------------------------------- #
# Recurrent kernel: both directions in one call.
#   gate_x: (D, T, B, 4H)  (x-path + bias already added, forward time order)
#   whh:    (D, H, 4H)
#   out:    (D, T, B, H)   (forward time order for both directions)
# grid = (D, T // Tc); h/c state persists in VMEM scratch across time chunks.
# --------------------------------------------------------------------------- #
def _make_lstm_kernel(num_dirs):
    def run_chunk(reverse, gx_ref, whh, h_state, c_state, h_out_ref):
        tc = gx_ref.shape[1]
        H = whh.shape[0]
        h = h_state[...]
        c = c_state[...]
        # Static, fully unrolled walk over the chunk (equivalent to
        # lax.fori_loop(..., unroll=True)); backward direction walks reversed.
        order = range(tc - 1, -1, -1) if reverse else range(tc)
        for t in order:
            gates = gx_ref[0, t] + jnp.dot(
                h, whh, preferred_element_type=jnp.float32)      # (B, 4H)
            i_g = jax.nn.sigmoid(gates[:, 0 * H:1 * H])          # PyTorch order
            f_g = jax.nn.sigmoid(gates[:, 1 * H:2 * H])          # i, f, g, o
            g_g = jnp.tanh(gates[:, 2 * H:3 * H])
            o_g = jax.nn.sigmoid(gates[:, 3 * H:4 * H])
            c = f_g * c + i_g * g_g
            h = o_g * jnp.tanh(c)
            h_out_ref[0, t] = h          # VMEM store; HBM writeback once/chunk
        h_state[...] = h
        c_state[...] = c

    def kernel(gx_ref, whh_ref, h_out_ref, h_state, c_state):
        @pl.when(pl.program_id(1) == 0)      # first chunk of this direction
        def _():
            h_state[...] = jnp.zeros_like(h_state)
            c_state[...] = jnp.zeros_like(c_state)

        whh = whh_ref[0]                     # (H, 4H); re-DMA'd only on dir switch

        if num_dirs == 1:
            run_chunk(False, gx_ref, whh, h_state, c_state, h_out_ref)
        else:
            d = pl.program_id(0)

            @pl.when(d == 0)
            def _():
                run_chunk(False, gx_ref, whh, h_state, c_state, h_out_ref)

            @pl.when(d == 1)
            def _():
                run_chunk(True, gx_ref, whh, h_state, c_state, h_out_ref)

    return kernel


def _pick_time_chunk(T, max_chunk):
    tc = min(T, max_chunk)
    while T % tc:
        tc -= 1
    return tc


def _lstm_layer(gate_x, whh_stacked, *, max_time_chunk=32):
    """gate_x: (D, T, B, 4H); whh_stacked: (D, H, 4H) -> (D, T, B, H)."""
    D, T, B, G = gate_x.shape
    H = whh_stacked.shape[1]
    tc = _pick_time_chunk(T, max_time_chunk)
    n_chunks = T // tc

    def data_map(d, c):
        # forward direction consumes chunks front-to-back, backward
        # back-to-front, so outputs land in forward time order with no flips.
        return (d, c + d * (n_chunks - 1 - 2 * c), 0, 0)

    return pl.pallas_call(
        _make_lstm_kernel(D),
        out_shape=jax.ShapeDtypeStruct((D, T, B, H), jnp.float32),
        grid_spec=pltpu.PrefetchScalarGridSpec(
            num_scalar_prefetch=0,
            grid=(D, n_chunks),
            in_specs=[
                pl.BlockSpec((1, tc, B, G), data_map),
                pl.BlockSpec((1, H, G), lambda d, c: (d, 0, 0)),
            ],
            out_specs=pl.BlockSpec((1, tc, B, H), data_map),
            scratch_shapes=[pltpu.VMEM((B, H), jnp.float32),
                            pltpu.VMEM((B, H), jnp.float32)],
        ),
        compiler_params=pltpu.CompilerParams(
            # direction axis is independent -> megacore-shardable on v7x;
            # time-chunk axis carries the recurrence -> "arbitrary".
            dimension_semantics=("parallel", "arbitrary")),
    )(gate_x, whh_stacked)


# --------------------------------------------------------------------------- #
# Output projection + fused activation: tanh(x @ W2 + b2) * 0.5 + 0.5
# --------------------------------------------------------------------------- #
def _out_proj_kernel(x_ref, w_ref, b_ref, o_ref):
    y = (jnp.dot(x_ref[...], w_ref[...], preferred_element_type=jnp.float32)
         + b_ref[...])
    o_ref[...] = jnp.tanh(y) * 0.5 + 0.5


def _output_projection(x2d, w, b, *, block_m=512):
    M, K = x2d.shape
    N = w.shape[1]
    bm = min(M, block_m)
    return pl.pallas_call(
        _out_proj_kernel,
        out_shape=jax.ShapeDtypeStruct((M, N), jnp.float32),
        grid_spec=pltpu.PrefetchScalarGridSpec(
            num_scalar_prefetch=0,
            grid=(pl.cdiv(M, bm),),
            in_specs=[
                pl.BlockSpec((bm, K), lambda m: (m, 0)),
                pl.BlockSpec((K, N), lambda m: (0, 0)),
                pl.BlockSpec((1, N), lambda m: (0, 0)),
            ],
            out_specs=pl.BlockSpec((bm, N), lambda m: (m, 0)),
        ),
        compiler_params=pltpu.CompilerParams(
            dimension_semantics=("parallel",)),
    )(x2d, w, b.reshape(1, N))


# --------------------------------------------------------------------------- #
# Parameters (deterministic, synthetic) and forward passes
# --------------------------------------------------------------------------- #
def init_decoder_params(key, input_dim, z_dim, hidden_dim, num_layers,
                        bidirectional):
    num_dirs = 2 if bidirectional else 1
    keys = list(jax.random.split(key, 4 + 3 * num_layers * num_dirs))

    def u(k, shape):
        return jax.random.uniform(k, shape, jnp.float32, -0.1, 0.1)

    params = {
        "w1": u(keys.pop(), (z_dim, hidden_dim)),
        "b1": u(keys.pop(), (hidden_dim,)),
        "w2": u(keys.pop(), (hidden_dim * num_dirs, input_dim)),
        "b2": u(keys.pop(), (input_dim,)),
        "lstm": {},
    }
    for layer in range(num_layers):
        in_size = hidden_dim if layer == 0 else hidden_dim * num_dirs
        for d in range(num_dirs):
            w_ih = u(keys.pop(), (in_size, 4 * hidden_dim))
            w_hh = u(keys.pop(), (hidden_dim, 4 * hidden_dim))
            b = u(keys.pop(), (4 * hidden_dim,))   # combined b_ih + b_hh
            params["lstm"][(layer, d)] = (w_ih, w_hh, b)
    return params


def decoder_forward_pallas(z, params, num_layers, bidirectional):
    """z: (B, T, z_dim) -> (B, T, input_dim)."""
    B, T, Zd = z.shape
    D = 2 if bidirectional else 1
    H = params["w1"].shape[1]

    # z.permute(1, 0, 2): batch-major -> time-major, flattened to rows t*B + b.
    x2d = jnp.transpose(z, (1, 0, 2)).reshape(T * B, Zd)

    # linear1 fused into the layer-0 x-projection (exact, both ops are affine).
    w_ih0 = jnp.stack([params["lstm"][(0, d)][0] for d in range(D)])
    b_ih0 = jnp.stack([params["lstm"][(0, d)][2] for d in range(D)])
    w_l = jnp.einsum("zh,dhg->dzg", params["w1"], w_ih0)      # (D, z_dim, 4H)
    b_l = jnp.einsum("h,dhg->dg", params["b1"], w_ih0) + b_ih0  # (D, 4H)

    for layer in range(num_layers):
        if layer > 0:
            w_l = jnp.stack([params["lstm"][(layer, d)][0] for d in range(D)])
            b_l = jnp.stack([params["lstm"][(layer, d)][2] for d in range(D)])
        # Hoisted x-path: one batched matmul over the whole sequence.
        gate_x = _gate_input_projection(x2d, w_l, b_l)          # (D, T*B, 4H)
        gate_x = gate_x.reshape(D, T, B, 4 * H)
        whh = jnp.stack([params["lstm"][(layer, d)][1] for d in range(D)])
        h = _lstm_layer(gate_x, whh)                            # (D, T, B, H)
        x2d = jnp.concatenate([h[d] for d in range(D)],
                              axis=-1).reshape(T * B, D * H)

    out = _output_projection(x2d, params["w2"], params["b2"])  # (T*B, in_dim)
    # time-major -> batch-major (.permute(1, 0, 2))
    return jnp.transpose(out.reshape(T, B, -1), (1, 0, 2))


def decoder_forward_ref(z, params, num_layers, bidirectional):
    """Pure-JAX reference (lax.scan LSTM), mirrors the PyTorch forward."""
    B, T, _ = z.shape
    D = 2 if bidirectional else 1
    H = params["w1"].shape[1]
    x = jnp.transpose(z, (1, 0, 2)) @ params["w1"] + params["b1"]  # (T, B, H)

    def run_dir(xseq, w_ih, w_hh, b):
        def step(carry, xt):
            h, c = carry
            gates = xt @ w_ih + h @ w_hh + b
            i = jax.nn.sigmoid(gates[:, :H])
            f = jax.nn.sigmoid(gates[:, H:2 * H])
            g = jnp.tanh(gates[:, 2 * H:3 * H])
            o = jax.nn.sigmoid(gates[:, 3 * H:])
            c = f * c + i * g
            h = o * jnp.tanh(c)
            return (h, c), h
        init = (jnp.zeros((B, H), jnp.float32), jnp.zeros((B, H), jnp.float32))
        _, hs = jax.lax.scan(step, init, xseq)
        return hs

    for layer in range(num_layers):
        outs = []
        for d in range(D):
            w_ih, w_hh, b = params["lstm"][(layer, d)]
            xd = x if d == 0 else jnp.flip(x, axis=0)
            hs = run_dir(xd, w_ih, w_hh, b)
            if d == 1:
                hs = jnp.flip(hs, axis=0)
            outs.append(hs)
        x = outs[0] if D == 1 else jnp.concatenate(outs, axis=-1)

    y = jnp.tanh(x @ params["w2"] + params["b2"]) * 0.5 + 0.5
    return jnp.transpose(y, (1, 0, 2))


# --------------------------------------------------------------------------- #
if __name__ == "__main__":
    input_dim, z_dim, hidden_dim = 16, 8, 32
    num_layers, bidirectional = 2, True
    batch, seq = 2, 8

    key = jax.random.PRNGKey(0)
    pkey, zkey = jax.random.split(key)
    params = init_decoder_params(pkey, input_dim, z_dim, hidden_dim,
                                 num_layers, bidirectional)
    z = jax.random.normal(zkey, (batch, seq, z_dim), jnp.float32)

    fwd = jax.jit(functools.partial(decoder_forward_pallas,
                                    num_layers=num_layers,
                                    bidirectional=bidirectional))
    out = jax.block_until_ready(fwd(z, params))
    assert out.shape == (batch, seq, input_dim), out.shape

    ref = jax.block_until_ready(
        decoder_forward_ref(z, params, num_layers, bidirectional))
    max_err = float(jnp.max(jnp.abs(out - ref)))
    # slightly looser tolerance than 1e-5: linear1 is algebraically fused into
    # the layer-0 projection in the Pallas path (different f32 association).
    assert jnp.allclose(out, ref, atol=1e-4, rtol=1e-4), max_err

    print("KERNEL_OK")
</pallas_src>

<mosaic_0001>
module attributes {stable_mosaic.version = 11 : i64} {
  func.func @_gate_proj_kernel(%arg0: i32, %arg1: i32, %arg2: memref<16x8xf32, #tpu.memory_space<vmem>>, %arg3: memref<1x8x128xf32, #tpu.memory_space<vmem>>, %arg4: memref<1x1x128xf32, #tpu.memory_space<vmem>>, %arg5: memref<1x16x128xf32, #tpu.memory_space<vmem>>) attributes {dimension_semantics = [#tpu.dimension_semantics<parallel>, #tpu.dimension_semantics<parallel>], iteration_bounds = array<i64: 2, 1>, scalar_prefetch = 0 : i64, scratch_operands = 0 : i64, tpu.core_type = #tpu.core_type<tc>, window_params = [{transform_indices = @transform_0, window_bounds = array<i64: 16, 8>}, {transform_indices = @transform_1, window_bounds = array<i64: 1, 8, 128>}, {transform_indices = @transform_2, window_bounds = array<i64: 1, 1, 128>}, {transform_indices = @transform_3, window_bounds = array<i64: 1, 16, 128>}]} {
    %c0 = arith.constant 0 : index
    %c0_0 = arith.constant 0 : index
    %0 = vector.load %arg2[%c0, %c0_0] : memref<16x8xf32, #tpu.memory_space<vmem>>, vector<16x8xf32>
    %c0_1 = arith.constant 0 : index
    %c0_2 = arith.constant 0 : index
    %c0_3 = arith.constant 0 : index
    %1 = vector.load %arg3[%c0_1, %c0_2, %c0_3] : memref<1x8x128xf32, #tpu.memory_space<vmem>>, vector<1x8x128xf32>
    %2 = vector.shape_cast %1 : vector<1x8x128xf32> to vector<8x128xf32>
    %cst = arith.constant dense<0.000000e+00> : vector<16x128xf32>
    %3 = tpu.matmul %0, %2, %cst {dimension_numbers = #tpu.dot_dimension_numbers<[1], [0], [0], [1], [0, 0, 1, 1], [], []>} : vector<16x8xf32>, vector<8x128xf32>, vector<16x128xf32> -> vector<16x128xf32>
    %c0_4 = arith.constant 0 : index
    %c0_5 = arith.constant 0 : index
    %c0_6 = arith.constant 0 : index
    %4 = vector.load %arg4[%c0_4, %c0_5, %c0_6] : memref<1x1x128xf32, #tpu.memory_space<vmem>>, vector<1x1x128xf32>
    %5 = vector.shape_cast %4 : vector<1x1x128xf32> to vector<1x128xf32>
    %6 = vector.broadcast %5 : vector<1x128xf32> to vector<16x128xf32>
    %7 = arith.addf %3, %6 : vector<16x128xf32>
    %c0_7 = arith.constant 0 : index
    %c0_8 = arith.constant 0 : index
    %c0_9 = arith.constant 0 : index
    %8 = vector.load %arg5[%c0_7, %c0_8, %c0_9] : memref<1x16x128xf32, #tpu.memory_space<vmem>>, vector<1x16x128xf32>
    %9 = vector.shape_cast %8 : vector<1x16x128xf32> to vector<16x128xf32>
    %10 = vector.shape_cast %7 : vector<16x128xf32> to vector<1x16x128xf32>
    tpu.vector_store %arg5[%c0_7, %c0_8, %c0_9], %10 {strides = array<i32>} : memref<1x16x128xf32, #tpu.memory_space<vmem>>, vector<1x16x128xf32>,
    return
  }
  func.func @transform_0(%arg0: i32, %arg1: i32) -> (i32, i32) {
    %c0_i32 = arith.constant 0 : i32
    %c0_i32_0 = arith.constant 0 : i32
    return %arg1, %c0_i32 : i32, i32
  }
  func.func @transform_1(%arg0: i32, %arg1: i32) -> (i32, i32, i32) {
    %c0_i32 = arith.constant 0 : i32
    %c0_i32_0 = arith.constant 0 : i32
    %c0_i32_1 = arith.constant 0 : i32
    return %arg0, %c0_i32, %c0_i32_0 : i32, i32, i32
  }
  func.func @transform_2(%arg0: i32, %arg1: i32) -> (i32, i32, i32) {
    %c0_i32 = arith.constant 0 : i32
    %c0_i32_0 = arith.constant 0 : i32
    %c0_i32_1 = arith.constant 0 : i32
    return %arg0, %c0_i32, %c0_i32_0 : i32, i32, i32
  }
  func.func @transform_3(%arg0: i32, %arg1: i32) -> (i32, i32, i32) {
    %c0_i32 = arith.constant 0 : i32
    %c0_i32_0 = arith.constant 0 : i32
    return %arg0, %arg1, %c0_i32 : i32, i32, i32
  }
}

module attributes {stable_mosaic.version = 11 : i64} {
  func.func @_gate_proj_kernel(%arg0: i32, %arg1: i32, %arg2: memref<16x64xf32, #tpu.memory_space<vmem>>, %arg3: memref<1x64x128xf32, #tpu.memory_space<vmem>>, %arg4: memref<1x1x128xf32, #tpu.memory_space<vmem>>, %arg5: memref<1x16x128xf32, #tpu.memory_space<vmem>>) attributes {dimension_semantics = [#tpu.dimension_semantics<parallel>, #tpu.dimension_semantics<parallel>], iteration_bounds = array<i64: 2, 1>, scalar_prefetch = 0 : i64, scratch_operands = 0 : i64, tpu.core_type = #tpu.core_type<tc>, window_params = [{transform_indices = @transform_0, window_bounds = array<i64: 16, 64>}, {transform_indices = @transform_1, window_bounds = array<i64: 1, 64, 128>}, {transform_indices = @transform_2, window_bounds = array<i64: 1, 1, 128>}, {transform_indices = @transform_3, window_bounds = array<i64: 1, 16, 128>}]} {
    %c0 = arith.constant 0 : index
    %c0_0 = arith.constant 0 : index
    %0 = vector.load %arg2[%c0, %c0_0] : memref<16x64xf32, #tpu.memory_space<vmem>>, vector<16x64xf32>
    %c0_1 = arith.constant 0 : index
    %c0_2 = arith.constant 0 : index
    %c0_3 = arith.constant 0 : index
    %1 = vector.load %arg3[%c0_1, %c0_2, %c0_3] : memref<1x64x128xf32, #tpu.memory_space<vmem>>, vector<1x64x128xf32>
    %2 = vector.shape_cast %1 : vector<1x64x128xf32> to vector<64x128xf32>
    %cst = arith.constant dense<0.000000e+00> : vector<16x128xf32>
    %3 = tpu.matmul %0, %2, %cst {dimension_numbers = #tpu.dot_dimension_numbers<[1], [0], [0], [1], [0, 0, 1, 1], [], []>} : vector<16x64xf32>, vector<64x128xf32>, vector<16x128xf32> -> vector<16x128xf32>
    %c0_4 = arith.constant 0 : index
    %c0_5 = arith.constant 0 : index
    %c0_6 = arith.constant 0 : index
    %4 = vector.load %arg4[%c0_4, %c0_5, %c0_6] : memref<1x1x128xf32, #tpu.memory_space<vmem>>, vector<1x1x128xf32>
    %5 = vector.shape_cast %4 : vector<1x1x128xf32> to vector<1x128xf32>
    %6 = vector.broadcast %5 : vector<1x128xf32> to vector<16x128xf32>
    %7 = arith.addf %3, %6 : vector<16x128xf32>
    %c0_7 = arith.constant 0 : index
    %c0_8 = arith.constant 0 : index
    %c0_9 = arith.constant 0 : index
    %8 = vector.load %arg5[%c0_7, %c0_8, %c0_9] : memref<1x16x128xf32, #tpu.memory_space<vmem>>, vector<1x16x128xf32>
    %9 = vector.shape_cast %8 : vector<1x16x128xf32> to vector<16x128xf32>
    %10 = vector.shape_cast %7 : vector<16x128xf32> to vector<1x16x128xf32>
    tpu.vector_store %arg5[%c0_7, %c0_8, %c0_9], %10 {strides = array<i32>} : memref<1x16x128xf32, #tpu.memory_space<vmem>>, vector<1x16x128xf32>,
    return
  }
  func.func @transform_0(%arg0: i32, %arg1: i32) -> (i32, i32) {
    %c0_i32 = arith.constant 0 : i32
    %c0_i32_0 = arith.constant 0 : i32
    return %arg1, %c0_i32 : i32, i32
  }
  func.func @transform_1(%arg0: i32, %arg1: i32) -> (i32, i32, i32) {
    %c0_i32 = arith.constant 0 : i32
    %c0_i32_0 = arith.constant 0 : i32
    %c0_i32_1 = arith.constant 0 : i32
    return %arg0, %c0_i32, %c0_i32_0 : i32, i32, i32
  }
  func.func @transform_2(%arg0: i32, %arg1: i32) -> (i32, i32, i32) {
    %c0_i32 = arith.constant 0 : i32
    %c0_i32_0 = arith.constant 0 : i32
    %c0_i32_1 = arith.constant 0 : i32
    return %arg0, %c0_i32, %c0_i32_0 : i32, i32, i32
  }
  func.func @transform_3(%arg0: i32, %arg1: i32) -> (i32, i32, i32) {
    %c0_i32 = arith.constant 0 : i32
    %c0_i32_0 = arith.constant 0 : i32
    return %arg0, %arg1, %c0_i32 : i32, i32, i32
  }
}

module attributes {stable_mosaic.version = 11 : i64} {
  func.func @kernel(%arg0: i32, %arg1: i32, %arg2: memref<1x8x2x128xf32, #tpu.memory_space<vmem>>, %arg3: memref<1x32x128xf32, #tpu.memory_space<vmem>>, %arg4: memref<1x8x2x32xf32, #tpu.memory_space<vmem>>, %arg5: memref<2x32xf32, #tpu.memory_space<vmem>>, %arg6: memref<2x32xf32, #tpu.memory_space<vmem>>) attributes {dimension_semantics = [#tpu.dimension_semantics<parallel>, #tpu.dimension_semantics<arbitrary>], iteration_bounds = array<i64: 2, 1>, scalar_prefetch = 0 : i64, scratch_operands = 2 : i64, tpu.core_type = #tpu.core_type<tc>, window_params = [{transform_indices = @transform_0, window_bounds = array<i64: 1, 8, 2, 128>}, {transform_indices = @transform_1, window_bounds = array<i64: 1, 32, 128>}, {transform_indices = @transform_2, window_bounds = array<i64: 1, 8, 2, 32>}]} {
    %c0_i32 = arith.constant 0 : i32
    %0 = arith.cmpi eq, %arg1, %c0_i32 : i32
    %1 = arith.extui %0 : i1 to i32
    %c0_i32_0 = arith.constant 0 : i32
    %2 = arith.cmpi ne, %1, %c0_i32_0 : i32
    scf.if %2 {
      %cst = arith.constant 0.000000e+00 : f32
      %11 = vector.broadcast %cst : f32 to vector<2x32xf32>
      %c0_6 = arith.constant 0 : index
      %c0_7 = arith.constant 0 : index
      %12 = vector.load %arg5[%c0_6, %c0_7] : memref<2x32xf32, #tpu.memory_space<vmem>>, vector<2x32xf32>
      tpu.vector_store %arg5[%c0_6, %c0_7], %11 {strides = array<i32>} : memref<2x32xf32, #tpu.memory_space<vmem>>, vector<2x32xf32>,
      %cst_8 = arith.constant 0.000000e+00 : f32
      %13 = vector.broadcast %cst_8 : f32 to vector<2x32xf32>
      %c0_9 = arith.constant 0 : index
      %c0_10 = arith.constant 0 : index
      %14 = vector.load %arg6[%c0_9, %c0_10] : memref<2x32xf32, #tpu.memory_space<vmem>>, vector<2x32xf32>
      tpu.vector_store %arg6[%c0_9, %c0_10], %13 {strides = array<i32>} : memref<2x32xf32, #tpu.memory_space<vmem>>, vector<2x32xf32>,
    } else {
    }
    %c0 = arith.constant 0 : index
    %c0_1 = arith.constant 0 : index
    %c0_2 = arith.constant 0 : index
    %3 = vector.load %arg3[%c0, %c0_1, %c0_2] : memref<1x32x128xf32, #tpu.memory_space<vmem>>, vector<1x32x128xf32>
    %4 = vector.shape_cast %3 : vector<1x32x128xf32> to vector<32x128xf32>
    %c0_i32_3 = arith.constant 0 : i32
    %5 = arith.cmpi eq, %arg0, %c0_i32_3 : i32
    %6 = arith.extui %5 : i1 to i32
    %c0_i32_4 = arith.constant 0 : i32
    %7 = arith.cmpi ne, %6, %c0_i32_4 : i32
    scf.if %7 {
      %c0_6 = arith.constant 0 : index
      %c0_7 = arith.constant 0 : index
      %11 = vector.load %arg5[%c0_6, %c0_7] : memref<2x32xf32, #tpu.memory_space<vmem>>, vector<2x32xf32>
      %c0_8 = arith.constant 0 : index
      %c0_9 = arith.constant 0 : index
      %12 = vector.load %arg6[%c0_8, %c0_9] : memref<2x32xf32, #tpu.memory_space<vmem>>, vector<2x32xf32>
      %c0_10 = arith.constant 0 : index
      %c0_11 = arith.constant 0 : index
      %c0_12 = arith.constant 0 : index
      %c0_13 = arith.constant 0 : index
      %13 = vector.load %arg2[%c0_10, %c0_11, %c0_12, %c0_13] : memref<1x8x2x128xf32, #tpu.memory_space<vmem>>, vector<1x1x2x128xf32>
      %14 = vector.shape_cast %13 : vector<1x1x2x128xf32> to vector<2x128xf32>
      %cst = arith.constant dense<0.000000e+00> : vector<2x128xf32>
      %15 = tpu.matmul %11, %4, %cst {dimension_numbers = #tpu.dot_dimension_numbers<[1], [0], [0], [1], [0, 0, 1, 1], [], []>} : vector<2x32xf32>, vector<32x128xf32>, vector<2x128xf32> -> vector<2x128xf32>
      %16 = arith.addf %14, %15 : vector<2x128xf32>
      %17 = vector.extract_strided_slice %16 {offsets = [0, 0], sizes = [2, 32], strides = [1, 1]} : vector<2x128xf32> to vector<2x32xf32>
      %18 = arith.negf %17 : vector<2x32xf32>
      %19 = math.exp %18 : vector<2x32xf32>
      %cst_14 = arith.constant 1.000000e+00 : f32
      %20 = vector.broadcast %cst_14 : f32 to vector<2x32xf32>
      %21 = arith.addf %20, %19 : vector<2x32xf32>
      %22 = arith.divf %20, %21 : vector<2x32xf32>
      %23 = vector.extract_strided_slice %16 {offsets = [0, 32], sizes = [2, 32], strides = [1, 1]} : vector<2x128xf32> to vector<2x32xf32>
      %24 = arith.negf %23 : vector<2x32xf32>
      %25 = math.exp %24 : vector<2x32xf32>
      %cst_15 = arith.constant 1.000000e+00 : f32
      %26 = vector.broadcast %cst_15 : f32 to vector<2x32xf32>
      %27 = arith.addf %26, %25 : vector<2x32xf32>
      %28 = arith.divf %26, %27 : vector<2x32xf32>
      %29 = vector.extract_strided_slice %16 {offsets = [0, 64], sizes = [2, 32], strides = [1, 1]} : vector<2x128xf32> to vector<2x32xf32>
      %30 = math.tanh %29 : vector<2x32xf32>
      %31 = vector.extract_strided_slice %16 {offsets = [0, 96], sizes = [2, 32], strides = [1, 1]} : vector<2x128xf32> to vector<2x32xf32>
      %32 = arith.negf %31 : vector<2x32xf32>
      %33 = math.exp %32 : vector<2x32xf32>
      %cst_16 = arith.constant 1.000000e+00 : f32
      %34 = vector.broadcast %cst_16 : f32 to vector<2x32xf32>
      %35 = arith.addf %34, %33 : vector<2x32xf32>
      %36 = arith.divf %34, %35 : vector<2x32xf32>
      %37 = arith.mulf %28, %12 : vector<2x32xf32>
      %38 = arith.mulf %22, %30 : vector<2x32xf32>
      %39 = arith.addf %37, %38 : vector<2x32xf32>
      %40 = math.tanh %39 : vector<2x32xf32>
      %41 = arith.mulf %36, %40 : vector<2x32xf32>
      %c0_17 = arith.constant 0 : index
      %c0_18 = arith.constant 0 : index
      %c0_19 = arith.constant 0 : index
      %c0_20 = arith.constant 0 : index
      %42 = vector.load %arg4[%c0_17, %c0_18, %c0_19, %c0_20] : memref<1x8x2x32xf32, #tpu.memory_space<vmem>>, vector<1x1x2x32xf32>
      %43 = vector.shape_cast %42 : vector<1x1x2x32xf32> to vector<2x32xf32>
      %44 = vector.shape_cast %41 : vector<2x32xf32> to vector<1x1x2x32xf32>
      tpu.vector_store %arg4[%c0_17, %c0_18, %c0_19, %c0_20], %44 {strides = array<i32>} : memref<1x8x2x32xf32, #tpu.memory_space<vmem>>, vector<1x1x2x32xf32>,
      %c0_21 = arith.constant 0 : index
      %c1 = arith.constant 1 : index
      %c0_22 = arith.constant 0 : index
      %c0_23 = arith.constant 0 : index
      %45 = vector.load %arg2[%c0_21, %c1, %c0_22, %c0_23] : memref<1x8x2x128xf32, #tpu.memory_space<vmem>>, vector<1x1x2x128xf32>
      %46 = vector.shape_cast %45 : vector<1x1x2x128xf32> to vector<2x128xf32>
      %cst_24 = arith.constant dense<0.000000e+00> : vector<2x128xf32>
      %47 = tpu.matmul %41, %4, %cst_24 {dimension_numbers = #tpu.dot_dimension_numbers<[1], [0], [0], [1], [0, 0, 1, 1], [], []>} : vector<2x32xf32>, vector<32x128xf32>, vector<2x128xf32> -> vector<2x128xf32>
      %48 = arith.addf %46, %47 : vector<2x128xf32>
      %49 = vector.extract_strided_slice %48 {offsets = [0, 0], sizes = [2, 32], strides = [1, 1]} : vector<2x128xf32> to vector<2x32xf32>
      %50 = arith.negf %49 : vector<2x32xf32>
      %51 = math.exp %50 : vector<2x32xf32>
      %cst_25 = arith.constant 1.000000e+00 : f32
      %52 = vector.broadcast %cst_25 : f32 to vector<2x32xf32>
      %53 = arith.addf %52, %51 : vector<2x32xf32>
      %54 = arith.divf %52, %53 : vector<2x32xf32>
      %55 = vector.extract_strided_slice %48 {offsets = [0, 32], sizes = [2, 32], strides = [1, 1]} : vector<2x128xf32> to vector<2x32xf32>
      %56 = arith.negf %55 : vector<2x32xf32>
      %57 = math.exp %56 : vector<2x32xf32>
      %cst_26 = arith.constant 1.000000e+00 : f32
      %58 = vector.broadcast %cst_26 : f32 to vector<2x32xf32>
      %59 = arith.addf %58, %57 : vector<2x32xf32>
      %60 = arith.divf %58, %59 : vector<2x32xf32>
      %61 = vector.extract_strided_slice %48 {offsets = [0, 64], sizes = [2, 32], strides = [1, 1]} : vector<2x128xf32> to vector<2x32xf32>
      %62 = math.tanh %61 : vector<2x32xf32>
      %63 = vector.extract_strided_slice %48 {offsets = [0, 96], sizes = [2, 32], strides = [1, 1]} : vector<2x128xf32> to vector<2x32xf32>
      %64 = arith.negf %63 : vector<2x32xf32>
      %65 = math.exp %64 : vector<2x32xf32>
      %cst_27 = arith.constant 1.000000e+00 : f32
      %66 = vector.broadcast %cst_27 : f32 to vector<2x32xf32>
      %67 = arith.addf %66, %65 : vector<2x32xf32>
      %68 = arith.divf %66, %67 : vector<2x32xf32>
      %69 = arith.mulf %60, %39 : vector<2x32xf32>
      %70 = arith.mulf %54, %62 : vector<2x32xf32>
      %71 = arith.addf %69, %70 : vector<2x32xf32>
      %72 = math.tanh %71 : vector<2x32xf32>
      %73 = arith.mulf %68, %72 : vector<2x32xf32>
      %c0_28 = arith.constant 0 : index
      %c1_29 = arith.constant 1 : index
      %c0_30 = arith.constant 0 : index
      %c0_31 = arith.constant 0 : index
      %74 = vector.load %arg4[%c0_28, %c1_29, %c0_30, %c0_31] : memref<1x8x2x32xf32, #tpu.memory_space<vmem>>, vector<1x1x2x32xf32>
      %75 = vector.shape_cast %74 : vector<1x1x2x32xf32> to vector<2x32xf32>
      %76 = vector.shape_cast %73 : vector<2x32xf32> to vector<1x1x2x32xf32>
      tpu.vector_store %arg4[%c0_28, %c1_29, %c0_30, %c0_31], %76 {strides = array<i32>} : memref<1x8x2x32xf32, #tpu.memory_space<vmem>>, vector<1x1x2x32xf32>,
      %c0_32 = arith.constant 0 : index
      %c2 = arith.constant 2 : index
      %c0_33 = arith.constant 0 : index
      %c0_34 = arith.constant 0 : index
      %77 = vector.load %arg2[%c0_32, %c2, %c0_33, %c0_34] : memref<1x8x2x128xf32, #tpu.memory_space<vmem>>, vector<1x1x2x128xf32>
      %78 = vector.shape_cast %77 : vector<1x1x2x128xf32> to vector<2x128xf32>
      %cst_35 = arith.constant dense<0.000000e+00> : vector<2x128xf32>
      %79 = tpu.matmul %73, %4, %cst_35 {dimension_numbers = #tpu.dot_dimension_numbers<[1], [0], [0], [1], [0, 0, 1, 1], [], []>} : vector<2x32xf32>, vector<32x128xf32>, vector<2x128xf32> -> vector<2x128xf32>
      %80 = arith.addf %78, %79 : vector<2x128xf32>
      %81 = vector.extract_strided_slice %80 {offsets = [0, 0], sizes = [2, 32], strides = [1, 1]} : vector<2x128xf32> to vector<2x32xf32>
      %82 = arith.negf %81 : vector<2x32xf32>
      %83 = math.exp %82 : vector<2x32xf32>
      %cst_36 = arith.constant 1.000000e+00 : f32
      %84 = vector.broadcast %cst_36 : f32 to vector<2x32xf32>
      %85 = arith.addf %84, %83 : vector<2x32xf32>
      %86 = arith.divf %84, %85 : vector<2x32xf32>
      %87 = vector.extract_strided_slice %80 {offsets = [0, 32], sizes = [2, 32], strides = [1, 1]} : vector<2x128xf32> to vector<2x32xf32>
      %88 = arith.negf %87 : vector<2x32xf32>
      %89 = math.exp %88 : vector<2x32xf32>
      %cst_37 = arith.constant 1.000000e+00 : f32
      %90 = vector.broadcast %cst_37 : f32 to vector<2x32xf32>
      %91 = arith.addf %90, %89 : vector<2x32xf32>
      %92 = arith.divf %90, %91 : vector<2x32xf32>
      %93 = vector.extract_strided_slice %80 {offsets = [0, 64], sizes = [2, 32], strides = [1, 1]} : vector<2x128xf32> to vector<2x32xf32>
      %94 = math.tanh %93 : vector<2x32xf32>
      %95 = vector.extract_strided_slice %80 {offsets = [0, 96], sizes = [2, 32], strides = [1, 1]} : vector<2x128xf32> to vector<2x32xf32>
      %96 = arith.negf %95 : vector<2x32xf32>
      %97 = math.exp %96 : vector<2x32xf32>
      %cst_38 = arith.constant 1.000000e+00 : f32
      %98 = vector.broadcast %cst_38 : f32 to vector<2x32xf32>
      %99 = arith.addf %98, %97 : vector<2x32xf32>
      %100 = arith.divf %98, %99 : vector<2x32xf32>
      %101 = arith.mulf %92, %71 : vector<2x32xf32>
      %102 = arith.mulf %86, %94 : vector<2x32xf32>
      %103 = arith.addf %101, %102 : vector<2x32xf32>
      %104 = math.tanh %103 : vector<2x32xf32>
      %105 = arith.mulf %100, %104 : vector<2x32xf32>
      %c0_39 = arith.constant 0 : index
      %c2_40 = arith.constant 2 : index
      %c0_41 = arith.constant 0 : index
      %c0_42 = arith.constant 0 : index
      %106 = vector.load %arg4[%c0_39, %c2_40, %c0_41, %c0_42] : memref<1x8x2x32xf32, #tpu.memory_space<vmem>>, vector<1x1x2x32xf32>
      %107 = vector.shape_cast %106 : vector<1x1x2x32xf32> to vector<2x32xf32>
      %108 = vector.shape_cast %105 : vector<2x32xf32> to vector<1x1x2x32xf32>
      tpu.vector_store %arg4[%c0_39, %c2_40, %c0_41, %c0_42], %108 {strides = array<i32>} : memref<1x8x2x32xf32, #tpu.memory_space<vmem>>, vector<1x1x2x32xf32>,
      %c0_43 = arith.constant 0 : index
      %c3 = arith.constant 3 : index
      %c0_44 = arith.constant 0 : index
      %c0_45 = arith.constant 0 : index
      %109 = vector.load %arg2[%c0_43, %c3, %c0_44, %c0_45] : memref<1x8x2x128xf32, #tpu.memory_space<vmem>>, vector<1x1x2x128xf32>
      %110 = vector.shape_cast %109 : vector<1x1x2x128xf32> to vector<2x128xf32>
      %cst_46 = arith.constant dense<0.000000e+00> : vector<2x128xf32>
      %111 = tpu.matmul %105, %4, %cst_46 {dimension_numbers = #tpu.dot_dimension_numbers<[1], [0], [0], [1], [0, 0, 1, 1], [], []>} : vector<2x32xf32>, vector<32x128xf32>, vector<2x128xf32> -> vector<2x128xf32>
      %112 = arith.addf %110, %111 : vector<2x128xf32>
      %113 = vector.extract_strided_slice %112 {offsets = [0, 0], sizes = [2, 32], strides = [1, 1]} : vector<2x128xf32> to vector<2x32xf32>
      %114 = arith.negf %113 : vector<2x32xf32>
      %115 = math.exp %114 : vector<2x32xf32>
      %cst_47 = arith.constant 1.000000e+00 : f32
      %116 = vector.broadcast %cst_47 : f32 to vector<2x32xf32>
      %117 = arith.addf %116, %115 : vector<2x32xf32>
      %118 = arith.divf %116, %117 : vector<2x32xf32>
      %119 = vector.extract_strided_slice %112 {offsets = [0, 32], sizes = [2, 32], strides = [1, 1]} : vector<2x128xf32> to vector<2x32xf32>
      %120 = arith.negf %119 : vector<2x32xf32>
      %121 = math.exp %120 : vector<2x32xf32>
      %cst_48 = arith.constant 1.000000e+00 : f32
      %122 = vector.broadcast %cst_48 : f32 to vector<2x32xf32>
      %123 = arith.addf %122, %121 : vector<2x32xf32>
      %124 = arith.divf %122, %123 : vector<2x32xf32>
      %125 = vector.extract_strided_slice %112 {offsets = [0, 64], sizes = [2, 32], strides = [1, 1]} : vector<2x128xf32> to vector<2x32xf32>
      %126 = math.tanh %125 : vector<2x32xf32>
      %127 = vector.extract_strided_slice %112 {offsets = [0, 96], sizes = [2, 32], strides = [1, 1]} : vector<2x128xf32> to vector<2x32xf32>
      %128 = arith.negf %127 : vector<2x32xf32>
      %129 = math.exp %128 : vector<2x32xf32>
      %cst_49 = arith.constant 1.000000e+00 : f32
      %130 = vector.broadcast %cst_49 : f32 to vector<2x32xf32>
      %131 = arith.addf %130, %129 : vector<2x32xf32>
      %132 = arith.divf %130, %131 : vector<2x32xf32>
      %133 = arith.mulf %124, %103 : vector<2x32xf32>
      %134 = arith.mulf %118, %126 : vector<2x32xf32>
      %135 = arith.addf %133, %134 : vector<2x32xf32>
      %136 = math.tanh %135 : vector<2x32xf32>
      %137 = arith.mulf %132, %136 : vector<2x32xf32>
      %c0_50 = arith.constant 0 : index
      %c3_51 = arith.constant 3 : index
      %c0_52 = arith.constant 0 : index
      %c0_53 = arith.constant 0 : index
      %138 = vector.load %arg4[%c0_50, %c3_51, %c0_52, %c0_53] : memref<1x8x2x32xf32, #tpu.memory_space<vmem>>, vector<1x1x2x32xf32>
      %139 = vector.shape_cast %138 : vector<1x1x2x32xf32> to vector<2x32xf32>
      %140 = vector.shape_cast %137 : vector<2x32xf32> to vector<1x1x2x32xf32>
      tpu.vector_store %arg4[%c0_50, %c3_51, %c0_52, %c0_53], %140 {strides = array<i32>} : memref<1x8x2x32xf32, #tpu.memory_space<vmem>>, vector<1x1x2x32xf32>,
      %c0_54 = arith.constant 0 : index
      %c4 = arith.constant 4 : index
      %c0_55 = arith.constant 0 : index
      %c0_56 = arith.constant 0 : index
      %141 = vector.load %arg2[%c0_54, %c4, %c0_55, %c0_56] : memref<1x8x2x128xf32, #tpu.memory_space<vmem>>, vector<1x1x2x128xf32>
      %142 = vector.shape_cast %141 : vector<1x1x2x128xf32> to vector<2x128xf32>
      %cst_57 = arith.constant dense<0.000000e+00> : vector<2x128xf32>
      %143 = tpu.matmul %137, %4, %cst_57 {dimension_numbers = #tpu.dot_dimension_numbers<[1], [0], [0], [1], [0, 0, 1, 1], [], []>} : vector<2x32xf32>, vector<32x128xf32>, vector<2x128xf32> -> vector<2x128xf32>
      %144 = arith.addf %142, %143 : vector<2x128xf32>
      %145 = vector.extract_strided_slice %144 {offsets = [0, 0], sizes = [2, 32], strides = [1, 1]} : vector<2x128xf32> to vector<2x32xf32>
      %146 = arith.negf %145 : vector<2x32xf32>
      %147 = math.exp %146 : vector<2x32xf32>
      %cst_58 = arith.constant 1.000000e+00 : f32
      %148 = vector.broadcast %cst_58 : f32 to vector<2x32xf32>
      %149 = arith.addf %148, %147 : vector<2x32xf32>
      %150 = arith.divf %148, %149 : vector<2x32xf32>
      %151 = vector.extract_strided_slice %144 {offsets = [0, 32], sizes = [2, 32], strides = [1, 1]} : vector<2x128xf32> to vector<2x32xf32>
      %152 = arith.negf %151 : vector<2x32xf32>
      %153 = math.exp %152 : vector<2x32xf32>
      %cst_59 = arith.constant 1.000000e+00 : f32
      %154 = vector.broadcast %cst_59 : f32 to vector<2x32xf32>
      %155 = arith.addf %154, %153 : vector<2x32xf32>
      %156 = arith.divf %154, %155 : vector<2x32xf32>
      %157 = vector.extract_strided_slice %144 {offsets = [0, 64], sizes = [2, 32], strides = [1, 1]} : vector<2x128xf32> to vector<2x32xf32>
      %158 = math.tanh %157 : vector<2x32xf32>
      %159 = vector.extract_strided_slice %144 {offsets = [0, 96], sizes = [2, 32], strides = [1, 1]} : vector<2x128xf32> to vector<2x32xf32>
      %160 = arith.negf %159 : vector<2x32xf32>
      %161 = math.exp %160 : vector<2x32xf32>
      %cst_60 = arith.constant 1.000000e+00 : f32
      %162 = vector.broadcast %cst_60 : f32 to vector<2x32xf32>
      %163 = arith.addf %162, %161 : vector<2x32xf32>
      %164 = arith.divf %162, %163 : vector<2x32xf32>
      %165 = arith.mulf %156, %135 : vector<2x32xf32>
      %166 = arith.mulf %150, %158 : vector<2x32xf32>
      %167 = arith.addf %165, %166 : vector<2x32xf32>
      %168 = math.tanh %167 : vector<2x32xf32>
      %169 = arith.mulf %164, %168 : vector<2x32xf32>
      %c0_61 = arith.constant 0 : index
      %c4_62 = arith.constant 4 : index
      %c0_63 = arith.constant 0 : index
      %c0_64 = arith.constant 0 : index
      %170 = vector.load %arg4[%c0_61, %c4_62, %c0_63, %c0_64] : memref<1x8x2x32xf32, #tpu.memory_space<vmem>>, vector<1x1x2x32xf32>
      %171 = vector.shape_cast %170 : vector<1x1x2x32xf32> to vector<2x32xf32>
      %172 = vector.shape_cast %169 : vector<2x32xf32> to vector<1x1x2x32xf32>
      tpu.vector_store %arg4[%c0_61, %c4_62, %c0_63, %c0_64], %172 {strides = array<i32>} : memref<1x8x2x32xf32, #tpu.memory_space<vmem>>, vector<1x1x2x32xf32>,
      %c0_65 = arith.constant 0 : index
      %c5 = arith.constant 5 : index
      %c0_66 = arith.constant 0 : index
      %c0_67 = arith.constant 0 : index
      %173 = vector.load %arg2[%c0_65, %c5, %c0_66, %c0_67] : memref<1x8x2x128xf32, #tpu.memory_space<vmem>>, vector<1x1x2x128xf32>
      %174 = vector.shape_cast %173 : vector<1x1x2x128xf32> to vector<2x128xf32>
      %cst_68 = arith.constant dense<0.000000e+00> : vector<2x128xf32>
      %175 = tpu.matmul %169, %4, %cst_68 {dimension_numbers = #tpu.dot_dimension_numbers<[1], [0], [0], [1], [0, 0, 1, 1], [], []>} : vector<2x32xf32>, vector<32x128xf32>, vector<2x128xf32> -> vector<2x128xf32>
      %176 = arith.addf %174, %175 : vector<2x128xf32>
      %177 = vector.extract_strided_slice %176 {offsets = [0, 0], sizes = [2, 32], strides = [1, 1]} : vector<2x128xf32> to vector<2x32xf32>
      %178 = arith.negf %177 : vector<2x32xf32>
      %179 = math.exp %178 : vector<2x32xf32>
      %cst_69 = arith.constant 1.000000e+00 : f32
      %180 = vector.broadcast %cst_69 : f32 to vector<2x32xf32>
      %181 = arith.addf %180, %179 : vector<2x32xf32>
      %182 = arith.divf %180, %181 : vector<2x32xf32>
      %183 = vector.extract_strided_slice %176 {offsets = [0, 32], sizes = [2, 32], strides = [1, 1]} : vector<2x128xf32> to vector<2x32xf32>
      %184 = arith.negf %183 : vector<2x32xf32>
      %185 = math.exp %184 : vector<2x32xf32>
      %cst_70 = arith.constant 1.000000e+00 : f32
      %186 = vector.broadcast %cst_70 : f32 to vector<2x32xf32>
      %187 = arith.addf %186, %185 : vector<2x32xf32>
      %188 = arith.divf %186, %187 : vector<2x32xf32>
      %189 = vector.extract_strided_slice %176 {offsets = [0, 64], sizes = [2, 32], strides = [1, 1]} : vector<2x128xf32> to vector<2x32xf32>
      %190 = math.tanh %189 : vector<2x32xf32>
      %191 = vector.extract_strided_slice %176 {offsets = [0, 96], sizes = [2, 32], strides = [1, 1]} : vector<2x128xf32> to vector<2x32xf32>
      %192 = arith.negf %191 : vector<2x32xf32>
      %193 = math.exp %192 : vector<2x32xf32>
      %cst_71 = arith.constant 1.000000e+00 : f32
      %194 = vector.broadcast %cst_71 : f32 to vector<2x32xf32>
      %195 = arith.addf %194, %193 : vector<2x32xf32>
      %196 = arith.divf %194, %195 : vector<2x32xf32>
      %197 = arith.mulf %188, %167 : vector<2x32xf32>
      %198 = arith.mulf %182, %190 : vector<2x32xf32>
      %199 = arith.addf %197, %198 : vector<2x32xf32>
      %200 = math.tanh %199 : vector<2x32xf32>
      %201 = arith.mulf %196, %200 : vector<2x32xf32>
      %c0_72 = arith.constant 0 : index
      %c5_73 = arith.constant 5 : index
      %c0_74 = arith.constant 0 : index
      %c0_75 = arith.constant 0 : index
      %202 = vector.load %arg4[%c0_72, %c5_73, %c0_74, %c0_75] : memref<1x8x2x32xf32, #tpu.memory_space<vmem>>, vector<1x1x2x32xf32>
      %203 = vector.shape_cast %202 : vector<1x1x2x32xf32> to vector<2x32xf32>
      %204 = vector.shape_cast %201 : vector<2x32xf32> to vector<1x1x2x32xf32>
      tpu.vector_store %arg4[%c0_72, %c5_73, %c0_74, %c0_75], %204 {strides = array<i32>} : memref<1x8x2x32xf32, #tpu.memory_space<vmem>>, vector<1x1x2x32xf32>,
      %c0_76 = arith.constant 0 : index
      %c6 = arith.constant 6 : index
      %c0_77 = arith.constant 0 : index
      %c0_78 = arith.constant 0 : index
      %205 = vector.load %arg2[%c0_76, %c6, %c0_77, %c0_78] : memref<1x8x2x128xf32, #tpu.memory_space<vmem>>, vector<1x1x2x128xf32>
      %206 = vector.shape_cast %205 : vector<1x1x2x128xf32> to vector<2x128xf32>
      %cst_79 = arith.constant dense<0.000000e+00> : vector<2x128xf32>
      %207 = tpu.matmul %201, %4, %cst_79 {dimension_numbers = #tpu.dot_dimension_numbers<[1], [0], [0], [1], [0, 0, 1, 1], [], []>} : vector<2x32xf32>, vector<32x128xf32>, vector<2x128xf32> -> vector<2x128xf32>
      %208 = arith.addf %206, %207 : vector<2x128xf32>
      %209 = vector.extract_strided_slice %208 {offsets = [0, 0], sizes = [2, 32], strides = [1, 1]} : vector<2x128xf32> to vector<2x32xf32>
      %210 = arith.negf %209 : vector<2x32xf32>
      %211 = math.exp %210 : vector<2x32xf32>
      %cst_80 = arith.constant 1.000000e+00 : f32
      %212 = vector.broadcast %cst_80 : f32 to vector<2x32xf32>
      %213 = arith.addf %212, %211 : vector<2x32xf32>
      %214 = arith.divf %212, %213 : vector<2x32xf32>
      %215 = vector.extract_strided_slice %208 {offsets = [0, 32], sizes = [2, 32], strides = [1, 1]} : vector<2x128xf32> to vector<2x32xf32>
      %216 = arith.negf %215 : vector<2x32xf32>
      %217 = math.exp %216 : vector<2x32xf32>
      %cst_81 = arith.constant 1.000000e+00 : f32
      %218 = vector.broadcast %cst_81 : f32 to vector<2x32xf32>
      %219 = arith.addf %218, %217 : vector<2x32xf32>
      %220 = arith.divf %218, %219 : vector<2x32xf32>
      %221 = vector.extract_strided_slice %208 {offsets = [0, 64], sizes = [2, 32], strides = [1, 1]} : vector<2x128xf32> to vector<2x32xf32>
      %222 = math.tanh %221 : vector<2x32xf32>
      %223 = vector.extract_strided_slice %208 {offsets = [0, 96], sizes = [2, 32], strides = [1, 1]} : vector<2x128xf32> to vector<2x32xf32>
      %224 = arith.negf %223 : vector<2x32xf32>
      %225 = math.exp %224 : vector<2x32xf32>
      %cst_82 = arith.constant 1.000000e+00 : f32
      %226 = vector.broadcast %cst_82 : f32 to vector<2x32xf32>
      %227 = arith.addf %226, %225 : vector<2x32xf32>
      %228 = arith.divf %226, %227 : vector<2x32xf32>
      %229 = arith.mulf %220, %199 : vector<2x32xf32>
      %230 = arith.mulf %214, %222 : vector<2x32xf32>
      %231 = arith.addf %229, %230 : vector<2x32xf32>
      %232 = math.tanh %231 : vector<2x32xf32>
      %233 = arith.mulf %228, %232 : vector<2x32xf32>
      %c0_83 = arith.constant 0 : index
      %c6_84 = arith.constant 6 : index
      %c0_85 = arith.constant 0 : index
      %c0_86 = arith.constant 0 : index
      %234 = vector.load %arg4[%c0_83, %c6_84, %c0_85, %c0_86] : memref<1x8x2x32xf32, #tpu.memory_space<vmem>>, vector<1x1x2x32xf32>
      %235 = vector.shape_cast %234 : vector<1x1x2x32xf32> to vector<2x32xf32>
      %236 = vector.shape_cast %233 : vector<2x32xf32> to vector<1x1x2x32xf32>
      tpu.vector_store %arg4[%c0_83, %c6_84, %c0_85, %c0_86], %236 {strides = array<i32>} : memref<1x8x2x32xf32, #tpu.memory_space<vmem>>, vector<1x1x2x32xf32>,
      %c0_87 = arith.constant 0 : index
      %c7 = arith.constant 7 : index
      %c0_88 = arith.constant 0 : index
      %c0_89 = arith.constant 0 : index
      %237 = vector.load %arg2[%c0_87, %c7, %c0_88, %c0_89] : memref<1x8x2x128xf32, #tpu.memory_space<vmem>>, vector<1x1x2x128xf32>
      %238 = vector.shape_cast %237 : vector<1x1x2x128xf32> to vector<2x128xf32>
      %cst_90 = arith.constant dense<0.000000e+00> : vector<2x128xf32>
      %239 = tpu.matmul %233, %4, %cst_90 {dimension_numbers = #tpu.dot_dimension_numbers<[1], [0], [0], [1], [0, 0, 1, 1], [], []>} : vector<2x32xf32>, vector<32x128xf32>, vector<2x128xf32> -> vector<2x128xf32>
      %240 = arith.addf %238, %239 : vector<2x128xf32>
      %241 = vector.extract_strided_slice %240 {offsets = [0, 0], sizes = [2, 32], strides = [1, 1]} : vector<2x128xf32> to vector<2x32xf32>
      %242 = arith.negf %241 : vector<2x32xf32>
      %243 = math.exp %242 : vector<2x32xf32>
      %cst_91 = arith.constant 1.000000e+00 : f32
      %244 = vector.broadcast %cst_91 : f32 to vector<2x32xf32>
      %245 = arith.addf %244, %243 : vector<2x32xf32>
      %246 = arith.divf %244, %245 : vector<2x32xf32>
      %247 = vector.extract_strided_slice %240 {offsets = [0, 32], sizes = [2, 32], strides = [1, 1]} : vector<2x128xf32> to vector<2x32xf32>
      %248 = arith.negf %247 : vector<2x32xf32>
      %249 = math.exp %248 : vector<2x32xf32>
      %cst_92 = arith.constant 1.000000e+00 : f32
      %250 = vector.broadcast %cst_92 : f32 to vector<2x32xf32>
      %251 = arith.addf %250, %249 : vector<2x32xf32>
      %252 = arith.divf %250, %251 : vector<2x32xf32>
      %253 = vector.extract_strided_slice %240 {offsets = [0, 64], sizes = [2, 32], strides = [1, 1]} : vector<2x128xf32> to vector<2x32xf32>
      %254 = math.tanh %253 : vector<2x32xf32>
      %255 = vector.extract_strided_slice %240 {offsets = [0, 96], sizes = [2, 32], strides = [1, 1]} : vector<2x128xf32> to vector<2x32xf32>
      %256 = arith.negf %255 : vector<2x32xf32>
      %257 = math.exp %256 : vector<2x32xf32>
      %cst_93 = arith.constant 1.000000e+00 : f32
      %258 = vector.broadcast %cst_93 : f32 to vector<2x32xf32>
      %259 = arith.addf %258, %257 : vector<2x32xf32>
      %260 = arith.divf %258, %259 : vector<2x32xf32>
      %261 = arith.mulf %252, %231 : vector<2x32xf32>
      %262 = arith.mulf %246, %254 : vector<2x32xf32>
      %263 = arith.addf %261, %262 : vector<2x32xf32>
      %264 = math.tanh %263 : vector<2x32xf32>
      %265 = arith.mulf %260, %264 : vector<2x32xf32>
      %c0_94 = arith.constant 0 : index
      %c7_95 = arith.constant 7 : index
      %c0_96 = arith.constant 0 : index
      %c0_97 = arith.constant 0 : index
      %266 = vector.load %arg4[%c0_94, %c7_95, %c0_96, %c0_97] : memref<1x8x2x32xf32, #tpu.memory_space<vmem>>, vector<1x1x2x32xf32>
      %267 = vector.shape_cast %266 : vector<1x1x2x32xf32> to vector<2x32xf32>
      %268 = vector.shape_cast %265 : vector<2x32xf32> to vector<1x1x2x32xf32>
      tpu.vector_store %arg4[%c0_94, %c7_95, %c0_96, %c0_97], %268 {strides = array<i32>} : memref<1x8x2x32xf32, #tpu.memory_space<vmem>>, vector<1x1x2x32xf32>,
      %c0_98 = arith.constant 0 : index
      %c0_99 = arith.constant 0 : index
      %269 = vector.load %arg5[%c0_98, %c0_99] : memref<2x32xf32, #tpu.memory_space<vmem>>, vector<2x32xf32>
      tpu.vector_store %arg5[%c0_98, %c0_99], %265 {strides = array<i32>} : memref<2x32xf32, #tpu.memory_space<vmem>>, vector<2x32xf32>,
      %c0_100 = arith.constant 0 : index
      %c0_101 = arith.constant 0 : index
      %270 = vector.load %arg6[%c0_100, %c0_101] : memref<2x32xf32, #tpu.memory_space<vmem>>, vector<2x32xf32>
      tpu.vector_store %arg6[%c0_100, %c0_101], %263 {strides = array<i32>} : memref<2x32xf32, #tpu.memory_space<vmem>>, vector<2x32xf32>,
    } else {
    }
    %c1_i32 = arith.constant 1 : i32
    %8 = arith.cmpi eq, %arg0, %c1_i32 : i32
    %9 = arith.extui %8 : i1 to i32
    %c0_i32_5 = arith.constant 0 : i32
    %10 = arith.cmpi ne, %9, %c0_i32_5 : i32
    scf.if %10 {
      %c0_6 = arith.constant 0 : index
      %c0_7 = arith.constant 0 : index
      %11 = vector.load %arg5[%c0_6, %c0_7] : memref<2x32xf32, #tpu.memory_space<vmem>>, vector<2x32xf32>
      %c0_8 = arith.constant 0 : index
      %c0_9 = arith.constant 0 : index
      %12 = vector.load %arg6[%c0_8, %c0_9] : memref<2x32xf32, #tpu.memory_space<vmem>>, vector<2x32xf32>
      %c0_10 = arith.constant 0 : index
      %c7 = arith.constant 7 : index
      %c0_11 = arith.constant 0 : index
      %c0_12 = arith.constant 0 : index
      %13 = vector.load %arg2[%c0_10, %c7, %c0_11, %c0_12] : memref<1x8x2x128xf32, #tpu.memory_space<vmem>>, vector<1x1x2x128xf32>
      %14 = vector.shape_cast %13 : vector<1x1x2x128xf32> to vector<2x128xf32>
      %cst = arith.constant dense<0.000000e+00> : vector<2x128xf32>
      %15 = tpu.matmul %11, %4, %cst {dimension_numbers = #tpu.dot_dimension_numbers<[1], [0], [0], [1], [0, 0, 1, 1], [], []>} : vector<2x32xf32>, vector<32x128xf32>, vector<2x128xf32> -> vector<2x128xf32>
      %16 = arith.addf %14, %15 : vector<2x128xf32>
      %17 = vector.extract_strided_slice %16 {offsets = [0, 0], sizes = [2, 32], strides = [1, 1]} : vector<2x128xf32> to vector<2x32xf32>
      %18 = arith.negf %17 : vector<2x32xf32>
      %19 = math.exp %18 : vector<2x32xf32>
      %cst_13 = arith.constant 1.000000e+00 : f32
      %20 = vector.broadcast %cst_13 : f32 to vector<2x32xf32>
      %21 = arith.addf %20, %19 : vector<2x32xf32>
      %22 = arith.divf %20, %21 : vector<2x32xf32>
      %23 = vector.extract_strided_slice %16 {offsets = [0, 32], sizes = [2, 32], strides = [1, 1]} : vector<2x128xf32> to vector<2x32xf32>
      %24 = arith.negf %23 : vector<2x32xf32>
      %25 = math.exp %24 : vector<2x32xf32>
      %cst_14 = arith.constant 1.000000e+00 : f32
      %26 = vector.broadcast %cst_14 : f32 to vector<2x32xf32>
      %27 = arith.addf %26, %25 : vector<2x32xf32>
      %28 = arith.divf %26, %27 : vector<2x32xf32>
      %29 = vector.extract_strided_slice %16 {offsets = [0, 64], sizes = [2, 32], strides = [1, 1]} : vector<2x128xf32> to vector<2x32xf32>
      %30 = math.tanh %29 : vector<2x32xf32>
      %31 = vector.extract_strided_slice %16 {offsets = [0, 96], sizes = [2, 32], strides = [1, 1]} : vector<2x128xf32> to vector<2x32xf32>
      %32 = arith.negf %31 : vector<2x32xf32>
      %33 = math.exp %32 : vector<2x32xf32>
      %cst_15 = arith.constant 1.000000e+00 : f32
      %34 = vector.broadcast %cst_15 : f32 to vector<2x32xf32>
      %35 = arith.addf %34, %33 : vector<2x32xf32>
      %36 = arith.divf %34, %35 : vector<2x32xf32>
      %37 = arith.mulf %28, %12 : vector<2x32xf32>
      %38 = arith.mulf %22, %30 : vector<2x32xf32>
      %39 = arith.addf %37, %38 : vector<2x32xf32>
      %40 = math.tanh %39 : vector<2x32xf32>
      %41 = arith.mulf %36, %40 : vector<2x32xf32>
      %c0_16 = arith.constant 0 : index
      %c7_17 = arith.constant 7 : index
      %c0_18 = arith.constant 0 : index
      %c0_19 = arith.constant 0 : index
      %42 = vector.load %arg4[%c0_16, %c7_17, %c0_18, %c0_19] : memref<1x8x2x32xf32, #tpu.memory_space<vmem>>, vector<1x1x2x32xf32>
      %43 = vector.shape_cast %42 : vector<1x1x2x32xf32> to vector<2x32xf32>
      %44 = vector.shape_cast %41 : vector<2x32xf32> to vector<1x1x2x32xf32>
      tpu.vector_store %arg4[%c0_16, %c7_17, %c0_18, %c0_19], %44 {strides = array<i32>} : memref<1x8x2x32xf32, #tpu.memory_space<vmem>>, vector<1x1x2x32xf32>,
      %c0_20 = arith.constant 0 : index
      %c6 = arith.constant 6 : index
      %c0_21 = arith.constant 0 : index
      %c0_22 = arith.constant 0 : index
      %45 = vector.load %arg2[%c0_20, %c6, %c0_21, %c0_22] : memref<1x8x2x128xf32, #tpu.memory_space<vmem>>, vector<1x1x2x128xf32>
      %46 = vector.shape_cast %45 : vector<1x1x2x128xf32> to vector<2x128xf32>
      %cst_23 = arith.constant dense<0.000000e+00> : vector<2x128xf32>
      %47 = tpu.matmul %41, %4, %cst_23 {dimension_numbers = #tpu.dot_dimension_numbers<[1], [0], [0], [1], [0, 0, 1, 1], [], []>} : vector<2x32xf32>, vector<32x128xf32>, vector<2x128xf32> -> vector<2x128xf32>
      %48 = arith.addf %46, %47 : vector<2x128xf32>
      %49 = vector.extract_strided_slice %48 {offsets = [0, 0], sizes = [2, 32], strides = [1, 1]} : vector<2x128xf32> to vector<2x32xf32>
      %50 = arith.negf %49 : vector<2x32xf32>
      %51 = math.exp %50 : vector<2x32xf32>
      %cst_24 = arith.constant 1.000000e+00 : f32
      %52 = vector.broadcast %cst_24 : f32 to vector<2x32xf32>
      %53 = arith.addf %52, %51 : vector<2x32xf32>
      %54 = arith.divf %52, %53 : vector<2x32xf32>
      %55 = vector.extract_strided_slice %48 {offsets = [0, 32], sizes = [2, 32], strides = [1, 1]} : vector<2x128xf32> to vector<2x32xf32>
      %56 = arith.negf %55 : vector<2x32xf32>
      %57 = math.exp %56 : vector<2x32xf32>
      %cst_25 = arith.constant 1.000000e+00 : f32
      %58 = vector.broadcast %cst_25 : f32 to vector<2x32xf32>
      %59 = arith.addf %58, %57 : vector<2x32xf32>
      %60 = arith.divf %58, %59 : vector<2x32xf32>
      %61 = vector.extract_strided_slice %48 {offsets = [0, 64], sizes = [2, 32], strides = [1, 1]} : vector<2x128xf32> to vector<2x32xf32>
      %62 = math.tanh %61 : vector<2x32xf32>
      %63 = vector.extract_strided_slice %48 {offsets = [0, 96], sizes = [2, 32], strides = [1, 1]} : vector<2x128xf32> to vector<2x32xf32>
      %64 = arith.negf %63 : vector<2x32xf32>
      %65 = math.exp %64 : vector<2x32xf32>
      %cst_26 = arith.constant 1.000000e+00 : f32
      %66 = vector.broadcast %cst_26 : f32 to vector<2x32xf32>
      %67 = arith.addf %66, %65 : vector<2x32xf32>
      %68 = arith.divf %66, %67 : vector<2x32xf32>
      %69 = arith.mulf %60, %39 : vector<2x32xf32>
      %70 = arith.mulf %54, %62 : vector<2x32xf32>
      %71 = arith.addf %69, %70 : vector<2x32xf32>
      %72 = math.tanh %71 : vector<2x32xf32>
      %73 = arith.mulf %68, %72 : vector<2x32xf32>
      %c0_27 = arith.constant 0 : index
      %c6_28 = arith.constant 6 : index
      %c0_29 = arith.constant 0 : index
      %c0_30 = arith.constant 0 : index
      %74 = vector.load %arg4[%c0_27, %c6_28, %c0_29, %c0_30] : memref<1x8x2x32xf32, #tpu.memory_space<vmem>>, vector<1x1x2x32xf32>
      %75 = vector.shape_cast %74 : vector<1x1x2x32xf32> to vector<2x32xf32>
      %76 = vector.shape_cast %73 : vector<2x32xf32> to vector<1x1x2x32xf32>
      tpu.vector_store %arg4[%c0_27, %c6_28, %c0_29, %c0_30], %76 {strides = array<i32>} : memref<1x8x2x32xf32, #tpu.memory_space<vmem>>, vector<1x1x2x32xf32>,
      %c0_31 = arith.constant 0 : index
      %c5 = arith.constant 5 : index
      %c0_32 = arith.constant 0 : index
      %c0_33 = arith.constant 0 : index
      %77 = vector.load %arg2[%c0_31, %c5, %c0_32, %c0_33] : memref<1x8x2x128xf32, #tpu.memory_space<vmem>>, vector<1x1x2x128xf32>
      %78 = vector.shape_cast %77 : vector<1x1x2x128xf32> to vector<2x128xf32>
      %cst_34 = arith.constant dense<0.000000e+00> : vector<2x128xf32>
      %79 = tpu.matmul %73, %4, %cst_34 {dimension_numbers = #tpu.dot_dimension_numbers<[1], [0], [0], [1], [0, 0, 1, 1], [], []>} : vector<2x32xf32>, vector<32x128xf32>, vector<2x128xf32> -> vector<2x128xf32>
      %80 = arith.addf %78, %79 : vector<2x128xf32>
      %81 = vector.extract_strided_slice %80 {offsets = [0, 0], sizes = [2, 32], strides = [1, 1]} : vector<2x128xf32> to vector<2x32xf32>
      %82 = arith.negf %81 : vector<2x32xf32>
      %83 = math.exp %82 : vector<2x32xf32>
      %cst_35 = arith.constant 1.000000e+00 : f32
      %84 = vector.broadcast %cst_35 : f32 to vector<2x32xf32>
      %85 = arith.addf %84, %83 : vector<2x32xf32>
      %86 = arith.divf %84, %85 : vector<2x32xf32>
      %87 = vector.extract_strided_slice %80 {offsets = [0, 32], sizes = [2, 32], strides = [1, 1]} : vector<2x128xf32> to vector<2x32xf32>
      %88 = arith.negf %87 : vector<2x32xf32>
      %89 = math.exp %88 : vector<2x32xf32>
      %cst_36 = arith.constant 1.000000e+00 : f32
      %90 = vector.broadcast %cst_36 : f32 to vector<2x32xf32>
      %91 = arith.addf %90, %89 : vector<2x32xf32>
      %92 = arith.divf %90, %91 : vector<2x32xf32>
      %93 = vector.extract_strided_slice %80 {offsets = [0, 64], sizes = [2, 32], strides = [1, 1]} : vector<2x128xf32> to vector<2x32xf32>
      %94 = math.tanh %93 : vector<2x32xf32>
      %95 = vector.extract_strided_slice %80 {offsets = [0, 96], sizes = [2, 32], strides = [1, 1]} : vector<2x128xf32> to vector<2x32xf32>
      %96 = arith.negf %95 : vector<2x32xf32>
      %97 = math.exp %96 : vector<2x32xf32>
      %cst_37 = arith.constant 1.000000e+00 : f32
      %98 = vector.broadcast %cst_37 : f32 to vector<2x32xf32>
      %99 = arith.addf %98, %97 : vector<2x32xf32>
      %100 = arith.divf %98, %99 : vector<2x32xf32>
      %101 = arith.mulf %92, %71 : vector<2x32xf32>
      %102 = arith.mulf %86, %94 : vector<2x32xf32>
      %103 = arith.addf %101, %102 : vector<2x32xf32>
      %104 = math.tanh %103 : vector<2x32xf32>
      %105 = arith.mulf %100, %104 : vector<2x32xf32>
      %c0_38 = arith.constant 0 : index
      %c5_39 = arith.constant 5 : index
      %c0_40 = arith.constant 0 : index
      %c0_41 = arith.constant 0 : index
      %106 = vector.load %arg4[%c0_38, %c5_39, %c0_40, %c0_41] : memref<1x8x2x32xf32, #tpu.memory_space<vmem>>, vector<1x1x2x32xf32>
      %107 = vector.shape_cast %106 : vector<1x1x2x32xf32> to vector<2x32xf32>
      %108 = vector.shape_cast %105 : vector<2x32xf32> to vector<1x1x2x32xf32>
      tpu.vector_store %arg4[%c0_38, %c5_39, %c0_40, %c0_41], %108 {strides = array<i32>} : memref<1x8x2x32xf32, #tpu.memory_space<vmem>>, vector<1x1x2x32xf32>,
      %c0_42 = arith.constant 0 : index
      %c4 = arith.constant 4 : index
      %c0_43 = arith.constant 0 : index
      %c0_44 = arith.constant 0 : index
      %109 = vector.load %arg2[%c0_42, %c4, %c0_43, %c0_44] : memref<1x8x2x128xf32, #tpu.memory_space<vmem>>, vector<1x1x2x128xf32>
      %110 = vector.shape_cast %109 : vector<1x1x2x128xf32> to vector<2x128xf32>
      %cst_45 = arith.constant dense<0.000000e+00> : vector<2x128xf32>
      %111 = tpu.matmul %105, %4, %cst_45 {dimension_numbers = #tpu.dot_dimension_numbers<[1], [0], [0], [1], [0, 0, 1, 1], [], []>} : vector<2x32xf32>, vector<32x128xf32>, vector<2x128xf32> -> vector<2x128xf32>
      %112 = arith.addf %110, %111 : vector<2x128xf32>
      %113 = vector.extract_strided_slice %112 {offsets = [0, 0], sizes = [2, 32], strides = [1, 1]} : vector<2x128xf32> to vector<2x32xf32>
      %114 = arith.negf %113 : vector<2x32xf32>
      %115 = math.exp %114 : vector<2x32xf32>
      %cst_46 = arith.constant 1.000000e+00 : f32
      %116 = vector.broadcast %cst_46 : f32 to vector<2x32xf32>
      %117 = arith.addf %116, %115 : vector<2x32xf32>
      %118 = arith.divf %116, %117 : vector<2x32xf32>
      %119 = vector.extract_strided_slice %112 {offsets = [0, 32], sizes = [2, 32], strides = [1, 1]} : vector<2x128xf32> to vector<2x32xf32>
      %120 = arith.negf %119 : vector<2x32xf32>
      %121 = math.exp %120 : vector<2x32xf32>
      %cst_47 = arith.constant 1.000000e+00 : f32
      %122 = vector.broadcast %cst_47 : f32 to vector<2x32xf32>
      %123 = arith.addf %122, %121 : vector<2x32xf32>
      %124 = arith.divf %122, %123 : vector<2x32xf32>
      %125 = vector.extract_strided_slice %112 {offsets = [0, 64], sizes = [2, 32], strides = [1, 1]} : vector<2x128xf32> to vector<2x32xf32>
      %126 = math.tanh %125 : vector<2x32xf32>
      %127 = vector.extract_strided_slice %112 {offsets = [0, 96], sizes = [2, 32], strides = [1, 1]} : vector<2x128xf32> to vector<2x32xf32>
      %128 = arith.negf %127 : vector<2x32xf32>
      %129 = math.exp %128 : vector<2x32xf32>
      %cst_48 = arith.constant 1.000000e+00 : f32
      %130 = vector.broadcast %cst_48 : f32 to vector<2x32xf32>
      %131 = arith.addf %130, %129 : vector<2x32xf32>
      %132 = arith.divf %130, %131 : vector<2x32xf32>
      %133 = arith.mulf %124, %103 : vector<2x32xf32>
      %134 = arith.mulf %118, %126 : vector<2x32xf32>
      %135 = arith.addf %133, %134 : vector<2x32xf32>
      %136 = math.tanh %135 : vector<2x32xf32>
      %137 = arith.mulf %132, %136 : vector<2x32xf32>
      %c0_49 = arith.constant 0 : index
      %c4_50 = arith.constant 4 : index
      %c0_51 = arith.constant 0 : index
      %c0_52 = arith.constant 0 : index
      %138 = vector.load %arg4[%c0_49, %c4_50, %c0_51, %c0_52] : memref<1x8x2x32xf32, #tpu.memory_space<vmem>>, vector<1x1x2x32xf32>
      %139 = vector.shape_cast %138 : vector<1x1x2x32xf32> to vector<2x32xf32>
      %140 = vector.shape_cast %137 : vector<2x32xf32> to vector<1x1x2x32xf32>
      tpu.vector_store %arg4[%c0_49, %c4_50, %c0_51, %c0_52], %140 {strides = array<i32>} : memref<1x8x2x32xf32, #tpu.memory_space<vmem>>, vector<1x1x2x32xf32>,
      %c0_53 = arith.constant 0 : index
      %c3 = arith.constant 3 : index
      %c0_54 = arith.constant 0 : index
      %c0_55 = arith.constant 0 : index
      %141 = vector.load %arg2[%c0_53, %c3, %c0_54, %c0_55] : memref<1x8x2x128xf32, #tpu.memory_space<vmem>>, vector<1x1x2x128xf32>
      %142 = vector.shape_cast %141 : vector<1x1x2x128xf32> to vector<2x128xf32>
      %cst_56 = arith.constant dense<0.000000e+00> : vector<2x128xf32>
      %143 = tpu.matmul %137, %4, %cst_56 {dimension_numbers = #tpu.dot_dimension_numbers<[1], [0], [0], [1], [0, 0, 1, 1], [], []>} : vector<2x32xf32>, vector<32x128xf32>, vector<2x128xf32> -> vector<2x128xf32>
      %144 = arith.addf %142, %143 : vector<2x128xf32>
      %145 = vector.extract_strided_slice %144 {offsets = [0, 0], sizes = [2, 32], strides = [1, 1]} : vector<2x128xf32> to vector<2x32xf32>
      %146 = arith.negf %145 : vector<2x32xf32>
      %147 = math.exp %146 : vector<2x32xf32>
      %cst_57 = arith.constant 1.000000e+00 : f32
      %148 = vector.broadcast %cst_57 : f32 to vector<2x32xf32>
      %149 = arith.addf %148, %147 : vector<2x32xf32>
      %150 = arith.divf %148, %149 : vector<2x32xf32>
      %151 = vector.extract_strided_slice %144 {offsets = [0, 32], sizes = [2, 32], strides = [1, 1]} : vector<2x128xf32> to vector<2x32xf32>
      %152 = arith.negf %151 : vector<2x32xf32>
      %153 = math.exp %152 : vector<2x32xf32>
      %cst_58 = arith.constant 1.000000e+00 : f32
      %154 = vector.broadcast %cst_58 : f32 to vector<2x32xf32>
      %155 = arith.addf %154, %153 : vector<2x32xf32>
      %156 = arith.divf %154, %155 : vector<2x32xf32>
      %157 = vector.extract_strided_slice %144 {offsets = [0, 64], sizes = [2, 32], strides = [1, 1]} : vector<2x128xf32> to vector<2x32xf32>
      %158 = math.tanh %157 : vector<2x32xf32>
      %159 = vector.extract_strided_slice %144 {offsets = [0, 96], sizes = [2, 32], strides = [1, 1]} : vector<2x128xf32> to vector<2x32xf32>
      %160 = arith.negf %159 : vector<2x32xf32>
      %161 = math.exp %160 : vector<2x32xf32>
      %cst_59 = arith.constant 1.000000e+00 : f32
      %162 = vector.broadcast %cst_59 : f32 to vector<2x32xf32>
      %163 = arith.addf %162, %161 : vector<2x32xf32>
      %164 = arith.divf %162, %163 : vector<2x32xf32>
      %165 = arith.mulf %156, %135 : vector<2x32xf32>
      %166 = arith.mulf %150, %158 : vector<2x32xf32>
      %167 = arith.addf %165, %166 : vector<2x32xf32>
      %168 = math.tanh %167 : vector<2x32xf32>
      %169 = arith.mulf %164, %168 : vector<2x32xf32>
      %c0_60 = arith.constant 0 : index
      %c3_61 = arith.constant 3 : index
      %c0_62 = arith.constant 0 : index
      %c0_63 = arith.constant 0 : index
      %170 = vector.load %arg4[%c0_60, %c3_61, %c0_62, %c0_63] : memref<1x8x2x32xf32, #tpu.memory_space<vmem>>, vector<1x1x2x32xf32>
      %171 = vector.shape_cast %170 : vector<1x1x2x32xf32> to vector<2x32xf32>
      %172 = vector.shape_cast %169 : vector<2x32xf32> to vector<1x1x2x32xf32>
      tpu.vector_store %arg4[%c0_60, %c3_61, %c0_62, %c0_63], %172 {strides = array<i32>} : memref<1x8x2x32xf32, #tpu.memory_space<vmem>>, vector<1x1x2x32xf32>,
      %c0_64 = arith.constant 0 : index
      %c2 = arith.constant 2 : index
      %c0_65 = arith.constant 0 : index
      %c0_66 = arith.constant 0 : index
      %173 = vector.load %arg2[%c0_64, %c2, %c0_65, %c0_66] : memref<1x8x2x128xf32, #tpu.memory_space<vmem>>, vector<1x1x2x128xf32>
      %174 = vector.shape_cast %173 : vector<1x1x2x128xf32> to vector<2x128xf32>
      %cst_67 = arith.constant dense<0.000000e+00> : vector<2x128xf32>
      %175 = tpu.matmul %169, %4, %cst_67 {dimension_numbers = #tpu.dot_dimension_numbers<[1], [0], [0], [1], [0, 0, 1, 1], [], []>} : vector<2x32xf32>, vector<32x128xf32>, vector<2x128xf32> -> vector<2x128xf32>
      %176 = arith.addf %174, %175 : vector<2x128xf32>
      %177 = vector.extract_strided_slice %176 {offsets = [0, 0], sizes = [2, 32], strides = [1, 1]} : vector<2x128xf32> to vector<2x32xf32>
      %178 = arith.negf %177 : vector<2x32xf32>
      %179 = math.exp %178 : vector<2x32xf32>
      %cst_68 = arith.constant 1.000000e+00 : f32
      %180 = vector.broadcast %cst_68 : f32 to vector<2x32xf32>
      %181 = arith.addf %180, %179 : vector<2x32xf32>
      %182 = arith.divf %180, %181 : vector<2x32xf32>
      %183 = vector.extract_strided_slice %176 {offsets = [0, 32], sizes = [2, 32], strides = [1, 1]} : vector<2x128xf32> to vector<2x32xf32>
      %184 = arith.negf %183 : vector<2x32xf32>
      %185 = math.exp %184 : vector<2x32xf32>
      %cst_69 = arith.constant 1.000000e+00 : f32
      %186 = vector.broadcast %cst_69 : f32 to vector<2x32xf32>
      %187 = arith.addf %186, %185 : vector<2x32xf32>
      %188 = arith.divf %186, %187 : vector<2x32xf32>
      %189 = vector.extract_strided_slice %176 {offsets = [0, 64], sizes = [2, 32], strides = [1, 1]} : vector<2x128xf32> to vector<2x32xf32>
      %190 = math.tanh %189 : vector<2x32xf32>
      %191 = vector.extract_strided_slice %176 {offsets = [0, 96], sizes = [2, 32], strides = [1, 1]} : vector<2x128xf32> to vector<2x32xf32>
      %192 = arith.negf %191 : vector<2x32xf32>
      %193 = math.exp %192 : vector<2x32xf32>
      %cst_70 = arith.constant 1.000000e+00 : f32
      %194 = vector.broadcast %cst_70 : f32 to vector<2x32xf32>
      %195 = arith.addf %194, %193 : vector<2x32xf32>
      %196 = arith.divf %194, %195 : vector<2x32xf32>
      %197 = arith.mulf %188, %167 : vector<2x32xf32>
      %198 = arith.mulf %182, %190 : vector<2x32xf32>
      %199 = arith.addf %197, %198 : vector<2x32xf32>
      %200 = math.tanh %199 : vector<2x32xf32>
      %201 = arith.mulf %196, %200 : vector<2x32xf32>
      %c0_71 = arith.constant 0 : index
      %c2_72 = arith.constant 2 : index
      %c0_73 = arith.constant 0 : index
      %c0_74 = arith.constant 0 : index
      %202 = vector.load %arg4[%c0_71, %c2_72, %c0_73, %c0_74] : memref<1x8x2x32xf32, #tpu.memory_space<vmem>>, vector<1x1x2x32xf32>
      %203 = vector.shape_cast %202 : vector<1x1x2x32xf32> to vector<2x32xf32>
      %204 = vector.shape_cast %201 : vector<2x32xf32> to vector<1x1x2x32xf32>
      tpu.vector_store %arg4[%c0_71, %c2_72, %c0_73, %c0_74], %204 {strides = array<i32>} : memref<1x8x2x32xf32, #tpu.memory_space<vmem>>, vector<1x1x2x32xf32>,
      %c0_75 = arith.constant 0 : index
      %c1 = arith.constant 1 : index
      %c0_76 = arith.constant 0 : index
      %c0_77 = arith.constant 0 : index
      %205 = vector.load %arg2[%c0_75, %c1, %c0_76, %c0_77] : memref<1x8x2x128xf32, #tpu.memory_space<vmem>>, vector<1x1x2x128xf32>
      %206 = vector.shape_cast %205 : vector<1x1x2x128xf32> to vector<2x128xf32>
      %cst_78 = arith.constant dense<0.000000e+00> : vector<2x128xf32>
      %207 = tpu.matmul %201, %4, %cst_78 {dimension_numbers = #tpu.dot_dimension_numbers<[1], [0], [0], [1], [0, 0, 1, 1], [], []>} : vector<2x32xf32>, vector<32x128xf32>, vector<2x128xf32> -> vector<2x128xf32>
      %208 = arith.addf %206, %207 : vector<2x128xf32>
      %209 = vector.extract_strided_slice %208 {offsets = [0, 0], sizes = [2, 32], strides = [1, 1]} : vector<2x128xf32> to vector<2x32xf32>
      %210 = arith.negf %209 : vector<2x32xf32>
      %211 = math.exp %210 : vector<2x32xf32>
      %cst_79 = arith.constant 1.000000e+00 : f32
      %212 = vector.broadcast %cst_79 : f32 to vector<2x32xf32>
      %213 = arith.addf %212, %211 : vector<2x32xf32>
      %214 = arith.divf %212, %213 : vector<2x32xf32>
      %215 = vector.extract_strided_slice %208 {offsets = [0, 32], sizes = [2, 32], strides = [1, 1]} : vector<2x128xf32> to vector<2x32xf32>
      %216 = arith.negf %215 : vector<2x32xf32>
      %217 = math.exp %216 : vector<2x32xf32>
      %cst_80 = arith.constant 1.000000e+00 : f32
      %218 = vector.broadcast %cst_80 : f32 to vector<2x32xf32>
      %219 = arith.addf %218, %217 : vector<2x32xf32>
      %220 = arith.divf %218, %219 : vector<2x32xf32>
      %221 = vector.extract_strided_slice %208 {offsets = [0, 64], sizes = [2, 32], strides = [1, 1]} : vector<2x128xf32> to vector<2x32xf32>
      %222 = math.tanh %221 : vector<2x32xf32>
      %223 = vector.extract_strided_slice %208 {offsets = [0, 96], sizes = [2, 32], strides = [1, 1]} : vector<2x128xf32> to vector<2x32xf32>
      %224 = arith.negf %223 : vector<2x32xf32>
      %225 = math.exp %224 : vector<2x32xf32>
      %cst_81 = arith.constant 1.000000e+00 : f32
      %226 = vector.broadcast %cst_81 : f32 to vector<2x32xf32>
      %227 = arith.addf %226, %225 : vector<2x32xf32>
      %228 = arith.divf %226, %227 : vector<2x32xf32>
      %229 = arith.mulf %220, %199 : vector<2x32xf32>
      %230 = arith.mulf %214, %222 : vector<2x32xf32>
      %231 = arith.addf %229, %230 : vector<2x32xf32>
      %232 = math.tanh %231 : vector<2x32xf32>
      %233 = arith.mulf %228, %232 : vector<2x32xf32>
      %c0_82 = arith.constant 0 : index
      %c1_83 = arith.constant 1 : index
      %c0_84 = arith.constant 0 : index
      %c0_85 = arith.constant 0 : index
      %234 = vector.load %arg4[%c0_82, %c1_83, %c0_84, %c0_85] : memref<1x8x2x32xf32, #tpu.memory_space<vmem>>, vector<1x1x2x32xf32>
      %235 = vector.shape_cast %234 : vector<1x1x2x32xf32> to vector<2x32xf32>
      %236 = vector.shape_cast %233 : vector<2x32xf32> to vector<1x1x2x32xf32>
      tpu.vector_store %arg4[%c0_82, %c1_83, %c0_84, %c0_85], %236 {strides = array<i32>} : memref<1x8x2x32xf32, #tpu.memory_space<vmem>>, vector<1x1x2x32xf32>,
      %c0_86 = arith.constant 0 : index
      %c0_87 = arith.constant 0 : index
      %c0_88 = arith.constant 0 : index
      %c0_89 = arith.constant 0 : index
      %237 = vector.load %arg2[%c0_86, %c0_87, %c0_88, %c0_89] : memref<1x8x2x128xf32, #tpu.memory_space<vmem>>, vector<1x1x2x128xf32>
      %238 = vector.shape_cast %237 : vector<1x1x2x128xf32> to vector<2x128xf32>
      %cst_90 = arith.constant dense<0.000000e+00> : vector<2x128xf32>
      %239 = tpu.matmul %233, %4, %cst_90 {dimension_numbers = #tpu.dot_dimension_numbers<[1], [0], [0], [1], [0, 0, 1, 1], [], []>} : vector<2x32xf32>, vector<32x128xf32>, vector<2x128xf32> -> vector<2x128xf32>
      %240 = arith.addf %238, %239 : vector<2x128xf32>
      %241 = vector.extract_strided_slice %240 {offsets = [0, 0], sizes = [2, 32], strides = [1, 1]} : vector<2x128xf32> to vector<2x32xf32>
      %242 = arith.negf %241 : vector<2x32xf32>
      %243 = math.exp %242 : vector<2x32xf32>
      %cst_91 = arith.constant 1.000000e+00 : f32
      %244 = vector.broadcast %cst_91 : f32 to vector<2x32xf32>
      %245 = arith.addf %244, %243 : vector<2x32xf32>
      %246 = arith.divf %244, %245 : vector<2x32xf32>
      %247 = vector.extract_strided_slice %240 {offsets = [0, 32], sizes = [2, 32], strides = [1, 1]} : vector<2x128xf32> to vector<2x32xf32>
      %248 = arith.negf %247 : vector<2x32xf32>
      %249 = math.exp %248 : vector<2x32xf32>
      %cst_92 = arith.constant 1.000000e+00 : f32
      %250 = vector.broadcast %cst_92 : f32 to vector<2x32xf32>
      %251 = arith.addf %250, %249 : vector<2x32xf32>
      %252 = arith.divf %250, %251 : vector<2x32xf32>
      %253 = vector.extract_strided_slice %240 {offsets = [0, 64], sizes = [2, 32], strides = [1, 1]} : vector<2x128xf32> to vector<2x32xf32>
      %254 = math.tanh %253 : vector<2x32xf32>
      %255 = vector.extract_strided_slice %240 {offsets = [0, 96], sizes = [2, 32], strides = [1, 1]} : vector<2x128xf32> to vector<2x32xf32>
      %256 = arith.negf %255 : vector<2x32xf32>
      %257 = math.exp %256 : vector<2x32xf32>
      %cst_93 = arith.constant 1.000000e+00 : f32
      %258 = vector.broadcast %cst_93 : f32 to vector<2x32xf32>
      %259 = arith.addf %258, %257 : vector<2x32xf32>
      %260 = arith.divf %258, %259 : vector<2x32xf32>
      %261 = arith.mulf %252, %231 : vector<2x32xf32>
      %262 = arith.mulf %246, %254 : vector<2x32xf32>
      %263 = arith.addf %261, %262 : vector<2x32xf32>
      %264 = math.tanh %263 : vector<2x32xf32>
      %265 = arith.mulf %260, %264 : vector<2x32xf32>
      %c0_94 = arith.constant 0 : index
      %c0_95 = arith.constant 0 : index
      %c0_96 = arith.constant 0 : index
      %c0_97 = arith.constant 0 : index
      %266 = vector.load %arg4[%c0_94, %c0_95, %c0_96, %c0_97] : memref<1x8x2x32xf32, #tpu.memory_space<vmem>>, vector<1x1x2x32xf32>
      %267 = vector.shape_cast %266 : vector<1x1x2x32xf32> to vector<2x32xf32>
      %268 = vector.shape_cast %265 : vector<2x32xf32> to vector<1x1x2x32xf32>
      tpu.vector_store %arg4[%c0_94, %c0_95, %c0_96, %c0_97], %268 {strides = array<i32>} : memref<1x8x2x32xf32, #tpu.memory_space<vmem>>, vector<1x1x2x32xf32>,
      %c0_98 = arith.constant 0 : index
      %c0_99 = arith.constant 0 : index
      %269 = vector.load %arg5[%c0_98, %c0_99] : memref<2x32xf32, #tpu.memory_space<vmem>>, vector<2x32xf32>
      tpu.vector_store %arg5[%c0_98, %c0_99], %265 {strides = array<i32>} : memref<2x32xf32, #tpu.memory_space<vmem>>, vector<2x32xf32>,
      %c0_100 = arith.constant 0 : index
      %c0_101 = arith.constant 0 : index
      %270 = vector.load %arg6[%c0_100, %c0_101] : memref<2x32xf32, #tpu.memory_space<vmem>>, vector<2x32xf32>
      tpu.vector_store %arg6[%c0_100, %c0_101], %263 {strides = array<i32>} : memref<2x32xf32, #tpu.memory_space<vmem>>, vector<2x32xf32>,
    } else {
    }
    return
  }
  func.func @transform_0(%arg0: i32, %arg1: i32) -> (i32, i32, i32, i32) {
    %c2_i32 = arith.constant 2 : i32
    %0 = arith.muli %c2_i32, %arg1 : i32
    %c0_i32 = arith.constant 0 : i32
    %1 = arith.subi %c0_i32, %0 : i32
    %2 = arith.muli %arg0, %1 : i32
    %3 = arith.addi %arg1, %2 : i32
    %c0_i32_0 = arith.constant 0 : i32
    %c0_i32_1 = arith.constant 0 : i32
    %c0_i32_2 = arith.constant 0 : i32
    return %arg0, %3, %c0_i32_0, %c0_i32_1 : i32, i32, i32, i32
  }
  func.func @transform_1(%arg0: i32, %arg1: i32) -> (i32, i32, i32) {
    %c0_i32 = arith.constant 0 : i32
    %c0_i32_0 = arith.constant 0 : i32
    %c0_i32_1 = arith.constant 0 : i32
    return %arg0, %c0_i32, %c0_i32_0 : i32, i32, i32
  }
  func.func @transform_2(%arg0: i32, %arg1: i32) -> (i32, i32, i32, i32) {
    %c2_i32 = arith.constant 2 : i32
    %0 = arith.muli %c2_i32, %arg1 : i32
    %c0_i32 = arith.constant 0 : i32
    %1 = arith.subi %c0_i32, %0 : i32
    %2 = arith.muli %arg0, %1 : i32
    %3 = arith.addi %arg1, %2 : i32
    %c0_i32_0 = arith.constant 0 : i32
    %c0_i32_1 = arith.constant 0 : i32
    %c0_i32_2 = arith.constant 0 : i32
    return %arg0, %3, %c0_i32_0, %c0_i32_1 : i32, i32, i32, i32
  }
}

module attributes {stable_mosaic.version = 11 : i64} {
  func.func @_out_proj_kernel(%arg0: i32, %arg1: memref<16x64xf32, #tpu.memory_space<vmem>>, %arg2: memref<64x16xf32, #tpu.memory_space<vmem>>, %arg3: memref<1x16xf32, #tpu.memory_space<vmem>>, %arg4: memref<16x16xf32, #tpu.memory_space<vmem>>) attributes {dimension_semantics = [#tpu.dimension_semantics<parallel>], iteration_bounds = array<i64: 1>, scalar_prefetch = 0 : i64, scratch_operands = 0 : i64, tpu.core_type = #tpu.core_type<tc>, window_params = [{transform_indices = @transform_0, window_bounds = array<i64: 16, 64>}, {pipeline_mode = #tpu.pipeline_mode<synchronous>, transform_indices = @transform_1, window_bounds = array<i64: 64, 16>}, {pipeline_mode = #tpu.pipeline_mode<synchronous>, transform_indices = @transform_2, window_bounds = array<i64: 1, 16>}, {transform_indices = @transform_3, window_bounds = array<i64: 16, 16>}]} {
    %c0 = arith.constant 0 : index
    %c0_0 = arith.constant 0 : index
    %0 = vector.load %arg1[%c0, %c0_0] : memref<16x64xf32, #tpu.memory_space<vmem>>, vector<16x64xf32>
    %c0_1 = arith.constant 0 : index
    %c0_2 = arith.constant 0 : index
    %1 = vector.load %arg2[%c0_1, %c0_2] : memref<64x16xf32, #tpu.memory_space<vmem>>, vector<64x16xf32>
    %cst = arith.constant dense<0.000000e+00> : vector<16x16xf32>
    %2 = tpu.matmul %0, %1, %cst {dimension_numbers = #tpu.dot_dimension_numbers<[1], [0], [0], [1], [0, 0, 1, 1], [], []>} : vector<16x64xf32>, vector<64x16xf32>, vector<16x16xf32> -> vector<16x16xf32>
    %c0_3 = arith.constant 0 : index
    %c0_4 = arith.constant 0 : index
    %3 = vector.load %arg3[%c0_3, %c0_4] : memref<1x16xf32, #tpu.memory_space<vmem>>, vector<1x16xf32>
    %4 = vector.broadcast %3 : vector<1x16xf32> to vector<16x16xf32>
    %5 = arith.addf %2, %4 : vector<16x16xf32>
    %6 = math.tanh %5 : vector<16x16xf32>
    %cst_5 = arith.constant 5.000000e-01 : f32
    %7 = vector.broadcast %cst_5 : f32 to vector<16x16xf32>
    %8 = arith.mulf %6, %7 : vector<16x16xf32>
    %cst_6 = arith.constant 5.000000e-01 : f32
    %9 = vector.broadcast %cst_6 : f32 to vector<16x16xf32>
    %10 = arith.addf %8, %9 : vector<16x16xf32>
    %c0_7 = arith.constant 0 : index
    %c0_8 = arith.constant 0 : index
    %11 = vector.load %arg4[%c0_7, %c0_8] : memref<16x16xf32, #tpu.memory_space<vmem>>, vector<16x16xf32>
    tpu.vector_store %arg4[%c0_7, %c0_8], %10 {strides = array<i32>} : memref<16x16xf32, #tpu.memory_space<vmem>>, vector<16x16xf32>,
    return
  }
  func.func @transform_0(%arg0: i32) -> (i32, i32) {
    %c0_i32 = arith.constant 0 : i32
    %c0_i32_0 = arith.constant 0 : i32
    return %arg0, %c0_i32 : i32, i32
  }
  func.func @transform_1(%arg0: i32) -> (i32, i32) {
    %c0_i32 = arith.constant 0 : i32
    %c0_i32_0 = arith.constant 0 : i32
    %c0_i32_1 = arith.constant 0 : i32
    return %c0_i32, %c0_i32_0 : i32, i32
  }
  func.func @transform_2(%arg0: i32) -> (i32, i32) {
    %c0_i32 = arith.constant 0 : i32
    %c0_i32_0 = arith.constant 0 : i32
    %c0_i32_1 = arith.constant 0 : i32
    return %c0_i32, %c0_i32_0 : i32, i32
  }
  func.func @transform_3(%arg0: i32) -> (i32, i32) {
    %c0_i32 = arith.constant 0 : i32
    %c0_i32_0 = arith.constant 0 : i32
    return %arg0, %c0_i32 : i32, i32
  }
}

</mosaic_0001>

<llo_original>
// kernel: decoder_forward_pallas.9
$region0: #{decoder_forward_pallas.9}
  #allocation0 [shape = 'u32[]', space=smem, size = 0x4, offset = 0x4, fixed_abs, tag = 'smem constant byte address 0x4 - core index']
  #allocation1 [shape = 'u32[144,128]{1,0:T(1,128)}', space=vmem, size = 0x12000, scoped, tag = 'internal scratch']
  %s0 = inlined_call_operand.vmem [shape: f32[16,64], index: 0, kind: input, shape index: {}]
  %s1 = inlined_call_operand.vmem [shape: f32[64,16], index: 1, kind: input, shape index: {}]
  %s2 = inlined_call_operand.vmem [shape: f32[1,16], index: 2, kind: input, shape index: {}]
  %s3 = inlined_call_operand.vmem [shape: f32[16,16], index: 3, kind: output, shape index: {}]
  %s4 = sld [smem:[#allocation0]]
  $region22: #{decoder_forward_pallas.9} parent=0
    _
  %s6 = ssub.s32 1, %s4
  %s7 = scalar_select 0, %s6, %s4
  // Predicated region
  $region2: #{decoder_forward_pallas.9} parent=0 // pred_check
    _
  $region3: #{decoder_forward_pallas.9} parent=0 // pred_check_branch
    %9 = sbr.rel (0) target = $region5
  $region4: #{decoder_forward_pallas.9} parent=0 // pred_region
    _
  $region5: #{decoder_forward_pallas.9} parent=0 // pred_fallthru
    _
  // Predicated region
  $region6: #{decoder_forward_pallas.9} parent=0 // pred_check
    _
  $region7: #{decoder_forward_pallas.9} parent=0 // pred_check_branch
    %11 = sbr.rel (0) target = $region9
  $region8: #{decoder_forward_pallas.9} parent=0 // pred_region
    _
  $region9: #{decoder_forward_pallas.9} parent=0 // pred_fallthru
    _
  // Predicated region
  $region10: #{decoder_forward_pallas.9} parent=0 // pred_check
    _
  $region11: #{decoder_forward_pallas.9} parent=0 // pred_check_branch
    %13 = sbr.rel (0) target = $region13
  $region12: #{decoder_forward_pallas.9} parent=0 // pred_region
    _
  $region13: #{decoder_forward_pallas.9} parent=0 // pred_fallthru
    _
  %v14 = vld [vmem:[%s0] sm:$0xff]
  %v15 = vld [vmem:[%s0 + $0x8] sm:$0xff]
  %v16 = vld [vmem:[%s1] sm:$0xff]
  %v17 = vld [vmem:[%s1 + $0x8] sm:$0xff]
  %v18 = vld [vmem:[%s1 + $0x10] sm:$0xff]
  %v19 = vld [vmem:[%s1 + $0x18] sm:$0xff]
  %v20 = vld [vmem:[%s1 + $0x20] sm:$0xff]
  %v21 = vld [vmem:[%s1 + $0x28] sm:$0xff]
  %v22 = vld [vmem:[%s1 + $0x30] sm:$0xff]
  %v23 = vld [vmem:[%s1 + $0x38] sm:$0xff]
  %v24 = vld [vmem:[%s2] sm:$0x1]
  %v26 = vlaneseq
  %v27 = vshrl.u32 %v26, 7
  %v28 = vsub.s32 0, %v27
  %v29 = vrot.slane %v24, %v28
  %vm31 = vcmask 523264
  %v33 = vsel %vm31, %v14, 0
  %v36 = vsel %vm31, %v15, 0
  %38 = vmatprep.subr.mxu0 0.0
  %39 = vmatpush1.msra.mxu0 0.0
  %40 = vmatprep.subr.mxu0 0.0
  %41 = vmatpush1.msra.mxu0 0.0
  %42 = vmatprep.subr.mxu0 0.0
  %43 = vmatpush1.msra.mxu0 0.0
  %44 = vmatprep.subr.mxu0 0.0
  %45 = vmatpush1.msra.mxu0 0.0
  %46 = vmatprep.subr.mxu0 0.0
  %47 = vmatpush1.msra.mxu0 0.0
  %48 = vmatprep.subr.mxu0 0.0
  %49 = vmatpush1.msra.mxu0 0.0
  %50 = vmatprep.subr.mxu0 0.0
  %51 = vmatpush1.msra.mxu0 0.0
  %52 = vmatprep.subr.mxu0 0.0
  %53 = vmatpush1.msra.mxu0 0.0
  %54 = vmatprep.subr.mxu0 0.0
  %55 = vmatpush1.msra.mxu0 %v23
  %56 = vmatprep.subr.mxu0 0.0
  %57 = vmatpush1.msra.mxu0 %v22
  %58 = vmatprep.subr.mxu0 0.0
  %59 = vmatpush1.msra.mxu0 %v21
  %60 = vmatprep.subr.mxu0 0.0
  %61 = vmatpush1.msra.mxu0 %v20
  %62 = vmatprep.subr.mxu0 0.0
  %63 = vmatpush1.msra.mxu0 %v19
  %64 = vmatprep.subr.mxu0 0.0
  %65 = vmatpush1.msra.mxu0 %v18
  %66 = vmatprep.subr.mxu0 0.0
  %67 = vmatpush1.msra.mxu0 %v17
  %68 = vmatprep.subr.mxu0 0.0
  %69 = vmatpush1.msra.mxu0 %v16
  %70 = vmatprep.subr.mxu0 0.0
  %71 = vmatpush2.msra.mxu0 0.0
  %72 = vmatprep.subr.mxu0 0.0
  %73 = vmatpush2.msra.mxu0 0.0
  %74 = vmatprep.subr.mxu0 0.0
  %75 = vmatpush2.msra.mxu0 0.0
  %76 = vmatprep.subr.mxu0 0.0
  %77 = vmatpush2.msra.mxu0 0.0
  %78 = vmatprep.subr.mxu0 0.0
  %79 = vmatpush2.msra.mxu0 0.0
  %80 = vmatprep.subr.mxu0 0.0
  %81 = vmatpush2.msra.mxu0 0.0
  %82 = vmatprep.subr.mxu0 0.0
  %83 = vmatpush2.msra.mxu0 0.0
  %84 = vmatprep.subr.mxu0 0.0
  %85 = vmatpush2.msra.mxu0 0.0
  %86 = vmatprep.subr.mxu0 0.0
  %87 = vmatpush2.msra.mxu0 0.0
  %88 = vmatprep.subr.mxu0 0.0
  %89 = vmatpush2.msra.mxu0 0.0
  %90 = vmatprep.subr.mxu0 0.0
  %91 = vmatpush2.msra.mxu0 0.0
  %92 = vmatprep.subr.mxu0 0.0
  %93 = vmatpush2.msra.mxu0 0.0
  %94 = vmatprep.subr.mxu0 0.0
  %95 = vmatpush2.msra.mxu0 0.0
  %96 = vmatprep.subr.mxu0 0.0
  %97 = vmatpush2.msra.mxu0 0.0
  %98 = vmatprep.subr.mxu0 0.0
  %99 = vmatpush2.msra.mxu0 0.0
  %100 = vmatprep.subr.mxu0 0.0
  %101 = vmatpush2.msra.mxu0 0.0
  %102 = vmatprep.mubr.f32.mxu0 0.0
  %103 = vmatmul.mubr.f32.gmra.mxu0 %v33
  %v104 = vpop.f32.mrf.mxu0
  %v105 = vadd.f32 %v29, %v104
  %v106 = vpop.f32.mrf.mxu0
  %107 = vmatprep.mubr.f32.mxu0 0.0
  %108 = vmatmul.mubr.f32.gmra.mxu0 %v36
  %v109 = vpop.f32.mrf.mxu0
  %v110 = vadd.f32 %v29, %v109
  %v111 = vpop.f32.mrf.mxu0
  %112 = vdwg.mxu0
  %v113 = vtanh.pop %v105
  %v114 = vtanh.pop %v110
  %v115 = vmul.f32 %v113, 0.5
  %v116 = vmul.f32 %v114, 0.5
  %v117 = vadd.f32 %v115, 0.5
  %v118 = vadd.f32 %v116, 0.5
  %vm119 = vcmask 130048
  %120 = vst.msk [vmem:[%s3] sm:$0xff] %vm119, %v117
  %121 = vst.msk [vmem:[%s3 + $0x8] sm:$0xff] %vm119, %v118
  // Predicated region
  $region14: #{decoder_forward_pallas.9} parent=0 // pred_check
    _
  $region15: #{decoder_forward_pallas.9} parent=0 // pred_check_branch
    %123 = sbr.rel (0) target = $region17
  $region16: #{decoder_forward_pallas.9} parent=0 // pred_region
    _
  $region17: #{decoder_forward_pallas.9} parent=0 // pred_fallthru
    _
  // Predicated region
  $region18: #{decoder_forward_pallas.9} parent=0 // pred_check
    _
  $region19: #{decoder_forward_pallas.9} parent=0 // pred_check_branch
    %125 = sbr.rel (0) target = $region21
  $region20: #{decoder_forward_pallas.9} parent=0 // pred_region
    _
  $region21: #{decoder_forward_pallas.9} parent=0 // pred_fallthru
    _

// kernel: decoder_forward_pallas.7
$region0: #{decoder_forward_pallas.7}
  #allocation0 [shape = 'u32[]', space=smem, size = 0x4, offset = 0x4, fixed_abs, tag = 'smem constant byte address 0x4 - core index']
  #allocation1 [shape = 'u32[144,128]{1,0:T(1,128)}', space=vmem, size = 0x12000, scoped, tag = 'internal scratch']
  %s0 = inlined_call_operand.vmem [shape: f32[16,64], index: 0, kind: input, shape index: {}]
  %s1 = inlined_call_operand.vmem [shape: f32[2,64,128], index: 1, kind: input, shape index: {}]
  %s2 = inlined_call_operand.vmem [shape: f32[2,1,128], index: 2, kind: input, shape index: {}]
  %s3 = inlined_call_operand.vmem [shape: f32[2,16,128], index: 3, kind: output, shape index: {}]
  %s4 = sld [smem:[#allocation0]]
  $region45: #{decoder_forward_pallas.7} parent=0
    _
  %s6 = ssub.s32 1, %s4
  %s7 = scalar_select 0, %s6, %s4
  loop: start=0, step=1, limit=4
  $region2: #{decoder_forward_pallas.7} parent=0 // loop_pre_header
    _
  $region3: #{decoder_forward_pallas.7} parent=0 // loop_header
    %s9 = sphi 0, %s13
    %p10 = scmp.ge.s32.totalorder %s9, 4
    %s16 = sphi 0, %s28
    %s17 = sphi 0, %s24
    %s18 = sphi 0, %s16
    %s19 = sphi 0, %s17
    %s20 = sphi 0, %s18
    %s21 = sphi 0, %s19
    %s31 = sphi 0, %s33
    %s34 = sphi 0, %s31
    %s35 = sphi 0, %s34
    %s51 = sphi 0, %s35
    %s57 = sphi 0, %s59
    %s60 = sphi 0, %s57
    %s61 = sphi 0, %s60
    %s77 = sphi 0, %s61
    %s83 = sphi 0, %s85
    %s86 = sphi 0, %s83
    %s87 = sphi 0, %s86
    %s103 = sphi 0, %s87
    %s111 = sphi 0, %s113
    %s114 = sphi 0, %s111
    %s115 = sphi 0, %s114
    %s131 = sphi 0, %s115
  $region4: #{decoder_forward_pallas.7} parent=0 // loop_header_branch
    %12 = sbr.rel (%p10) target = $region8
  $region5: #{decoder_forward_pallas.7} parent=0 // loop_body
    %s14 = ssub.s32 %s9, 1
    %s15 = ssub.s32 %s9, 2
    %s22 = sadd.s32 1, %s17
    %p23 = scmp.ge.s32.totalorder %s22, 1
    %s24 = scalar_select %p23, 0, %s22
    %s25 = sadd.s32 1, %s16
    %s26 = scalar_select %p23, %s25, %s16
    %p27 = scmp.ge.s32.totalorder %s26, 2
    %s28 = scalar_select %p27, 0, %s26
    %s29 = ssub.s32 %s17, %s24
    %p30 = scmp.eq.s32.totalorder %s29, 0
    %s32 = sadd.s32 %s31, 1
    %s33 = scalar_select %p30, %s31, %s32
    %p36 = pneg %p30
    %p37 = scmp.eq.s32.totalorder %s9, 1
    %p38 = por %p36, %p37
    %p39 = scmp.ne.s32.totalorder %s31, %s34
    %p40 = scmp.eq.s32.totalorder %s9, 0
    %p41 = por %p39, %p40
    %p42 = scmp.ne.s32.totalorder %s31, %s34
    %p43 = scmp.eq.s32.totalorder %s14, 1
    %p44 = por %p42, %p43
    %p45 = scmp.ne.s32.totalorder %s34, %s35
    %p46 = scmp.eq.s32.totalorder %s14, 0
    %p47 = por %p45, %p46
    %p48 = scmp.ne.s32.totalorder %s34, %s35
    %p49 = scmp.eq.s32.totalorder %s15, 1
    %p50 = por %p48, %p49
    %p52 = scmp.ne.s32.totalorder %s35, %s51
    %p53 = scmp.eq.s32.totalorder %s15, 0
    %p54 = por %p52, %p53
    %s55 = ssub.s32 %s16, %s28
    %p56 = scmp.eq.s32.totalorder %s55, 0
    %s58 = sadd.s32 %s57, 1
    %s59 = scalar_select %p56, %s57, %s58
    %p62 = pneg %p56
    %p63 = scmp.eq.s32.totalorder %s9, 1
    %p64 = por %p62, %p63
    %p65 = scmp.ne.s32.totalorder %s57, %s60
    %p66 = scmp.eq.s32.totalorder %s9, 0
    %p67 = por %p65, %p66
    %p68 = scmp.ne.s32.totalorder %s57, %s60
    %p69 = scmp.eq.s32.totalorder %s14, 1
    %p70 = por %p68, %p69
    %p71 = scmp.ne.s32.totalorder %s60, %s61
    %p72 = scmp.eq.s32.totalorder %s14, 0
    %p73 = por %p71, %p72
    %p74 = scmp.ne.s32.totalorder %s60, %s61
    %p75 = scmp.eq.s32.totalorder %s15, 1
    %p76 = por %p74, %p75
    %p78 = scmp.ne.s32.totalorder %s61, %s77
    %p79 = scmp.eq.s32.totalorder %s15, 0
    %p80 = por %p78, %p79
    %s81 = ssub.s32 %s16, %s28
    %p82 = scmp.eq.s32.totalorder %s81, 0
    %s84 = sadd.s32 %s83, 1
    %s85 = scalar_select %p82, %s83, %s84
    %p88 = pneg %p82
    %p89 = scmp.eq.s32.totalorder %s9, 1
    %p90 = por %p88, %p89
    %p91 = scmp.ne.s32.totalorder %s83, %s86
    %p92 = scmp.eq.s32.totalorder %s9, 0
    %p93 = por %p91, %p92
    %p94 = scmp.ne.s32.totalorder %s83, %s86
    %p95 = scmp.eq.s32.totalorder %s14, 1
    %p96 = por %p94, %p95
    %p97 = scmp.ne.s32.totalorder %s86, %s87
    %p98 = scmp.eq.s32.totalorder %s14, 0
    %p99 = por %p97, %p98
    %p100 = scmp.ne.s32.totalorder %s86, %s87
    %p101 = scmp.eq.s32.totalorder %s15, 1
    %p102 = por %p100, %p101
    %p104 = scmp.ne.s32.totalorder %s87, %s103
    %p105 = scmp.eq.s32.totalorder %s15, 0
    %p106 = por %p104, %p105
    %s107 = ssub.s32 %s16, %s28
    %s108 = ssub.s32 %s17, %s24
    %s109 = sor.u32 %s107, %s108
    %p110 = scmp.eq.s32.totalorder %s109, 0
    %s112 = sadd.s32 %s111, 1
    %s113 = scalar_select %p110, %s111, %s112
    %p116 = pneg %p110
    %p117 = scmp.eq.s32.totalorder %s9, 1
    %p118 = por %p116, %p117
    %p119 = scmp.ne.s32.totalorder %s111, %s114
    %p120 = scmp.eq.s32.totalorder %s9, 0
    %p121 = por %p119, %p120
    %p122 = scmp.ne.s32.totalorder %s111, %s114
    %p123 = scmp.eq.s32.totalorder %s14, 1
    %p124 = por %p122, %p123
    %p125 = scmp.ne.s32.totalorder %s114, %s115
    %p126 = scmp.eq.s32.totalorder %s14, 0
    %p127 = por %p125, %p126
    %p128 = scmp.ne.s32.totalorder %s114, %s115
    %p129 = scmp.eq.s32.totalorder %s15, 1
    %p130 = por %p128, %p129
    %p132 = scmp.ne.s32.totalorder %s115, %s131
    %p133 = scmp.eq.s32.totalorder %s15, 0
    %p134 = por %p132, %p133
    %p135 = scmp.le.s32.totalorder 1, %s9
    %p136 = scmp.lt.s32.totalorder %s9, 3
    %p137 = pnand %p135, %p136
    %p138 = pneg %p137
    // Predicated region
    $region9: #{decoder_forward_pallas.7} parent=5 // pred_check
      _
    $region10: #{decoder_forward_pallas.7} parent=5 // pred_check_branch
      %140 = sbr.rel (%p137) target = $region12
    $region11: #{decoder_forward_pallas.7} parent=5 // pred_region
      %s141 = ssub.s32 %s9, 1
      // Predicated region
      $region13: #{decoder_forward_pallas.7} parent=11 // pred_check
        %p142 = pneg %p47
      $region14: #{decoder_forward_pallas.7} parent=11 // pred_check_branch
        %144 = sbr.rel (%p142) target = $region16
      $region15: #{decoder_forward_pallas.7} parent=11 // pred_region
        %s145 = smul.u32 2, %s19
        %p146 = scmp.lt.s32.totalorder %s145, 1
        %s147 = scalar_select %p146, %s145, 1
        %s148 = smul.addr %s147, 8
        %s149 = scalar_lea.vmem %s0, %s148
        %s150 = smul.u32 2, %s19
      $region16: #{decoder_forward_pallas.7} parent=11 // pred_fallthru
        _
    $region12: #{decoder_forward_pallas.7} parent=5 // pred_fallthru
      _
    %p151 = scmp.lt.s32.totalorder %s9, 2
    // Predicated region
    $region17: #{decoder_forward_pallas.7} parent=5 // pred_check
      %p152 = pneg %p151
    $region18: #{decoder_forward_pallas.7} parent=5 // pred_check_branch
      %154 = sbr.rel (%p152) target = $region20
    $region19: #{decoder_forward_pallas.7} parent=5 // pred_region
      // Predicated region
      $region21: #{decoder_forward_pallas.7} parent=19 // pred_check
        %p155 = pneg %p67
      $region22: #{decoder_forward_pallas.7} parent=19 // pred_check_branch
        %157 = sbr.rel (%p155) target = $region24
      $region23: #{decoder_forward_pallas.7} parent=19 // pred_region
        %p158 = scmp.lt.s32.totalorder %s16, 1
        %s159 = scalar_select %p158, %s16, 1
        %s160 = smul.addr %s159, 8
        %s161 = smul.addr %s160, 8
        %s162 = scalar_lea.vmem %s1, %s161
      $region24: #{decoder_forward_pallas.7} parent=19 // pred_fallthru
        _
      // Predicated region
      $region25: #{decoder_forward_pallas.7} parent=19 // pred_check
        %p163 = pneg %p93
      $region26: #{decoder_forward_pallas.7} parent=19 // pred_check_branch
        %165 = sbr.rel (%p163) target = $region28
      $region27: #{decoder_forward_pallas.7} parent=19 // pred_region
        %p166 = scmp.lt.s32.totalorder %s16, 1
        %s167 = scalar_select %p166, %s16, 1
        %s168 = scalar_lea.vmem %s2, %s167
      $region28: #{decoder_forward_pallas.7} parent=19 // pred_fallthru
        _
    $region20: #{decoder_forward_pallas.7} parent=5 // pred_fallthru
      _
    %p169 = scmp.le.s32.totalorder 1, %s9
    %p170 = scmp.lt.s32.totalorder %s9, 3
    %p171 = pnand %p169, %p170
    %p172 = pneg %p171
    // Predicated region
    $region29: #{decoder_forward_pallas.7} parent=5 // pred_check
      _
    $region30: #{decoder_forward_pallas.7} parent=5 // pred_check_branch
      %174 = sbr.rel (%p171) target = $region32
    $region31: #{decoder_forward_pallas.7} parent=5 // pred_region
      %s175 = ssub.s32 %s9, 1
      %s176 = smul.u32 2, %s19
      %p177 = scmp.lt.s32.totalorder %s176, 1
      %s178 = scalar_select %p177, %s176, 1
      %s179 = smul.addr %s178, 8
      %s180 = scalar_lea.vmem %s0, %s179
      %p181 = pneg %p47
      %p182 = pneg %p44
      %p183 = scmp.lt.s32.totalorder %s18, 1
      %s184 = scalar_select %p183, %s18, 1
      %s185 = smul.addr %s184, 8
      %s186 = smul.addr %s185, 8
      %s187 = scalar_lea.vmem %s1, %s186
      %p188 = pneg %p73
      %p189 = pneg %p70
      %p190 = scmp.lt.s32.totalorder %s18, 1
      %s191 = scalar_select %p190, %s18, 1
      %s192 = scalar_lea.vmem %s2, %s191
      %p193 = pneg %p99
      %p194 = pneg %p96
      %p195 = pneg %p127
      %p196 = pneg %p124
      %s197 = smul.u32 2, %s19
      %p198 = scmp.lt.s32.totalorder %s18, 1
      %s199 = scalar_select %p198, %s18, 1
      %p200 = scmp.lt.s32.totalorder %s197, 1
      %s201 = scalar_select %p200, %s197, 1
      %s202 = smul.addr %s199, 2
      %s203 = sadd.s32 %s201, %s202
      %s204 = smul.addr %s203, 8
      %s205 = scalar_lea.vmem %s3, %s204
      %s206 = smul.u32 2, %s19
      %p207 = scmp.lt.s32.totalorder %s206, 1
      %s208 = scalar_select %p207, %s206, 1
      %s209 = smul.addr %s208, 8
      %s210 = scalar_lea.vmem %s0, %s209
      %s211 = smul.u32 2, %s19
      %p212 = scmp.lt.s32.totalorder %s18, 1
      %s213 = scalar_select %p212, %s18, 1
      %s214 = smul.addr %s213, 8
      %s215 = smul.addr %s214, 8
      %s216 = scalar_lea.vmem %s1, %s215
      %p217 = scmp.lt.s32.totalorder %s18, 1
      %s218 = scalar_select %p217, %s18, 1
      %s219 = scalar_lea.vmem %s2, %s218
      %s220 = smul.u32 2, %s19
      %p221 = scmp.lt.s32.totalorder %s18, 1
      %s222 = scalar_select %p221, %s18, 1
      %p223 = scmp.lt.s32.totalorder %s220, 1
      %s224 = scalar_select %p223, %s220, 1
      %s225 = smul.addr %s222, 2
      %s226 = sadd.s32 %s224, %s225
      %s227 = smul.addr %s226, 8
      %s228 = scalar_lea.vmem %s3, %s227
      %s229 = smul.u32 2, %s19
      %v230 = vld [vmem:[%s210] sm:$0xff]
      %v231 = vld [vmem:[%s210 + $0x8] sm:$0xff]
      %v232 = vld [vmem:[%s216] sm:$0xff]
      %v233 = vld [vmem:[%s216 + $0x8] sm:$0xff]
      %v234 = vld [vmem:[%s216 + $0x10] sm:$0xff]
      %v235 = vld [vmem:[%s216 + $0x18] sm:$0xff]
      %v236 = vld [vmem:[%s216 + $0x20] sm:$0xff]
      %v237 = vld [vmem:[%s216 + $0x28] sm:$0xff]
      %v238 = vld [vmem:[%s216 + $0x30] sm:$0xff]
      %v239 = vld [vmem:[%s216 + $0x38] sm:$0xff]
      %v240 = vld [vmem:[%s219] sm:$0x1]
      %v242 = vlaneseq
      %v243 = vshrl.u32 %v242, 7
      %v244 = vsub.s32 0, %v243
      %v245 = vrot.slane %v240, %v244
      %vm247 = vcmask 523264
      %v249 = vsel %vm247, %v230, 0
      %v252 = vsel %vm247, %v231, 0
      %254 = vmatprep.subr.mxu0 0.0
      %255 = vmatpush1.msra.mxu0 0.0
      %256 = vmatprep.subr.mxu0 0.0
      %257 = vmatpush1.msra.mxu0 0.0
      %258 = vmatprep.subr.mxu0 0.0
      %259 = vmatpush1.msra.mxu0 0.0
      %260 = vmatprep.subr.mxu0 0.0
      %261 = vmatpush1.msra.mxu0 0.0
      %262 = vmatprep.subr.mxu0 0.0
      %263 = vmatpush1.msra.mxu0 0.0
      %264 = vmatprep.subr.mxu0 0.0
      %265 = vmatpush1.msra.mxu0 0.0
      %266 = vmatprep.subr.mxu0 0.0
      %267 = vmatpush1.msra.mxu0 0.0
      %268 = vmatprep.subr.mxu0 0.0
      %269 = vmatpush1.msra.mxu0 0.0
      %270 = vmatprep.subr.mxu0 0.0
      %271 = vmatpush1.msra.mxu0 %v239
      %272 = vmatprep.subr.mxu0 0.0
      %273 = vmatpush1.msra.mxu0 %v238
      %274 = vmatprep.subr.mxu0 0.0
      %275 = vmatpush1.msra.mxu0 %v237
      %276 = vmatprep.subr.mxu0 0.0
      %277 = vmatpush1.msra.mxu0 %v236
      %278 = vmatprep.subr.mxu0 0.0
      %279 = vmatpush1.msra.mxu0 %v235
      %280 = vmatprep.subr.mxu0 0.0
      %281 = vmatpush1.msra.mxu0 %v234
      %282 = vmatprep.subr.mxu0 0.0
      %283 = vmatpush1.msra.mxu0 %v233
      %284 = vmatprep.subr.mxu0 0.0
      %285 = vmatpush1.msra.mxu0 %v232
      %286 = vmatprep.subr.mxu0 0.0
      %287 = vmatpush2.msra.mxu0 0.0
      %288 = vmatprep.subr.mxu0 0.0
      %289 = vmatpush2.msra.mxu0 0.0
      %290 = vmatprep.subr.mxu0 0.0
      %291 = vmatpush2.msra.mxu0 0.0
      %292 = vmatprep.subr.mxu0 0.0
      %293 = vmatpush2.msra.mxu0 0.0
      %294 = vmatprep.subr.mxu0 0.0
      %295 = vmatpush2.msra.mxu0 0.0
      %296 = vmatprep.subr.mxu0 0.0
      %297 = vmatpush2.msra.mxu0 0.0
      %298 = vmatprep.subr.mxu0 0.0
      %299 = vmatpush2.msra.mxu0 0.0
      %300 = vmatprep.subr.mxu0 0.0
      %301 = vmatpush2.msra.mxu0 0.0
      %302 = vmatprep.subr.mxu0 0.0
      %303 = vmatpush2.msra.mxu0 0.0
      %304 = vmatprep.subr.mxu0 0.0
      %305 = vmatpush2.msra.mxu0 0.0
      %306 = vmatprep.subr.mxu0 0.0
      %307 = vmatpush2.msra.mxu0 0.0
      %308 = vmatprep.subr.mxu0 0.0
      %309 = vmatpush2.msra.mxu0 0.0
      %310 = vmatprep.subr.mxu0 0.0
      %311 = vmatpush2.msra.mxu0 0.0
      %312 = vmatprep.subr.mxu0 0.0
      %313 = vmatpush2.msra.mxu0 0.0
      %314 = vmatprep.subr.mxu0 0.0
      %315 = vmatpush2.msra.mxu0 0.0
      %316 = vmatprep.subr.mxu0 0.0
      %317 = vmatpush2.msra.mxu0 0.0
      %318 = vmatprep.mubr.f32.mxu0 0.0
      %319 = vmatmul.mubr.f32.gmra.mxu0 %v249
      %v320 = vpop.f32.mrf.mxu0
      %v321 = vadd.f32 %v245, %v320
      %v322 = vpop.f32.mrf.mxu0
      %323 = vmatprep.mubr.f32.mxu0 0.0
      %324 = vmatmul.mubr.f32.gmra.mxu0 %v252
      %v325 = vpop.f32.mrf.mxu0
      %v326 = vadd.f32 %v245, %v325
      %v327 = vpop.f32.mrf.mxu0
      %328 = vdwg.mxu0
      %329 = vst [vmem:[%s228] sm:$0xff] %v321
      %330 = vst [vmem:[%s228 + $0x8] sm:$0xff] %v326
      %s331 = smul.u32 2, %s19
      %p332 = scmp.lt.s32.totalorder %s18, 1
      %s333 = scalar_select %p332, %s18, 1
      %p334 = scmp.lt.s32.totalorder %s331, 1
      %s335 = scalar_select %p334, %s331, 1
      %s336 = smul.addr %s333, 2
      %s337 = sadd.s32 %s335, %s336
      %s338 = smul.addr %s337, 8
      %s339 = scalar_lea.vmem %s3, %s338
      // Predicated region
      $region33: #{decoder_forward_pallas.7} parent=31 // pred_check
        %p340 = pneg %p124
      $region34: #{decoder_forward_pallas.7} parent=31 // pred_check_branch
        %342 = sbr.rel (%p340) target = $region36
      $region35: #{decoder_forward_pallas.7} parent=31 // pred_region
        %s343 = smul.u32 2, %s19
      $region36: #{decoder_forward_pallas.7} parent=31 // pred_fallthru
        _
    $region32: #{decoder_forward_pallas.7} parent=5 // pred_fallthru
      _
    %p344 = scmp.le.s32.totalorder 2, %s9
    // Predicated region
    $region37: #{decoder_forward_pallas.7} parent=5 // pred_check
      %p345 = pneg %p344
    $region38: #{decoder_forward_pallas.7} parent=5 // pred_check_branch
      %347 = sbr.rel (%p345) target = $region40
    $region39: #{decoder_forward_pallas.7} parent=5 // pred_region
      %s348 = ssub.s32 %s9, 2
      // Predicated region
      $region41: #{decoder_forward_pallas.7} parent=39 // pred_check
        %p349 = pneg %p130
      $region42: #{decoder_forward_pallas.7} parent=39 // pred_check_branch
        %351 = sbr.rel (%p349) target = $region44
      $region43: #{decoder_forward_pallas.7} parent=39 // pred_region
        %s352 = smul.u32 2, %s21
        %p353 = scmp.lt.s32.totalorder %s20, 1
        %s354 = scalar_select %p353, %s20, 1
        %p355 = scmp.lt.s32.totalorder %s352, 1
        %s356 = scalar_select %p355, %s352, 1
        %s357 = smul.addr %s354, 2
        %s358 = sadd.s32 %s356, %s357
        %s359 = smul.addr %s358, 8
        %s360 = scalar_lea.vmem %s3, %s359
      $region44: #{decoder_forward_pallas.7} parent=39 // pred_fallthru
        _
    $region40: #{decoder_forward_pallas.7} parent=5 // pred_fallthru
      _
  $region6: #{decoder_forward_pallas.7} parent=0 // loop_footer
    %s13 = sadd.s32 1, %s9
  $region7: #{decoder_forward_pallas.7} parent=0 // loop_footer_branch
    %8 = sbr.rel target = $region3
  $region8: #{decoder_forward_pallas.7} parent=0 // loop_exit
    _

// kernel: decoder_forward_pallas.5
$region0: #{decoder_forward_pallas.5}
  #allocation0 [shape = 'u32[]', space=smem, size = 0x4, offset = 0x4, fixed_abs, tag = 'smem constant byte address 0x4 - core index']
  #allocation1 [shape = 'u32[144,128]{1,0:T(1,128)}', space=vmem, size = 0x12000, scoped, tag = 'internal scratch']
  %s0 = inlined_call_operand.vmem [shape: f32[16,8], index: 0, kind: input, shape index: {}]
  %s1 = inlined_call_operand.vmem [shape: f32[2,8,128], index: 1, kind: input, shape index: {}]
  %s2 = inlined_call_operand.vmem [shape: f32[2,1,128], index: 2, kind: input, shape index: {}]
  %s3 = inlined_call_operand.vmem [shape: f32[2,16,128], index: 3, kind: output, shape index: {}]
  %s4 = sld [smem:[#allocation0]]
  $region45: #{decoder_forward_pallas.5} parent=0
    _
  %s6 = ssub.s32 1, %s4
  %s7 = scalar_select 0, %s6, %s4
  loop: start=0, step=1, limit=4
  $region2: #{decoder_forward_pallas.5} parent=0 // loop_pre_header
    _
  $region3: #{decoder_forward_pallas.5} parent=0 // loop_header
    %s9 = sphi 0, %s13
    %p10 = scmp.ge.s32.totalorder %s9, 4
    %s16 = sphi 0, %s28
    %s17 = sphi 0, %s24
    %s18 = sphi 0, %s16
    %s19 = sphi 0, %s17
    %s20 = sphi 0, %s18
    %s21 = sphi 0, %s19
    %s31 = sphi 0, %s33
    %s34 = sphi 0, %s31
    %s35 = sphi 0, %s34
    %s51 = sphi 0, %s35
    %s57 = sphi 0, %s59
    %s60 = sphi 0, %s57
    %s61 = sphi 0, %s60
    %s77 = sphi 0, %s61
    %s83 = sphi 0, %s85
    %s86 = sphi 0, %s83
    %s87 = sphi 0, %s86
    %s103 = sphi 0, %s87
    %s111 = sphi 0, %s113
    %s114 = sphi 0, %s111
    %s115 = sphi 0, %s114
    %s131 = sphi 0, %s115
  $region4: #{decoder_forward_pallas.5} parent=0 // loop_header_branch
    %12 = sbr.rel (%p10) target = $region8
  $region5: #{decoder_forward_pallas.5} parent=0 // loop_body
    %s14 = ssub.s32 %s9, 1
    %s15 = ssub.s32 %s9, 2
    %s22 = sadd.s32 1, %s17
    %p23 = scmp.ge.s32.totalorder %s22, 1
    %s24 = scalar_select %p23, 0, %s22
    %s25 = sadd.s32 1, %s16
    %s26 = scalar_select %p23, %s25, %s16
    %p27 = scmp.ge.s32.totalorder %s26, 2
    %s28 = scalar_select %p27, 0, %s26
    %s29 = ssub.s32 %s17, %s24
    %p30 = scmp.eq.s32.totalorder %s29, 0
    %s32 = sadd.s32 %s31, 1
    %s33 = scalar_select %p30, %s31, %s32
    %p36 = pneg %p30
    %p37 = scmp.eq.s32.totalorder %s9, 1
    %p38 = por %p36, %p37
    %p39 = scmp.ne.s32.totalorder %s31, %s34
    %p40 = scmp.eq.s32.totalorder %s9, 0
    %p41 = por %p39, %p40
    %p42 = scmp.ne.s32.totalorder %s31, %s34
    %p43 = scmp.eq.s32.totalorder %s14, 1
    %p44 = por %p42, %p43
    %p45 = scmp.ne.s32.totalorder %s34, %s35
    %p46 = scmp.eq.s32.totalorder %s14, 0
    %p47 = por %p45, %p46
    %p48 = scmp.ne.s32.totalorder %s34, %s35
    %p49 = scmp.eq.s32.totalorder %s15, 1
    %p50 = por %p48, %p49
    %p52 = scmp.ne.s32.totalorder %s35, %s51
    %p53 = scmp.eq.s32.totalorder %s15, 0
    %p54 = por %p52, %p53
    %s55 = ssub.s32 %s16, %s28
    %p56 = scmp.eq.s32.totalorder %s55, 0
    %s58 = sadd.s32 %s57, 1
    %s59 = scalar_select %p56, %s57, %s58
    %p62 = pneg %p56
    %p63 = scmp.eq.s32.totalorder %s9, 1
    %p64 = por %p62, %p63
    %p65 = scmp.ne.s32.totalorder %s57, %s60
    %p66 = scmp.eq.s32.totalorder %s9, 0
    %p67 = por %p65, %p66
    %p68 = scmp.ne.s32.totalorder %s57, %s60
    %p69 = scmp.eq.s32.totalorder %s14, 1
    %p70 = por %p68, %p69
    %p71 = scmp.ne.s32.totalorder %s60, %s61
    %p72 = scmp.eq.s32.totalorder %s14, 0
    %p73 = por %p71, %p72
    %p74 = scmp.ne.s32.totalorder %s60, %s61
    %p75 = scmp.eq.s32.totalorder %s15, 1
    %p76 = por %p74, %p75
    %p78 = scmp.ne.s32.totalorder %s61, %s77
    %p79 = scmp.eq.s32.totalorder %s15, 0
    %p80 = por %p78, %p79
    %s81 = ssub.s32 %s16, %s28
    %p82 = scmp.eq.s32.totalorder %s81, 0
    %s84 = sadd.s32 %s83, 1
    %s85 = scalar_select %p82, %s83, %s84
    %p88 = pneg %p82
    %p89 = scmp.eq.s32.totalorder %s9, 1
    %p90 = por %p88, %p89
    %p91 = scmp.ne.s32.totalorder %s83, %s86
    %p92 = scmp.eq.s32.totalorder %s9, 0
    %p93 = por %p91, %p92
    %p94 = scmp.ne.s32.totalorder %s83, %s86
    %p95 = scmp.eq.s32.totalorder %s14, 1
    %p96 = por %p94, %p95
    %p97 = scmp.ne.s32.totalorder %s86, %s87
    %p98 = scmp.eq.s32.totalorder %s14, 0
    %p99 = por %p97, %p98
    %p100 = scmp.ne.s32.totalorder %s86, %s87
    %p101 = scmp.eq.s32.totalorder %s15, 1
    %p102 = por %p100, %p101
    %p104 = scmp.ne.s32.totalorder %s87, %s103
    %p105 = scmp.eq.s32.totalorder %s15, 0
    %p106 = por %p104, %p105
    %s107 = ssub.s32 %s16, %s28
    %s108 = ssub.s32 %s17, %s24
    %s109 = sor.u32 %s107, %s108
    %p110 = scmp.eq.s32.totalorder %s109, 0
    %s112 = sadd.s32 %s111, 1
    %s113 = scalar_select %p110, %s111, %s112
    %p116 = pneg %p110
    %p117 = scmp.eq.s32.totalorder %s9, 1
    %p118 = por %p116, %p117
    %p119 = scmp.ne.s32.totalorder %s111, %s114
    %p120 = scmp.eq.s32.totalorder %s9, 0
    %p121 = por %p119, %p120
    %p122 = scmp.ne.s32.totalorder %s111, %s114
    %p123 = scmp.eq.s32.totalorder %s14, 1
    %p124 = por %p122, %p123
    %p125 = scmp.ne.s32.totalorder %s114, %s115
    %p126 = scmp.eq.s32.totalorder %s14, 0
    %p127 = por %p125, %p126
    %p128 = scmp.ne.s32.totalorder %s114, %s115
    %p129 = scmp.eq.s32.totalorder %s15, 1
    %p130 = por %p128, %p129
    %p132 = scmp.ne.s32.totalorder %s115, %s131
    %p133 = scmp.eq.s32.totalorder %s15, 0
    %p134 = por %p132, %p133
    %p135 = scmp.le.s32.totalorder 1, %s9
    %p136 = scmp.lt.s32.totalorder %s9, 3
    %p137 = pnand %p135, %p136
    %p138 = pneg %p137
    // Predicated region
    $region9: #{decoder_forward_pallas.5} parent=5 // pred_check
      _
    $region10: #{decoder_forward_pallas.5} parent=5 // pred_check_branch
      %140 = sbr.rel (%p137) target = $region12
    $region11: #{decoder_forward_pallas.5} parent=5 // pred_region
      %s141 = ssub.s32 %s9, 1
      // Predicated region
      $region13: #{decoder_forward_pallas.5} parent=11 // pred_check
        %p142 = pneg %p47
      $region14: #{decoder_forward_pallas.5} parent=11 // pred_check_branch
        %144 = sbr.rel (%p142) target = $region16
      $region15: #{decoder_forward_pallas.5} parent=11 // pred_region
        %s145 = smul.u32 2, %s19
        %p146 = scmp.lt.s32.totalorder %s145, 1
        %s147 = scalar_select %p146, %s145, 1
        %s148 = smul.addr %s147, 8
        %s149 = scalar_lea.vmem %s0, %s148
        %s150 = smul.u32 2, %s19
      $region16: #{decoder_forward_pallas.5} parent=11 // pred_fallthru
        _
    $region12: #{decoder_forward_pallas.5} parent=5 // pred_fallthru
      _
    %p151 = scmp.lt.s32.totalorder %s9, 2
    // Predicated region
    $region17: #{decoder_forward_pallas.5} parent=5 // pred_check
      %p152 = pneg %p151
    $region18: #{decoder_forward_pallas.5} parent=5 // pred_check_branch
      %154 = sbr.rel (%p152) target = $region20
    $region19: #{decoder_forward_pallas.5} parent=5 // pred_region
      // Predicated region
      $region21: #{decoder_forward_pallas.5} parent=19 // pred_check
        %p155 = pneg %p67
      $region22: #{decoder_forward_pallas.5} parent=19 // pred_check_branch
        %157 = sbr.rel (%p155) target = $region24
      $region23: #{decoder_forward_pallas.5} parent=19 // pred_region
        %p158 = scmp.lt.s32.totalorder %s16, 1
        %s159 = scalar_select %p158, %s16, 1
        %s160 = smul.addr %s159, 8
        %s161 = scalar_lea.vmem %s1, %s160
      $region24: #{decoder_forward_pallas.5} parent=19 // pred_fallthru
        _
      // Predicated region
      $region25: #{decoder_forward_pallas.5} parent=19 // pred_check
        %p162 = pneg %p93
      $region26: #{decoder_forward_pallas.5} parent=19 // pred_check_branch
        %164 = sbr.rel (%p162) target = $region28
      $region27: #{decoder_forward_pallas.5} parent=19 // pred_region
        %p165 = scmp.lt.s32.totalorder %s16, 1
        %s166 = scalar_select %p165, %s16, 1
        %s167 = scalar_lea.vmem %s2, %s166
      $region28: #{decoder_forward_pallas.5} parent=19 // pred_fallthru
        _
    $region20: #{decoder_forward_pallas.5} parent=5 // pred_fallthru
      _
    %p168 = scmp.le.s32.totalorder 1, %s9
    %p169 = scmp.lt.s32.totalorder %s9, 3
    %p170 = pnand %p168, %p169
    %p171 = pneg %p170
    // Predicated region
    $region29: #{decoder_forward_pallas.5} parent=5 // pred_check
      _
    $region30: #{decoder_forward_pallas.5} parent=5 // pred_check_branch
      %173 = sbr.rel (%p170) target = $region32
    $region31: #{decoder_forward_pallas.5} parent=5 // pred_region
      %s174 = ssub.s32 %s9, 1
      %s175 = smul.u32 2, %s19
      %p176 = scmp.lt.s32.totalorder %s175, 1
      %s177 = scalar_select %p176, %s175, 1
      %s178 = smul.addr %s177, 8
      %s179 = scalar_lea.vmem %s0, %s178
      %p180 = pneg %p47
      %p181 = pneg %p44
      %p182 = scmp.lt.s32.totalorder %s18, 1
      %s183 = scalar_select %p182, %s18, 1
      %s184 = smul.addr %s183, 8
      %s185 = scalar_lea.vmem %s1, %s184
      %p186 = pneg %p73
      %p187 = pneg %p70
      %p188 = scmp.lt.s32.totalorder %s18, 1
      %s189 = scalar_select %p188, %s18, 1
      %s190 = scalar_lea.vmem %s2, %s189
      %p191 = pneg %p99
      %p192 = pneg %p96
      %p193 = pneg %p127
      %p194 = pneg %p124
      %s195 = smul.u32 2, %s19
      %p196 = scmp.lt.s32.totalorder %s18, 1
      %s197 = scalar_select %p196, %s18, 1
      %p198 = scmp.lt.s32.totalorder %s195, 1
      %s199 = scalar_select %p198, %s195, 1
      %s200 = smul.addr %s197, 2
      %s201 = sadd.s32 %s199, %s200
      %s202 = smul.addr %s201, 8
      %s203 = scalar_lea.vmem %s3, %s202
      %s204 = smul.u32 2, %s19
      %p205 = scmp.lt.s32.totalorder %s204, 1
      %s206 = scalar_select %p205, %s204, 1
      %s207 = smul.addr %s206, 8
      %s208 = scalar_lea.vmem %s0, %s207
      %s209 = smul.u32 2, %s19
      %p210 = scmp.lt.s32.totalorder %s18, 1
      %s211 = scalar_select %p210, %s18, 1
      %s212 = smul.addr %s211, 8
      %s213 = scalar_lea.vmem %s1, %s212
      %p214 = scmp.lt.s32.totalorder %s18, 1
      %s215 = scalar_select %p214, %s18, 1
      %s216 = scalar_lea.vmem %s2, %s215
      %s217 = smul.u32 2, %s19
      %p218 = scmp.lt.s32.totalorder %s18, 1
      %s219 = scalar_select %p218, %s18, 1
      %p220 = scmp.lt.s32.totalorder %s217, 1
      %s221 = scalar_select %p220, %s217, 1
      %s222 = smul.addr %s219, 2
      %s223 = sadd.s32 %s221, %s222
      %s224 = smul.addr %s223, 8
      %s225 = scalar_lea.vmem %s3, %s224
      %s226 = smul.u32 2, %s19
      %v227 = vld [vmem:[%s208] sm:$0xff]
      %v228 = vld [vmem:[%s208 + $0x8] sm:$0xff]
      %v229 = vld [vmem:[%s213] sm:$0xff]
      %v230 = vld [vmem:[%s216] sm:$0x1]
      %v232 = vlaneseq
      %v233 = vshrl.u32 %v232, 7
      %v234 = vsub.s32 0, %v233
      %v235 = vrot.slane %v230, %v234
      %vm237 = vcmask 64512
      %v239 = vsel %vm237, %v227, 0
      %v242 = vsel %vm237, %v228, 0
      %244 = vmatprep.subr.mxu0 0.0
      %245 = vmatpush1.msra.mxu0 0.0
      %246 = vmatprep.subr.mxu0 0.0
      %247 = vmatpush1.msra.mxu0 0.0
      %248 = vmatprep.subr.mxu0 0.0
      %249 = vmatpush1.msra.mxu0 0.0
      %250 = vmatprep.subr.mxu0 0.0
      %251 = vmatpush1.msra.mxu0 0.0
      %252 = vmatprep.subr.mxu0 0.0
      %253 = vmatpush1.msra.mxu0 0.0
      %254 = vmatprep.subr.mxu0 0.0
      %255 = vmatpush1.msra.mxu0 0.0
      %256 = vmatprep.subr.mxu0 0.0
      %257 = vmatpush1.msra.mxu0 0.0
      %258 = vmatprep.subr.mxu0 0.0
      %259 = vmatpush1.msra.mxu0 0.0
      %260 = vmatprep.subr.mxu0 0.0
      %261 = vmatpush1.msra.mxu0 0.0
      %262 = vmatprep.subr.mxu0 0.0
      %263 = vmatpush1.msra.mxu0 0.0
      %264 = vmatprep.subr.mxu0 0.0
      %265 = vmatpush1.msra.mxu0 0.0
      %266 = vmatprep.subr.mxu0 0.0
      %267 = vmatpush1.msra.mxu0 0.0
      %268 = vmatprep.subr.mxu0 0.0
      %269 = vmatpush1.msra.mxu0 0.0
      %270 = vmatprep.subr.mxu0 0.0
      %271 = vmatpush1.msra.mxu0 0.0
      %272 = vmatprep.subr.mxu0 0.0
      %273 = vmatpush1.msra.mxu0 0.0
      %274 = vmatprep.subr.mxu0 0.0
      %275 = vmatpush1.msra.mxu0 %v229
      %276 = vmatprep.subr.mxu0 0.0
      %277 = vmatpush2.msra.mxu0 0.0
      %278 = vmatprep.subr.mxu0 0.0
      %279 = vmatpush2.msra.mxu0 0.0
      %280 = vmatprep.subr.mxu0 0.0
      %281 = vmatpush2.msra.mxu0 0.0
      %282 = vmatprep.subr.mxu0 0.0
      %283 = vmatpush2.msra.mxu0 0.0
      %284 = vmatprep.subr.mxu0 0.0
      %285 = vmatpush2.msra.mxu0 0.0
      %286 = vmatprep.subr.mxu0 0.0
      %287 = vmatpush2.msra.mxu0 0.0
      %288 = vmatprep.subr.mxu0 0.0
      %289 = vmatpush2.msra.mxu0 0.0
      %290 = vmatprep.subr.mxu0 0.0
      %291 = vmatpush2.msra.mxu0 0.0
      %292 = vmatprep.subr.mxu0 0.0
      %293 = vmatpush2.msra.mxu0 0.0
      %294 = vmatprep.subr.mxu0 0.0
      %295 = vmatpush2.msra.mxu0 0.0
      %296 = vmatprep.subr.mxu0 0.0
      %297 = vmatpush2.msra.mxu0 0.0
      %298 = vmatprep.subr.mxu0 0.0
      %299 = vmatpush2.msra.mxu0 0.0
      %300 = vmatprep.subr.mxu0 0.0
      %301 = vmatpush2.msra.mxu0 0.0
      %302 = vmatprep.subr.mxu0 0.0
      %303 = vmatpush2.msra.mxu0 0.0
      %304 = vmatprep.subr.mxu0 0.0
      %305 = vmatpush2.msra.mxu0 0.0
      %306 = vmatprep.subr.mxu0 0.0
      %307 = vmatpush2.msra.mxu0 0.0
      %308 = vmatprep.mubr.f32.mxu0 0.0
      %309 = vmatmul.mubr.f32.gmra.mxu0 %v239
      %v310 = vpop.f32.mrf.mxu0
      %v311 = vadd.f32 %v235, %v310
      %v312 = vpop.f32.mrf.mxu0
      %313 = vmatprep.mubr.f32.mxu0 0.0
      %314 = vmatmul.mubr.f32.gmra.mxu0 %v242
      %v315 = vpop.f32.mrf.mxu0
      %v316 = vadd.f32 %v235, %v315
      %v317 = vpop.f32.mrf.mxu0
      %318 = vdwg.mxu0
      %319 = vst [vmem:[%s225] sm:$0xff] %v311
      %320 = vst [vmem:[%s225 + $0x8] sm:$0xff] %v316
      %s321 = smul.u32 2, %s19
      %p322 = scmp.lt.s32.totalorder %s18, 1
      %s323 = scalar_select %p322, %s18, 1
      %p324 = scmp.lt.s32.totalorder %s321, 1
      %s325 = scalar_select %p324, %s321, 1
      %s326 = smul.addr %s323, 2
      %s327 = sadd.s32 %s325, %s326
      %s328 = smul.addr %s327, 8
      %s329 = scalar_lea.vmem %s3, %s328
      // Predicated region
      $region33: #{decoder_forward_pallas.5} parent=31 // pred_check
        %p330 = pneg %p124
      $region34: #{decoder_forward_pallas.5} parent=31 // pred_check_branch
        %332 = sbr.rel (%p330) target = $region36
      $region35: #{decoder_forward_pallas.5} parent=31 // pred_region
        %s333 = smul.u32 2, %s19
      $region36: #{decoder_forward_pallas.5} parent=31 // pred_fallthru
        _
    $region32: #{decoder_forward_pallas.5} parent=5 // pred_fallthru
      _
    %p334 = scmp.le.s32.totalorder 2, %s9
    // Predicated region
    $region37: #{decoder_forward_pallas.5} parent=5 // pred_check
      %p335 = pneg %p334
    $region38: #{decoder_forward_pallas.5} parent=5 // pred_check_branch
      %337 = sbr.rel (%p335) target = $region40
    $region39: #{decoder_forward_pallas.5} parent=5 // pred_region
      %s338 = ssub.s32 %s9, 2
      // Predicated region
      $region41: #{decoder_forward_pallas.5} parent=39 // pred_check
        %p339 = pneg %p130
      $region42: #{decoder_forward_pallas.5} parent=39 // pred_check_branch
        %341 = sbr.rel (%p339) target = $region44
      $region43: #{decoder_forward_pallas.5} parent=39 // pred_region
        %s342 = smul.u32 2, %s21
        %p343 = scmp.lt.s32.totalorder %s20, 1
        %s344 = scalar_select %p343, %s20, 1
        %p345 = scmp.lt.s32.totalorder %s342, 1
        %s346 = scalar_select %p345, %s342, 1
        %s347 = smul.addr %s344, 2
        %s348 = sadd.s32 %s346, %s347
        %s349 = smul.addr %s348, 8
        %s350 = scalar_lea.vmem %s3, %s349
      $region44: #{decoder_forward_pallas.5} parent=39 // pred_fallthru
        _
    $region40: #{decoder_forward_pallas.5} parent=5 // pred_fallthru
      _
  $region6: #{decoder_forward_pallas.5} parent=0 // loop_footer
    %s13 = sadd.s32 1, %s9
  $region7: #{decoder_forward_pallas.5} parent=0 // loop_footer_branch
    %8 = sbr.rel target = $region3
  $region8: #{decoder_forward_pallas.5} parent=0 // loop_exit
    _

// kernel: decoder_forward_pallas.6
$region0: #{decoder_forward_pallas.6}
  #allocation0 [shape = 'u32[]', space=smem, size = 0x4, offset = 0x4, fixed_abs, tag = 'smem constant byte address 0x4 - core index']
  #allocation1 [shape = 'u32[144,128]{1,0:T(1,128)}', space=vmem, size = 0x12000, scoped, tag = 'internal scratch']
  #allocation2 [shape = 'f32[2,32]{1,0:T(2,128)}', space=vmem, size = 0x400, scoped, tag = 'scratch operand']
  #allocation3 [shape = 'f32[2,32]{1,0:T(2,128)}', space=vmem, size = 0x400, scoped, tag = 'scratch operand']
  %s0 = inlined_call_operand.vmem [shape: f32[2,8,2,128], index: 0, kind: input, shape index: {}]
  %s1 = inlined_call_operand.vmem [shape: f32[2,32,128], index: 1, kind: input, shape index: {}]
  %s2 = inlined_call_operand.vmem [shape: f32[2,8,2,32], index: 2, kind: output, shape index: {}]
  %s3 = sld [smem:[#allocation0]]
  $region53: #{decoder_forward_pallas.6} parent=0
    _
  %s5 = ssub.s32 1, %s3
  %s6 = scalar_select 0, %s5, %s3
  loop: start=0, step=1, limit=4
  $region2: #{decoder_forward_pallas.6} parent=0 // loop_pre_header
    _
  $region3: #{decoder_forward_pallas.6} parent=0 // loop_header
    %s8 = sphi 0, %s12
    %p9 = scmp.ge.s32.totalorder %s8, 4
    %s15 = sphi 0, %s27
    %s16 = sphi 0, %s23
    %s17 = sphi 0, %s15
    %s18 = sphi 0, %s16
    %s19 = sphi 0, %s17
    %s20 = sphi 0, %s18
    %s40 = sphi 0, %s42
    %s43 = sphi 0, %s40
    %s44 = sphi 0, %s43
    %s60 = sphi 0, %s44
    %s66 = sphi 0, %s68
    %s69 = sphi 0, %s66
    %s70 = sphi 0, %s69
    %s86 = sphi 0, %s70
    %s102 = sphi 0, %s104
    %s105 = sphi 0, %s102
    %s106 = sphi 0, %s105
    %s122 = sphi 0, %s106
  $region4: #{decoder_forward_pallas.6} parent=0 // loop_header_branch
    %11 = sbr.rel (%p9) target = $region8
  $region5: #{decoder_forward_pallas.6} parent=0 // loop_body
    %s13 = ssub.s32 %s8, 1
    %s14 = ssub.s32 %s8, 2
    %s21 = sadd.s32 1, %s16
    %p22 = scmp.ge.s32.totalorder %s21, 1
    %s23 = scalar_select %p22, 0, %s21
    %s24 = sadd.s32 1, %s15
    %s25 = scalar_select %p22, %s24, %s15
    %p26 = scmp.ge.s32.totalorder %s25, 2
    %s27 = scalar_select %p26, 0, %s25
    %s28 = smul.u32 %s16, 2
    %s29 = ssub.s32 0, %s28
    %s30 = smul.u32 %s15, %s29
    %s31 = sadd.s32 %s16, %s30
    %s32 = smul.u32 %s23, 2
    %s33 = ssub.s32 0, %s32
    %s34 = smul.u32 %s27, %s33
    %s35 = sadd.s32 %s23, %s34
    %s36 = ssub.s32 %s15, %s27
    %s37 = ssub.s32 %s31, %s35
    %s38 = sor.u32 %s36, %s37
    %p39 = scmp.eq.s32.totalorder %s38, 0
    %s41 = sadd.s32 %s40, 1
    %s42 = scalar_select %p39, %s40, %s41
    %p45 = pneg %p39
    %p46 = scmp.eq.s32.totalorder %s8, 1
    %p47 = por %p45, %p46
    %p48 = scmp.ne.s32.totalorder %s40, %s43
    %p49 = scmp.eq.s32.totalorder %s8, 0
    %p50 = por %p48, %p49
    %p51 = scmp.ne.s32.totalorder %s40, %s43
    %p52 = scmp.eq.s32.totalorder %s13, 1
    %p53 = por %p51, %p52
    %p54 = scmp.ne.s32.totalorder %s43, %s44
    %p55 = scmp.eq.s32.totalorder %s13, 0
    %p56 = por %p54, %p55
    %p57 = scmp.ne.s32.totalorder %s43, %s44
    %p58 = scmp.eq.s32.totalorder %s14, 1
    %p59 = por %p57, %p58
    %p61 = scmp.ne.s32.totalorder %s44, %s60
    %p62 = scmp.eq.s32.totalorder %s14, 0
    %p63 = por %p61, %p62
    %s64 = ssub.s32 %s15, %s27
    %p65 = scmp.eq.s32.totalorder %s64, 0
    %s67 = sadd.s32 %s66, 1
    %s68 = scalar_select %p65, %s66, %s67
    %p71 = pneg %p65
    %p72 = scmp.eq.s32.totalorder %s8, 1
    %p73 = por %p71, %p72
    %p74 = scmp.ne.s32.totalorder %s66, %s69
    %p75 = scmp.eq.s32.totalorder %s8, 0
    %p76 = por %p74, %p75
    %p77 = scmp.ne.s32.totalorder %s66, %s69
    %p78 = scmp.eq.s32.totalorder %s13, 1
    %p79 = por %p77, %p78
    %p80 = scmp.ne.s32.totalorder %s69, %s70
    %p81 = scmp.eq.s32.totalorder %s13, 0
    %p82 = por %p80, %p81
    %p83 = scmp.ne.s32.totalorder %s69, %s70
    %p84 = scmp.eq.s32.totalorder %s14, 1
    %p85 = por %p83, %p84
    %p87 = scmp.ne.s32.totalorder %s70, %s86
    %p88 = scmp.eq.s32.totalorder %s14, 0
    %p89 = por %p87, %p88
    %s90 = smul.u32 %s16, 2
    %s91 = ssub.s32 0, %s90
    %s92 = smul.u32 %s15, %s91
    %s93 = sadd.s32 %s16, %s92
    %s94 = smul.u32 %s23, 2
    %s95 = ssub.s32 0, %s94
    %s96 = smul.u32 %s27, %s95
    %s97 = sadd.s32 %s23, %s96
    %s98 = ssub.s32 %s15, %s27
    %s99 = ssub.s32 %s93, %s97
    %s100 = sor.u32 %s98, %s99
    %p101 = scmp.eq.s32.totalorder %s100, 0
    %s103 = sadd.s32 %s102, 1
    %s104 = scalar_select %p101, %s102, %s103
    %p107 = pneg %p101
    %p108 = scmp.eq.s32.totalorder %s8, 1
    %p109 = por %p107, %p108
    %p110 = scmp.ne.s32.totalorder %s102, %s105
    %p111 = scmp.eq.s32.totalorder %s8, 0
    %p112 = por %p110, %p111
    %p113 = scmp.ne.s32.totalorder %s102, %s105
    %p114 = scmp.eq.s32.totalorder %s13, 1
    %p115 = por %p113, %p114
    %p116 = scmp.ne.s32.totalorder %s105, %s106
    %p117 = scmp.eq.s32.totalorder %s13, 0
    %p118 = por %p116, %p117
    %p119 = scmp.ne.s32.totalorder %s105, %s106
    %p120 = scmp.eq.s32.totalorder %s14, 1
    %p121 = por %p119, %p120
    %p123 = scmp.ne.s32.totalorder %s106, %s122
    %p124 = scmp.eq.s32.totalorder %s14, 0
    %p125 = por %p123, %p124
    %p126 = scmp.le.s32.totalorder 1, %s8
    %p127 = scmp.lt.s32.totalorder %s8, 3
    %p128 = pnand %p126, %p127
    %p129 = pneg %p128
    // Predicated region
    $region9: #{decoder_forward_pallas.6} parent=5 // pred_check
      _
    $region10: #{decoder_forward_pallas.6} parent=5 // pred_check_branch
      %131 = sbr.rel (%p128) target = $region12
    $region11: #{decoder_forward_pallas.6} parent=5 // pred_region
      %s132 = ssub.s32 %s8, 1
    $region12: #{decoder_forward_pallas.6} parent=5 // pred_fallthru
      _
    %p133 = scmp.lt.s32.totalorder %s8, 2
    // Predicated region
    $region13: #{decoder_forward_pallas.6} parent=5 // pred_check
      %p134 = pneg %p133
    $region14: #{decoder_forward_pallas.6} parent=5 // pred_check_branch
      %136 = sbr.rel (%p134) target = $region16
    $region15: #{decoder_forward_pallas.6} parent=5 // pred_region
      // Predicated region
      $region17: #{decoder_forward_pallas.6} parent=15 // pred_check
        %p137 = pneg %p50
      $region18: #{decoder_forward_pallas.6} parent=15 // pred_check_branch
        %139 = sbr.rel (%p137) target = $region20
      $region19: #{decoder_forward_pallas.6} parent=15 // pred_region
        %s140 = smul.u32 %s16, 2
        %s141 = ssub.s32 0, %s140
        %s142 = smul.u32 %s15, %s141
        %s143 = sadd.s32 %s16, %s142
        %s144 = smul.u32 8, %s143
        %p145 = scmp.lt.s32.totalorder %s15, 1
        %s146 = scalar_select %p145, %s15, 1
        %p147 = scmp.lt.s32.totalorder %s144, 7
        %s148 = scalar_select %p147, %s144, 7
        %s149 = smul.addr %s146, 8
        %s150 = sadd.s32 %s148, %s149
        %s151 = smul.addr %s150, 2
        %s152 = scalar_lea.vmem %s0, %s151
        %s153 = smul.u32 %s16, 2
        %s154 = ssub.s32 0, %s153
        %s155 = smul.u32 %s15, %s154
        %s156 = sadd.s32 %s16, %s155
        %s157 = smul.u32 8, %s156
      $region20: #{decoder_forward_pallas.6} parent=15 // pred_fallthru
        _
      // Predicated region
      $region21: #{decoder_forward_pallas.6} parent=15 // pred_check
        %p158 = pneg %p76
      $region22: #{decoder_forward_pallas.6} parent=15 // pred_check_branch
        %160 = sbr.rel (%p158) target = $region24
      $region23: #{decoder_forward_pallas.6} parent=15 // pred_region
        %p161 = scmp.lt.s32.totalorder %s15, 1
        %s162 = scalar_select %p161, %s15, 1
        %s163 = smul.addr %s162, 4
        %s164 = smul.addr %s163, 8
        %s165 = scalar_lea.vmem %s1, %s164
      $region24: #{decoder_forward_pallas.6} parent=15 // pred_fallthru
        _
    $region16: #{decoder_forward_pallas.6} parent=5 // pred_fallthru
      _
    %p166 = scmp.le.s32.totalorder 1, %s8
    %p167 = scmp.lt.s32.totalorder %s8, 3
    %p168 = pnand %p166, %p167
    %p169 = pneg %p168
    // Predicated region
    $region25: #{decoder_forward_pallas.6} parent=5 // pred_check
      _
    $region26: #{decoder_forward_pallas.6} parent=5 // pred_check_branch
      %171 = sbr.rel (%p168) target = $region28
    $region27: #{decoder_forward_pallas.6} parent=5 // pred_region
      %s172 = ssub.s32 %s8, 1
      %s173 = smul.u32 %s18, 2
      %s174 = ssub.s32 0, %s173
      %s175 = smul.u32 %s17, %s174
      %s176 = sadd.s32 %s18, %s175
      %s177 = smul.u32 8, %s176
      %p178 = scmp.lt.s32.totalorder %s17, 1
      %s179 = scalar_select %p178, %s17, 1
      %p180 = scmp.lt.s32.totalorder %s177, 7
      %s181 = scalar_select %p180, %s177, 7
      %s182 = smul.addr %s179, 8
      %s183 = sadd.s32 %s181, %s182
      %s184 = smul.addr %s183, 2
      %s185 = scalar_lea.vmem %s0, %s184
      %p186 = pneg %p56
      %p187 = pneg %p53
      %p188 = scmp.lt.s32.totalorder %s17, 1
      %s189 = scalar_select %p188, %s17, 1
      %s190 = smul.addr %s189, 4
      %s191 = smul.addr %s190, 8
      %s192 = scalar_lea.vmem %s1, %s191
      %p193 = pneg %p82
      %p194 = pneg %p79
      %p195 = pneg %p118
      %p196 = pneg %p115
      %s197 = smul.u32 %s18, 2
      %s198 = ssub.s32 0, %s197
      %s199 = smul.u32 %s17, %s198
      %s200 = sadd.s32 %s18, %s199
      %s201 = smul.u32 8, %s200
      %p202 = scmp.lt.s32.totalorder %s17, 1
      %s203 = scalar_select %p202, %s17, 1
      %p204 = scmp.lt.s32.totalorder %s201, 7
      %s205 = scalar_select %p204, %s201, 7
      %s206 = smul.addr %s203, 8
      %s207 = sadd.s32 %s205, %s206
      %s208 = smul.addr %s207, 2
      %s209 = scalar_lea.vmem %s2, %s208
      %s210 = smul.u32 %s18, 2
      %s211 = ssub.s32 0, %s210
      %s212 = smul.u32 %s17, %s211
      %s213 = sadd.s32 %s18, %s212
      %s214 = smul.u32 8, %s213
      %p215 = scmp.lt.s32.totalorder %s17, 1
      %s216 = scalar_select %p215, %s17, 1
      %p217 = scmp.lt.s32.totalorder %s214, 7
      %s218 = scalar_select %p217, %s214, 7
      %s219 = smul.addr %s216, 8
      %s220 = sadd.s32 %s218, %s219
      %s221 = smul.addr %s220, 2
      %s222 = scalar_lea.vmem %s0, %s221
      %s223 = smul.u32 %s18, 2
      %s224 = ssub.s32 0, %s223
      %s225 = smul.u32 %s17, %s224
      %s226 = sadd.s32 %s18, %s225
      %s227 = smul.u32 8, %s226
      %p228 = scmp.lt.s32.totalorder %s17, 1
      %s229 = scalar_select %p228, %s17, 1
      %s230 = smul.addr %s229, 4
      %s231 = smul.addr %s230, 8
      %s232 = scalar_lea.vmem %s1, %s231
      %s233 = smul.u32 %s18, 2
      %s234 = ssub.s32 0, %s233
      %s235 = smul.u32 %s17, %s234
      %s236 = sadd.s32 %s18, %s235
      %s237 = smul.u32 8, %s236
      %p238 = scmp.lt.s32.totalorder %s17, 1
      %s239 = scalar_select %p238, %s17, 1
      %p240 = scmp.lt.s32.totalorder %s237, 7
      %s241 = scalar_select %p240, %s237, 7
      %s242 = smul.addr %s239, 8
      %s243 = sadd.s32 %s241, %s242
      %s244 = smul.addr %s243, 2
      %s245 = scalar_lea.vmem %s2, %s244
      %s246 = smul.u32 %s18, 2
      %s247 = ssub.s32 0, %s246
      %s248 = smul.u32 %s17, %s247
      %s249 = sadd.s32 %s18, %s248
      %s250 = smul.u32 8, %s249
      %p251 = scmp.eq.s32.totalorder %s18, 0
      // Predicated region
      $region29: #{decoder_forward_pallas.6} parent=27 // pred_check
        %p252 = pneg %p251
      $region30: #{decoder_forward_pallas.6} parent=27 // pred_check_branch
        %254 = sbr.rel (%p252) target = $region32
      $region31: #{decoder_forward_pallas.6} parent=27 // pred_region
        %vm255 = vcmask 254976
        %256 = vst.msk [vmem:[#allocation2] sm:$0x3] %vm255, 0.0
        %257 = vst.msk [vmem:[#allocation3] sm:$0x3] %vm255, 0.0
      $region32: #{decoder_forward_pallas.6} parent=27 // pred_fallthru
        _
      %v258 = vld [vmem:[%s232] sm:$0xff]
      %v259 = vld [vmem:[%s232 + $0x8] sm:$0xff]
      %v260 = vld [vmem:[%s232 + $0x10] sm:$0xff]
      %v261 = vld [vmem:[%s232 + $0x18] sm:$0xff]
      %p262 = scmp.eq.s32.totalorder %s17, 0
      // Predicated region
      $region33: #{decoder_forward_pallas.6} parent=27 // pred_check
        %p263 = pneg %p262
      $region34: #{decoder_forward_pallas.6} parent=27 // pred_check_branch
        %265 = sbr.rel (%p263) target = $region36
      $region35: #{decoder_forward_pallas.6} parent=27 // pred_region
        %v266 = vld [vmem:[#allocation2] sm:$0x3]
        %v267 = vld [vmem:[#allocation3] sm:$0x3]
        %v268 = vld [vmem:[%s222] sm:$0x3]
        %vm269 = vcmask 261120
        %v271 = vsel %vm269, %v266, 0
        %273 = vmatprep.subr.mxu0 0.0
        %274 = vmatpush1.msra.mxu0 0.0
        %275 = vmatprep.subr.mxu0 0.0
        %276 = vmatpush1.msra.mxu0 0.0
        %277 = vmatprep.subr.mxu0 0.0
        %278 = vmatpush1.msra.mxu0 0.0
        %279 = vmatprep.subr.mxu0 0.0
        %280 = vmatpush1.msra.mxu0 0.0
        %281 = vmatprep.subr.mxu0 0.0
        %282 = vmatpush1.msra.mxu0 0.0
        %283 = vmatprep.subr.mxu0 0.0
        %284 = vmatpush1.msra.mxu0 0.0
        %285 = vmatprep.subr.mxu0 0.0
        %286 = vmatpush1.msra.mxu0 0.0
        %287 = vmatprep.subr.mxu0 0.0
        %288 = vmatpush1.msra.mxu0 0.0
        %289 = vmatprep.subr.mxu0 0.0
        %290 = vmatpush1.msra.mxu0 0.0
        %291 = vmatprep.subr.mxu0 0.0
        %292 = vmatpush1.msra.mxu0 0.0
        %293 = vmatprep.subr.mxu0 0.0
        %294 = vmatpush1.msra.mxu0 0.0
        %295 = vmatprep.subr.mxu0 0.0
        %296 = vmatpush1.msra.mxu0 0.0
        %297 = vmatprep.subr.mxu0 0.0
        %298 = vmatpush1.msra.mxu0 %v261
        %299 = vmatprep.subr.mxu0 0.0
        %300 = vmatpush1.msra.mxu0 %v260
        %301 = vmatprep.subr.mxu0 0.0
        %302 = vmatpush1.msra.mxu0 %v259
        %303 = vmatprep.subr.mxu0 0.0
        %304 = vmatpush1.msra.mxu0 %v258
        %305 = vmatprep.subr.mxu0 0.0
        %306 = vmatpush2.msra.mxu0 0.0
        %307 = vmatprep.subr.mxu0 0.0
        %308 = vmatpush2.msra.mxu0 0.0
        %309 = vmatprep.subr.mxu0 0.0
        %310 = vmatpush2.msra.mxu0 0.0
        %311 = vmatprep.subr.mxu0 0.0
        %312 = vmatpush2.msra.mxu0 0.0
        %313 = vmatprep.subr.mxu0 0.0
        %314 = vmatpush2.msra.mxu0 0.0
        %315 = vmatprep.subr.mxu0 0.0
        %316 = vmatpush2.msra.mxu0 0.0
        %317 = vmatprep.subr.mxu0 0.0
        %318 = vmatpush2.msra.mxu0 0.0
        %319 = vmatprep.subr.mxu0 0.0
        %320 = vmatpush2.msra.mxu0 0.0
        %321 = vmatprep.subr.mxu0 0.0
        %322 = vmatpush2.msra.mxu0 0.0
        %323 = vmatprep.subr.mxu0 0.0
        %324 = vmatpush2.msra.mxu0 0.0
        %325 = vmatprep.subr.mxu0 0.0
        %326 = vmatpush2.msra.mxu0 0.0
        %327 = vmatprep.subr.mxu0 0.0
        %328 = vmatpush2.msra.mxu0 0.0
        %329 = vmatprep.subr.mxu0 0.0
        %330 = vmatpush2.msra.mxu0 0.0
        %331 = vmatprep.subr.mxu0 0.0
        %332 = vmatpush2.msra.mxu0 0.0
        %333 = vmatprep.subr.mxu0 0.0
        %334 = vmatpush2.msra.mxu0 0.0
        %335 = vmatprep.subr.mxu0 0.0
        %336 = vmatpush2.msra.mxu0 0.0
        %337 = vmatprep.mubr.f32.mxu0 0.0
        %338 = vmatmul.mubr.f32.gmra.mxu0 %v271
        %v339 = vpop.f32.mrf.mxu0
        %v340 = vadd.f32 0.0, %v339
        %v341 = vpop.f32.mrf.mxu0
        %342 = vdwg.mxu0
        %v343 = vadd.f32 %v268, %v340
        %v344 = vxor.u32 %v343, 2147483648
        %v345 = vmul.f32 %v344, 1.442695
        %v346 = vpow.pop %v345
        %v347 = vadd.f32 %v346, 1.0
        %v348 = vrcp.pop %v347
        %v349 = vmul.f32 1.0, %v348
        %v350 = vtanh.pop %v343
        %352 = vrot.lane.b32.xlu0 %v267, 32
        %v353 = vpop.permute.xlu0 %352
        %v355 = vmul.f32 %v349, %v353
        %357 = vrot.lane.b32.xlu0 %v350, 64
        %v358 = vpop.permute.xlu0 %357
        %v360 = vmul.f32 %v349, %v358
        %362 = vrot.lane.b32.xlu0 %v360, 32
        %v363 = vpop.permute.xlu0 %362
        %v365 = vadd.f32 %v355, %v363
        %v366 = vtanh.pop %v365
        %368 = vrot.lane.b32.xlu0 %v366, 64
        %v369 = vpop.permute.xlu0 %368
        %v371 = vmul.f32 %v349, %v369
        %373 = vrot.lane.b32.xlu0 %v371, 32
        %v374 = vpop.permute.xlu0 %373
        %vm376 = vcmask 254976
        %377 = vst.msk [vmem:[%s245] sm:$0x3] %vm376, %v374
        %s378 = scalar_lea.vmem %s222, 2
        %v379 = vld [vmem:[%s378] sm:$0x3]
        %v380 = vsel %vm269, %v374, 0
        %382 = vmatprep.subr.mxu0 0.0
        %383 = vmatpush1.msra.mxu0 0.0
        %384 = vmatprep.subr.mxu0 0.0
        %385 = vmatpush1.msra.mxu0 0.0
        %386 = vmatprep.subr.mxu0 0.0
        %387 = vmatpush1.msra.mxu0 0.0
        %388 = vmatprep.subr.mxu0 0.0
        %389 = vmatpush1.msra.mxu0 0.0
        %390 = vmatprep.subr.mxu0 0.0
        %391 = vmatpush1.msra.mxu0 0.0
        %392 = vmatprep.subr.mxu0 0.0
        %393 = vmatpush1.msra.mxu0 0.0
        %394 = vmatprep.subr.mxu0 0.0
        %395 = vmatpush1.msra.mxu0 0.0
        %396 = vmatprep.subr.mxu0 0.0
        %397 = vmatpush1.msra.mxu0 0.0
        %398 = vmatprep.subr.mxu0 0.0
        %399 = vmatpush1.msra.mxu0 0.0
        %400 = vmatprep.subr.mxu0 0.0
        %401 = vmatpush1.msra.mxu0 0.0
        %402 = vmatprep.subr.mxu0 0.0
        %403 = vmatpush1.msra.mxu0 0.0
        %404 = vmatprep.subr.mxu0 0.0
        %405 = vmatpush1.msra.mxu0 0.0
        %406 = vmatprep.subr.mxu0 0.0
        %407 = vmatpush1.msra.mxu0 %v261
        %408 = vmatprep.subr.mxu0 0.0
        %409 = vmatpush1.msra.mxu0 %v260
        %410 = vmatprep.subr.mxu0 0.0
        %411 = vmatpush1.msra.mxu0 %v259
        %412 = vmatprep.subr.mxu0 0.0
        %413 = vmatpush1.msra.mxu0 %v258
        %414 = vmatprep.subr.mxu0 0.0
        %415 = vmatpush2.msra.mxu0 0.0
        %416 = vmatprep.subr.mxu0 0.0
        %417 = vmatpush2.msra.mxu0 0.0
        %418 = vmatprep.subr.mxu0 0.0
        %419 = vmatpush2.msra.mxu0 0.0
        %420 = vmatprep.subr.mxu0 0.0
        %421 = vmatpush2.msra.mxu0 0.0
        %422 = vmatprep.subr.mxu0 0.0
        %423 = vmatpush2.msra.mxu0 0.0
        %424 = vmatprep.subr.mxu0 0.0
        %425 = vmatpush2.msra.mxu0 0.0
        %426 = vmatprep.subr.mxu0 0.0
        %427 = vmatpush2.msra.mxu0 0.0
        %428 = vmatprep.subr.mxu0 0.0
        %429 = vmatpush2.msra.mxu0 0.0
        %430 = vmatprep.subr.mxu0 0.0
        %431 = vmatpush2.msra.mxu0 0.0
        %432 = vmatprep.subr.mxu0 0.0
        %433 = vmatpush2.msra.mxu0 0.0
        %434 = vmatprep.subr.mxu0 0.0
        %435 = vmatpush2.msra.mxu0 0.0
        %436 = vmatprep.subr.mxu0 0.0
        %437 = vmatpush2.msra.mxu0 0.0
        %438 = vmatprep.subr.mxu0 0.0
        %439 = vmatpush2.msra.mxu0 0.0
        %440 = vmatprep.subr.mxu0 0.0
        %441 = vmatpush2.msra.mxu0 0.0
        %442 = vmatprep.subr.mxu0 0.0
        %443 = vmatpush2.msra.mxu0 0.0
        %444 = vmatprep.subr.mxu0 0.0
        %445 = vmatpush2.msra.mxu0 0.0
        %446 = vmatprep.mubr.f32.mxu0 0.0
        %447 = vmatmul.mubr.f32.gmra.mxu0 %v380
        %v448 = vpop.f32.mrf.mxu0
        %v449 = vadd.f32 0.0, %v448
        %v450 = vpop.f32.mrf.mxu0
        %451 = vdwg.mxu0
        %v452 = vadd.f32 %v379, %v449
        %v453 = vxor.u32 %v452, 2147483648
        %v454 = vmul.f32 %v453, 1.442695
        %v455 = vpow.pop %v454
        %v456 = vadd.f32 %v455, 1.0
        %v457 = vrcp.pop %v456
        %v458 = vmul.f32 1.0, %v457
        %v459 = vtanh.pop %v452
        %v460 = vmul.f32 %v458, %v365
        %462 = vrot.lane.b32.xlu0 %v459, 64
        %v463 = vpop.permute.xlu0 %462
        %v465 = vmul.f32 %v458, %v463
        %467 = vrot.lane.b32.xlu0 %v465, 32
        %v468 = vpop.permute.xlu0 %467
        %v470 = vadd.f32 %v460, %v468
        %v471 = vtanh.pop %v470
        %473 = vrot.lane.b32.xlu0 %v471, 64
        %v474 = vpop.permute.xlu0 %473
        %v476 = vmul.f32 %v458, %v474
        %478 = vrot.lane.b32.xlu0 %v476, 32
        %v479 = vpop.permute.xlu0 %478
        %s481 = scalar_lea.vmem %s245, 2
        %482 = vst.msk [vmem:[%s481] sm:$0x3] %vm376, %v479
        %s483 = scalar_lea.vmem %s222, 4
        %v484 = vld [vmem:[%s483] sm:$0x3]
        %v485 = vsel %vm269, %v479, 0
        %487 = vmatprep.subr.mxu0 0.0
        %488 = vmatpush1.msra.mxu0 0.0
        %489 = vmatprep.subr.mxu0 0.0
        %490 = vmatpush1.msra.mxu0 0.0
        %491 = vmatprep.subr.mxu0 0.0
        %492 = vmatpush1.msra.mxu0 0.0
        %493 = vmatprep.subr.mxu0 0.0
        %494 = vmatpush1.msra.mxu0 0.0
        %495 = vmatprep.subr.mxu0 0.0
        %496 = vmatpush1.msra.mxu0 0.0
        %497 = vmatprep.subr.mxu0 0.0
        %498 = vmatpush1.msra.mxu0 0.0
        %499 = vmatprep.subr.mxu0 0.0
        %500 = vmatpush1.msra.mxu0 0.0
        %501 = vmatprep.subr.mxu0 0.0
        %502 = vmatpush1.msra.mxu0 0.0
        %503 = vmatprep.subr.mxu0 0.0
        %504 = vmatpush1.msra.mxu0 0.0
        %505 = vmatprep.subr.mxu0 0.0
        %506 = vmatpush1.msra.mxu0 0.0
        %507 = vmatprep.subr.mxu0 0.0
        %508 = vmatpush1.msra.mxu0 0.0
        %509 = vmatprep.subr.mxu0 0.0
        %510 = vmatpush1.msra.mxu0 0.0
        %511 = vmatprep.subr.mxu0 0.0
        %512 = vmatpush1.msra.mxu0 %v261
        %513 = vmatprep.subr.mxu0 0.0
        %514 = vmatpush1.msra.mxu0 %v260
        %515 = vmatprep.subr.mxu0 0.0
        %516 = vmatpush1.msra.mxu0 %v259
        %517 = vmatprep.subr.mxu0 0.0
        %518 = vmatpush1.msra.mxu0 %v258
        %519 = vmatprep.subr.mxu0 0.0
        %520 = vmatpush2.msra.mxu0 0.0
        %521 = vmatprep.subr.mxu0 0.0
        %522 = vmatpush2.msra.mxu0 0.0
        %523 = vmatprep.subr.mxu0 0.0
        %524 = vmatpush2.msra.mxu0 0.0
        %525 = vmatprep.subr.mxu0 0.0
        %526 = vmatpush2.msra.mxu0 0.0
        %527 = vmatprep.subr.mxu0 0.0
        %528 = vmatpush2.msra.mxu0 0.0
        %529 = vmatprep.subr.mxu0 0.0
        %530 = vmatpush2.msra.mxu0 0.0
        %531 = vmatprep.subr.mxu0 0.0
        %532 = vmatpush2.msra.mxu0 0.0
        %533 = vmatprep.subr.mxu0 0.0
        %534 = vmatpush2.msra.mxu0 0.0
        %535 = vmatprep.subr.mxu0 0.0
        %536 = vmatpush2.msra.mxu0 0.0
        %537 = vmatprep.subr.mxu0 0.0
        %538 = vmatpush2.msra.mxu0 0.0
        %539 = vmatprep.subr.mxu0 0.0
        %540 = vmatpush2.msra.mxu0 0.0
        %541 = vmatprep.subr.mxu0 0.0
        %542 = vmatpush2.msra.mxu0 0.0
        %543 = vmatprep.subr.mxu0 0.0
        %544 = vmatpush2.msra.mxu0 0.0
        %545 = vmatprep.subr.mxu0 0.0
        %546 = vmatpush2.msra.mxu0 0.0
        %547 = vmatprep.subr.mxu0 0.0
        %548 = vmatpush2.msra.mxu0 0.0
        %549 = vmatprep.subr.mxu0 0.0
        %550 = vmatpush2.msra.mxu0 0.0
        %551 = vmatprep.mubr.f32.mxu0 0.0
        %552 = vmatmul.mubr.f32.gmra.mxu0 %v485
        %v553 = vpop.f32.mrf.mxu0
        %v554 = vadd.f32 0.0, %v553
        %v555 = vpop.f32.mrf.mxu0
        %556 = vdwg.mxu0
        %v557 = vadd.f32 %v484, %v554
        %v558 = vxor.u32 %v557, 2147483648
        %v559 = vmul.f32 %v558, 1.442695
        %v560 = vpow.pop %v559
        %v561 = vadd.f32 %v560, 1.0
        %v562 = vrcp.pop %v561
        %v563 = vmul.f32 1.0, %v562
        %v564 = vtanh.pop %v557
        %v565 = vmul.f32 %v563, %v470
        %567 = vrot.lane.b32.xlu0 %v564, 64
        %v568 = vpop.permute.xlu0 %567
        %v570 = vmul.f32 %v563, %v568
        %572 = vrot.lane.b32.xlu0 %v570, 32
        %v573 = vpop.permute.xlu0 %572
        %v575 = vadd.f32 %v565, %v573
        %v576 = vtanh.pop %v575
        %578 = vrot.lane.b32.xlu0 %v576, 64
        %v579 = vpop.permute.xlu0 %578
        %v581 = vmul.f32 %v563, %v579
        %583 = vrot.lane.b32.xlu0 %v581, 32
        %v584 = vpop.permute.xlu0 %583
        %s586 = scalar_lea.vmem %s245, 4
        %587 = vst.msk [vmem:[%s586] sm:$0x3] %vm376, %v584
        %s588 = scalar_lea.vmem %s222, 6
        %v589 = vld [vmem:[%s588] sm:$0x3]
        %v590 = vsel %vm269, %v584, 0
        %592 = vmatprep.subr.mxu0 0.0
        %593 = vmatpush1.msra.mxu0 0.0
        %594 = vmatprep.subr.mxu0 0.0
        %595 = vmatpush1.msra.mxu0 0.0
        %596 = vmatprep.subr.mxu0 0.0
        %597 = vmatpush1.msra.mxu0 0.0
        %598 = vmatprep.subr.mxu0 0.0
        %599 = vmatpush1.msra.mxu0 0.0
        %600 = vmatprep.subr.mxu0 0.0
        %601 = vmatpush1.msra.mxu0 0.0
        %602 = vmatprep.subr.mxu0 0.0
        %603 = vmatpush1.msra.mxu0 0.0
        %604 = vmatprep.subr.mxu0 0.0
        %605 = vmatpush1.msra.mxu0 0.0
        %606 = vmatprep.subr.mxu0 0.0
        %607 = vmatpush1.msra.mxu0 0.0
        %608 = vmatprep.subr.mxu0 0.0
        %609 = vmatpush1.msra.mxu0 0.0
        %610 = vmatprep.subr.mxu0 0.0
        %611 = vmatpush1.msra.mxu0 0.0
        %612 = vmatprep.subr.mxu0 0.0
        %613 = vmatpush1.msra.mxu0 0.0
        %614 = vmatprep.subr.mxu0 0.0
        %615 = vmatpush1.msra.mxu0 0.0
        %616 = vmatprep.subr.mxu0 0.0
        %617 = vmatpush1.msra.mxu0 %v261
        %618 = vmatprep.subr.mxu0 0.0
        %619 = vmatpush1.msra.mxu0 %v260
        %620 = vmatprep.subr.mxu0 0.0
        %621 = vmatpush1.msra.mxu0 %v259
        %622 = vmatprep.subr.mxu0 0.0
        %623 = vmatpush1.msra.mxu0 %v258
        %624 = vmatprep.subr.mxu0 0.0
        %625 = vmatpush2.msra.mxu0 0.0
        %626 = vmatprep.subr.mxu0 0.0
        %627 = vmatpush2.msra.mxu0 0.0
        %628 = vmatprep.subr.mxu0 0.0
        %629 = vmatpush2.msra.mxu0 0.0
        %630 = vmatprep.subr.mxu0 0.0
        %631 = vmatpush2.msra.mxu0 0.0
        %632 = vmatprep.subr.mxu0 0.0
        %633 = vmatpush2.msra.mxu0 0.0
        %634 = vmatprep.subr.mxu0 0.0
        %635 = vmatpush2.msra.mxu0 0.0
        %636 = vmatprep.subr.mxu0 0.0
        %637 = vmatpush2.msra.mxu0 0.0
        %638 = vmatprep.subr.mxu0 0.0
        %639 = vmatpush2.msra.mxu0 0.0
        %640 = vmatprep.subr.mxu0 0.0
        %641 = vmatpush2.msra.mxu0 0.0
        %642 = vmatprep.subr.mxu0 0.0
        %643 = vmatpush2.msra.mxu0 0.0
        %644 = vmatprep.subr.mxu0 0.0
        %645 = vmatpush2.msra.mxu0 0.0
        %646 = vmatprep.subr.mxu0 0.0
        %647 = vmatpush2.msra.mxu0 0.0
        %648 = vmatprep.subr.mxu0 0.0
        %649 = vmatpush2.msra.mxu0 0.0
        %650 = vmatprep.subr.mxu0 0.0
        %651 = vmatpush2.msra.mxu0 0.0
        %652 = vmatprep.subr.mxu0 0.0
        %653 = vmatpush2.msra.mxu0 0.0
        %654 = vmatprep.subr.mxu0 0.0
        %655 = vmatpush2.msra.mxu0 0.0
        %656 = vmatprep.mubr.f32.mxu0 0.0
        %657 = vmatmul.mubr.f32.gmra.mxu0 %v590
        %v658 = vpop.f32.mrf.mxu0
        %v659 = vadd.f32 0.0, %v658
        %v660 = vpop.f32.mrf.mxu0
        %661 = vdwg.mxu0
        %v662 = vadd.f32 %v589, %v659
        %v663 = vxor.u32 %v662, 2147483648
        %v664 = vmul.f32 %v663, 1.442695
        %v665 = vpow.pop %v664
        %v666 = vadd.f32 %v665, 1.0
        %v667 = vrcp.pop %v666
        %v668 = vmul.f32 1.0, %v667
        %v669 = vtanh.pop %v662
        %v670 = vmul.f32 %v668, %v575
        %672 = vrot.lane.b32.xlu0 %v669, 64
        %v673 = vpop.permute.xlu0 %672
        %v675 = vmul.f32 %v668, %v673
        %677 = vrot.lane.b32.xlu0 %v675, 32
        %v678 = vpop.permute.xlu0 %677
        %v680 = vadd.f32 %v670, %v678
        %v681 = vtanh.pop %v680
        %683 = vrot.lane.b32.xlu0 %v681, 64
        %v684 = vpop.permute.xlu0 %683
        %v686 = vmul.f32 %v668, %v684
        %688 = vrot.lane.b32.xlu0 %v686, 32
        %v689 = vpop.permute.xlu0 %688
        %s691 = scalar_lea.vmem %s245, 6
        %692 = vst.msk [vmem:[%s691] sm:$0x3] %vm376, %v689
        %s693 = scalar_lea.vmem %s222, 8
        %v694 = vld [vmem:[%s693] sm:$0x3]
        %v695 = vsel %vm269, %v689, 0
        %697 = vmatprep.subr.mxu0 0.0
        %698 = vmatpush1.msra.mxu0 0.0
        %699 = vmatprep.subr.mxu0 0.0
        %700 = vmatpush1.msra.mxu0 0.0
        %701 = vmatprep.subr.mxu0 0.0
        %702 = vmatpush1.msra.mxu0 0.0
        %703 = vmatprep.subr.mxu0 0.0
        %704 = vmatpush1.msra.mxu0 0.0
        %705 = vmatprep.subr.mxu0 0.0
        %706 = vmatpush1.msra.mxu0 0.0
        %707 = vmatprep.subr.mxu0 0.0
        %708 = vmatpush1.msra.mxu0 0.0
        %709 = vmatprep.subr.mxu0 0.0
        %710 = vmatpush1.msra.mxu0 0.0
        %711 = vmatprep.subr.mxu0 0.0
        %712 = vmatpush1.msra.mxu0 0.0
        %713 = vmatprep.subr.mxu0 0.0
        %714 = vmatpush1.msra.mxu0 0.0
        %715 = vmatprep.subr.mxu0 0.0
        %716 = vmatpush1.msra.mxu0 0.0
        %717 = vmatprep.subr.mxu0 0.0
        %718 = vmatpush1.msra.mxu0 0.0
        %719 = vmatprep.subr.mxu0 0.0
        %720 = vmatpush1.msra.mxu0 0.0
        %721 = vmatprep.subr.mxu0 0.0
        %722 = vmatpush1.msra.mxu0 %v261
        %723 = vmatprep.subr.mxu0 0.0
        %724 = vmatpush1.msra.mxu0 %v260
        %725 = vmatprep.subr.mxu0 0.0
        %726 = vmatpush1.msra.mxu0 %v259
        %727 = vmatprep.subr.mxu0 0.0
        %728 = vmatpush1.msra.mxu0 %v258
        %729 = vmatprep.subr.mxu0 0.0
        %730 = vmatpush2.msra.mxu0 0.0
        %731 = vmatprep.subr.mxu0 0.0
        %732 = vmatpush2.msra.mxu0 0.0
        %733 = vmatprep.subr.mxu0 0.0
        %734 = vmatpush2.msra.mxu0 0.0
        %735 = vmatprep.subr.mxu0 0.0
        %736 = vmatpush2.msra.mxu0 0.0
        %737 = vmatprep.subr.mxu0 0.0
        %738 = vmatpush2.msra.mxu0 0.0
        %739 = vmatprep.subr.mxu0 0.0
        %740 = vmatpush2.msra.mxu0 0.0
        %741 = vmatprep.subr.mxu0 0.0
        %742 = vmatpush2.msra.mxu0 0.0
        %743 = vmatprep.subr.mxu0 0.0
        %744 = vmatpush2.msra.mxu0 0.0
        %745 = vmatprep.subr.mxu0 0.0
        %746 = vmatpush2.msra.mxu0 0.0
        %747 = vmatprep.subr.mxu0 0.0
        %748 = vmatpush2.msra.mxu0 0.0
        %749 = vmatprep.subr.mxu0 0.0
        %750 = vmatpush2.msra.mxu0 0.0
        %751 = vmatprep.subr.mxu0 0.0
        %752 = vmatpush2.msra.mxu0 0.0
        %753 = vmatprep.subr.mxu0 0.0
        %754 = vmatpush2.msra.mxu0 0.0
        %755 = vmatprep.subr.mxu0 0.0
        %756 = vmatpush2.msra.mxu0 0.0
        %757 = vmatprep.subr.mxu0 0.0
        %758 = vmatpush2.msra.mxu0 0.0
        %759 = vmatprep.subr.mxu0 0.0
        %760 = vmatpush2.msra.mxu0 0.0
        %761 = vmatprep.mubr.f32.mxu0 0.0
        %762 = vmatmul.mubr.f32.gmra.mxu0 %v695
        %v763 = vpop.f32.mrf.mxu0
        %v764 = vadd.f32 0.0, %v763
        %v765 = vpop.f32.mrf.mxu0
        %766 = vdwg.mxu0
        %v767 = vadd.f32 %v694, %v764
        %v768 = vxor.u32 %v767, 2147483648
        %v769 = vmul.f32 %v768, 1.442695
        %v770 = vpow.pop %v769
        %v771 = vadd.f32 %v770, 1.0
        %v772 = vrcp.pop %v771
        %v773 = vmul.f32 1.0, %v772
        %v774 = vtanh.pop %v767
        %v775 = vmul.f32 %v773, %v680
        %777 = vrot.lane.b32.xlu0 %v774, 64
        %v778 = vpop.permute.xlu0 %777
        %v780 = vmul.f32 %v773, %v778
        %782 = vrot.lane.b32.xlu0 %v780, 32
        %v783 = vpop.permute.xlu0 %782
        %v785 = vadd.f32 %v775, %v783
        %v786 = vtanh.pop %v785
        %788 = vrot.lane.b32.xlu0 %v786, 64
        %v789 = vpop.permute.xlu0 %788
        %v791 = vmul.f32 %v773, %v789
        %793 = vrot.lane.b32.xlu0 %v791, 32
        %v794 = vpop.permute.xlu0 %793
        %s796 = scalar_lea.vmem %s245, 8
        %797 = vst.msk [vmem:[%s796] sm:$0x3] %vm376, %v794
        %s798 = scalar_lea.vmem %s222, 10
        %v799 = vld [vmem:[%s798] sm:$0x3]
        %v800 = vsel %vm269, %v794, 0
        %802 = vmatprep.subr.mxu0 0.0
        %803 = vmatpush1.msra.mxu0 0.0
        %804 = vmatprep.subr.mxu0 0.0
        %805 = vmatpush1.msra.mxu0 0.0
        %806 = vmatprep.subr.mxu0 0.0
        %807 = vmatpush1.msra.mxu0 0.0
        %808 = vmatprep.subr.mxu0 0.0
        %809 = vmatpush1.msra.mxu0 0.0
        %810 = vmatprep.subr.mxu0 0.0
        %811 = vmatpush1.msra.mxu0 0.0
        %812 = vmatprep.subr.mxu0 0.0
        %813 = vmatpush1.msra.mxu0 0.0
        %814 = vmatprep.subr.mxu0 0.0
        %815 = vmatpush1.msra.mxu0 0.0
        %816 = vmatprep.subr.mxu0 0.0
        %817 = vmatpush1.msra.mxu0 0.0
        %818 = vmatprep.subr.mxu0 0.0
        %819 = vmatpush1.msra.mxu0 0.0
        %820 = vmatprep.subr.mxu0 0.0
        %821 = vmatpush1.msra.mxu0 0.0
        %822 = vmatprep.subr.mxu0 0.0
        %823 = vmatpush1.msra.mxu0 0.0
        %824 = vmatprep.subr.mxu0 0.0
        %825 = vmatpush1.msra.mxu0 0.0
        %826 = vmatprep.subr.mxu0 0.0
        %827 = vmatpush1.msra.mxu0 %v261
        %828 = vmatprep.subr.mxu0 0.0
        %829 = vmatpush1.msra.mxu0 %v260
        %830 = vmatprep.subr.mxu0 0.0
        %831 = vmatpush1.msra.mxu0 %v259
        %832 = vmatprep.subr.mxu0 0.0
        %833 = vmatpush1.msra.mxu0 %v258
        %834 = vmatprep.subr.mxu0 0.0
        %835 = vmatpush2.msra.mxu0 0.0
        %836 = vmatprep.subr.mxu0 0.0
        %837 = vmatpush2.msra.mxu0 0.0
        %838 = vmatprep.subr.mxu0 0.0
        %839 = vmatpush2.msra.mxu0 0.0
        %840 = vmatprep.subr.mxu0 0.0
        %841 = vmatpush2.msra.mxu0 0.0
        %842 = vmatprep.subr.mxu0 0.0
        %843 = vmatpush2.msra.mxu0 0.0
        %844 = vmatprep.subr.mxu0 0.0
        %845 = vmatpush2.msra.mxu0 0.0
        %846 = vmatprep.subr.mxu0 0.0
        %847 = vmatpush2.msra.mxu0 0.0
        %848 = vmatprep.subr.mxu0 0.0
        %849 = vmatpush2.msra.mxu0 0.0
        %850 = vmatprep.subr.mxu0 0.0
        %851 = vmatpush2.msra.mxu0 0.0
        %852 = vmatprep.subr.mxu0 0.0
        %853 = vmatpush2.msra.mxu0 0.0
        %854 = vmatprep.subr.mxu0 0.0
        %855 = vmatpush2.msra.mxu0 0.0
        %856 = vmatprep.subr.mxu0 0.0
        %857 = vmatpush2.msra.mxu0 0.0
        %858 = vmatprep.subr.mxu0 0.0
        %859 = vmatpush2.msra.mxu0 0.0
        %860 = vmatprep.subr.mxu0 0.0
        %861 = vmatpush2.msra.mxu0 0.0
        %862 = vmatprep.subr.mxu0 0.0
        %863 = vmatpush2.msra.mxu0 0.0
        %864 = vmatprep.subr.mxu0 0.0
        %865 = vmatpush2.msra.mxu0 0.0
        %866 = vmatprep.mubr.f32.mxu0 0.0
        %867 = vmatmul.mubr.f32.gmra.mxu0 %v800
        %v868 = vpop.f32.mrf.mxu0
        %v869 = vadd.f32 0.0, %v868
        %v870 = vpop.f32.mrf.mxu0
        %871 = vdwg.mxu0
        %v872 = vadd.f32 %v799, %v869
        %v873 = vxor.u32 %v872, 2147483648
        %v874 = vmul.f32 %v873, 1.442695
        %v875 = vpow.pop %v874
        %v876 = vadd.f32 %v875, 1.0
        %v877 = vrcp.pop %v876
        %v878 = vmul.f32 1.0, %v877
        %v879 = vtanh.pop %v872
        %v880 = vmul.f32 %v878, %v785
        %882 = vrot.lane.b32.xlu0 %v879, 64
        %v883 = vpop.permute.xlu0 %882
        %v885 = vmul.f32 %v878, %v883
        %887 = vrot.lane.b32.xlu0 %v885, 32
        %v888 = vpop.permute.xlu0 %887
        %v890 = vadd.f32 %v880, %v888
        %v891 = vtanh.pop %v890
        %893 = vrot.lane.b32.xlu0 %v891, 64
        %v894 = vpop.permute.xlu0 %893
        %v896 = vmul.f32 %v878, %v894
        %898 = vrot.lane.b32.xlu0 %v896, 32
        %v899 = vpop.permute.xlu0 %898
        %s901 = scalar_lea.vmem %s245, 10
        %902 = vst.msk [vmem:[%s901] sm:$0x3] %vm376, %v899
        %s903 = scalar_lea.vmem %s222, 12
        %v904 = vld [vmem:[%s903] sm:$0x3]
        %v905 = vsel %vm269, %v899, 0
        %907 = vmatprep.subr.mxu0 0.0
        %908 = vmatpush1.msra.mxu0 0.0
        %909 = vmatprep.subr.mxu0 0.0
        %910 = vmatpush1.msra.mxu0 0.0
        %911 = vmatprep.subr.mxu0 0.0
        %912 = vmatpush1.msra.mxu0 0.0
        %913 = vmatprep.subr.mxu0 0.0
        %914 = vmatpush1.msra.mxu0 0.0
        %915 = vmatprep.subr.mxu0 0.0
        %916 = vmatpush1.msra.mxu0 0.0
        %917 = vmatprep.subr.mxu0 0.0
        %918 = vmatpush1.msra.mxu0 0.0
        %919 = vmatprep.subr.mxu0 0.0
        %920 = vmatpush1.msra.mxu0 0.0
        %921 = vmatprep.subr.mxu0 0.0
        %922 = vmatpush1.msra.mxu0 0.0
        %923 = vmatprep.subr.mxu0 0.0
        %924 = vmatpush1.msra.mxu0 0.0
        %925 = vmatprep.subr.mxu0 0.0
        %926 = vmatpush1.msra.mxu0 0.0
        %927 = vmatprep.subr.mxu0 0.0
        %928 = vmatpush1.msra.mxu0 0.0
        %929 = vmatprep.subr.mxu0 0.0
        %930 = vmatpush1.msra.mxu0 0.0
        %931 = vmatprep.subr.mxu0 0.0
        %932 = vmatpush1.msra.mxu0 %v261
        %933 = vmatprep.subr.mxu0 0.0
        %934 = vmatpush1.msra.mxu0 %v260
        %935 = vmatprep.subr.mxu0 0.0
        %936 = vmatpush1.msra.mxu0 %v259
        %937 = vmatprep.subr.mxu0 0.0
        %938 = vmatpush1.msra.mxu0 %v258
        %939 = vmatprep.subr.mxu0 0.0
        %940 = vmatpush2.msra.mxu0 0.0
        %941 = vmatprep.subr.mxu0 0.0
        %942 = vmatpush2.msra.mxu0 0.0
        %943 = vmatprep.subr.mxu0 0.0
        %944 = vmatpush2.msra.mxu0 0.0
        %945 = vmatprep.subr.mxu0 0.0
        %946 = vmatpush2.msra.mxu0 0.0
        %947 = vmatprep.subr.mxu0 0.0
        %948 = vmatpush2.msra.mxu0 0.0
        %949 = vmatprep.subr.mxu0 0.0
        %950 = vmatpush2.msra.mxu0 0.0
        %951 = vmatprep.subr.mxu0 0.0
        %952 = vmatpush2.msra.mxu0 0.0
        %953 = vmatprep.subr.mxu0 0.0
        %954 = vmatpush2.msra.mxu0 0.0
        %955 = vmatprep.subr.mxu0 0.0
        %956 = vmatpush2.msra.mxu0 0.0
        %957 = vmatprep.subr.mxu0 0.0
        %958 = vmatpush2.msra.mxu0 0.0
        %959 = vmatprep.subr.mxu0 0.0
        %960 = vmatpush2.msra.mxu0 0.0
        %961 = vmatprep.subr.mxu0 0.0
        %962 = vmatpush2.msra.mxu0 0.0
        %963 = vmatprep.subr.mxu0 0.0
        %964 = vmatpush2.msra.mxu0 0.0
        %965 = vmatprep.subr.mxu0 0.0
        %966 = vmatpush2.msra.mxu0 0.0
        %967 = vmatprep.subr.mxu0 0.0
        %968 = vmatpush2.msra.mxu0 0.0
        %969 = vmatprep.subr.mxu0 0.0
        %970 = vmatpush2.msra.mxu0 0.0
        %971 = vmatprep.mubr.f32.mxu0 0.0
        %972 = vmatmul.mubr.f32.gmra.mxu0 %v905
        %v973 = vpop.f32.mrf.mxu0
        %v974 = vadd.f32 0.0, %v973
        %v975 = vpop.f32.mrf.mxu0
        %976 = vdwg.mxu0
        %v977 = vadd.f32 %v904, %v974
        %v978 = vxor.u32 %v977, 2147483648
        %v979 = vmul.f32 %v978, 1.442695
        %v980 = vpow.pop %v979
        %v981 = vadd.f32 %v980, 1.0
        %v982 = vrcp.pop %v981
        %v983 = vmul.f32 1.0, %v982
        %v984 = vtanh.pop %v977
        %v985 = vmul.f32 %v983, %v890
        %987 = vrot.lane.b32.xlu0 %v984, 64
        %v988 = vpop.permute.xlu0 %987
        %v990 = vmul.f32 %v983, %v988
        %992 = vrot.lane.b32.xlu0 %v990, 32
        %v993 = vpop.permute.xlu0 %992
        %v995 = vadd.f32 %v985, %v993
        %v996 = vtanh.pop %v995
        %998 = vrot.lane.b32.xlu0 %v996, 64
        %v999 = vpop.permute.xlu0 %998
        %v1001 = vmul.f32 %v983, %v999
        %1003 = vrot.lane.b32.xlu0 %v1001, 32
        %v1004 = vpop.permute.xlu0 %1003
        %s1006 = scalar_lea.vmem %s245, 12
        %1007 = vst.msk [vmem:[%s1006] sm:$0x3] %vm376, %v1004
        %s1008 = scalar_lea.vmem %s222, 14
        %v1009 = vld [vmem:[%s1008] sm:$0x3]
        %v1010 = vsel %vm269, %v1004, 0
        %1012 = vmatprep.subr.mxu0 0.0
        %1013 = vmatpush1.msra.mxu0 0.0
        %1014 = vmatprep.subr.mxu0 0.0
        %1015 = vmatpush1.msra.mxu0 0.0
        %1016 = vmatprep.subr.mxu0 0.0
        %1017 = vmatpush1.msra.mxu0 0.0
        %1018 = vmatprep.subr.mxu0 0.0
        %1019 = vmatpush1.msra.mxu0 0.0
        %1020 = vmatprep.subr.mxu0 0.0
        %1021 = vmatpush1.msra.mxu0 0.0
        %1022 = vmatprep.subr.mxu0 0.0
        %1023 = vmatpush1.msra.mxu0 0.0
        %1024 = vmatprep.subr.mxu0 0.0
        %1025 = vmatpush1.msra.mxu0 0.0
        %1026 = vmatprep.subr.mxu0 0.0
        %1027 = vmatpush1.msra.mxu0 0.0
        %1028 = vmatprep.subr.mxu0 0.0
        %1029 = vmatpush1.msra.mxu0 0.0
        %1030 = vmatprep.subr.mxu0 0.0
        %1031 = vmatpush1.msra.mxu0 0.0
        %1032 = vmatprep.subr.mxu0 0.0
        %1033 = vmatpush1.msra.mxu0 0.0
        %1034 = vmatprep.subr.mxu0 0.0
        %1035 = vmatpush1.msra.mxu0 0.0
        %1036 = vmatprep.subr.mxu0 0.0
        %1037 = vmatpush1.msra.mxu0 %v261
        %1038 = vmatprep.subr.mxu0 0.0
        %1039 = vmatpush1.msra.mxu0 %v260
        %1040 = vmatprep.subr.mxu0 0.0
        %1041 = vmatpush1.msra.mxu0 %v259
        %1042 = vmatprep.subr.mxu0 0.0
        %1043 = vmatpush1.msra.mxu0 %v258
        %1044 = vmatprep.subr.mxu0 0.0
        %1045 = vmatpush2.msra.mxu0 0.0
        %1046 = vmatprep.subr.mxu0 0.0
        %1047 = vmatpush2.msra.mxu0 0.0
        %1048 = vmatprep.subr.mxu0 0.0
        %1049 = vmatpush2.msra.mxu0 0.0
        %1050 = vmatprep.subr.mxu0 0.0
        %1051 = vmatpush2.msra.mxu0 0.0
        %1052 = vmatprep.subr.mxu0 0.0
        %1053 = vmatpush2.msra.mxu0 0.0
        %1054 = vmatprep.subr.mxu0 0.0
        %1055 = vmatpush2.msra.mxu0 0.0
        %1056 = vmatprep.subr.mxu0 0.0
        %1057 = vmatpush2.msra.mxu0 0.0
        %1058 = vmatprep.subr.mxu0 0.0
        %1059 = vmatpush2.msra.mxu0 0.0
        %1060 = vmatprep.subr.mxu0 0.0
        %1061 = vmatpush2.msra.mxu0 0.0
        %1062 = vmatprep.subr.mxu0 0.0
        %1063 = vmatpush2.msra.mxu0 0.0
        %1064 = vmatprep.subr.mxu0 0.0
        %1065 = vmatpush2.msra.mxu0 0.0
        %1066 = vmatprep.subr.mxu0 0.0
        %1067 = vmatpush2.msra.mxu0 0.0
        %1068 = vmatprep.subr.mxu0 0.0
        %1069 = vmatpush2.msra.mxu0 0.0
        %1070 = vmatprep.subr.mxu0 0.0
        %1071 = vmatpush2.msra.mxu0 0.0
        %1072 = vmatprep.subr.mxu0 0.0
        %1073 = vmatpush2.msra.mxu0 0.0
        %1074 = vmatprep.subr.mxu0 0.0
        %1075 = vmatpush2.msra.mxu0 0.0
        %1076 = vmatprep.mubr.f32.mxu0 0.0
        %1077 = vmatmul.mubr.f32.gmra.mxu0 %v1010
        %v1078 = vpop.f32.mrf.mxu0
        %v1079 = vadd.f32 0.0, %v1078
        %v1080 = vpop.f32.mrf.mxu0
        %1081 = vdwg.mxu0
        %v1082 = vadd.f32 %v1009, %v1079
        %v1083 = vxor.u32 %v1082, 2147483648
        %v1084 = vmul.f32 %v1083, 1.442695
        %v1085 = vpow.pop %v1084
        %v1086 = vadd.f32 %v1085, 1.0
        %v1087 = vrcp.pop %v1086
        %v1088 = vmul.f32 1.0, %v1087
        %v1089 = vtanh.pop %v1082
        %v1090 = vmul.f32 %v1088, %v995
        %1092 = vrot.lane.b32.xlu0 %v1089, 64
        %v1093 = vpop.permute.xlu0 %1092
        %v1095 = vmul.f32 %v1088, %v1093
        %1097 = vrot.lane.b32.xlu0 %v1095, 32
        %v1098 = vpop.permute.xlu0 %1097
        %v1100 = vadd.f32 %v1090, %v1098
        %v1101 = vtanh.pop %v1100
        %1103 = vrot.lane.b32.xlu0 %v1101, 64
        %v1104 = vpop.permute.xlu0 %1103
        %v1106 = vmul.f32 %v1088, %v1104
        %1108 = vrot.lane.b32.xlu0 %v1106, 32
        %v1109 = vpop.permute.xlu0 %1108
        %s1111 = scalar_lea.vmem %s245, 14
        %1112 = vst.msk [vmem:[%s1111] sm:$0x3] %vm376, %v1109
        %1113 = vst.msk [vmem:[#allocation2] sm:$0x3] %vm376, %v1109
        %1115 = vrot.lane.b32.xlu0 %v1100, 96
        %v1116 = vpop.permute.xlu0 %1115
        %1118 = vst.msk [vmem:[#allocation3] sm:$0x3] %vm376, %v1116
      $region36: #{decoder_forward_pallas.6} parent=27 // pred_fallthru
        _
      %p1119 = scmp.eq.s32.totalorder %s17, 1
      // Predicated region
      $region37: #{decoder_forward_pallas.6} parent=27 // pred_check
        %p1120 = pneg %p1119
      $region38: #{decoder_forward_pallas.6} parent=27 // pred_check_branch
        %1122 = sbr.rel (%p1120) target = $region40
      $region39: #{decoder_forward_pallas.6} parent=27 // pred_region
        %v1123 = vld [vmem:[#allocation2] sm:$0x3]
        %v1124 = vld [vmem:[#allocation3] sm:$0x3]
        %s1125 = scalar_lea.vmem %s222, 14
        %v1126 = vld [vmem:[%s1125] sm:$0x3]
        %vm1127 = vcmask 261120
        %v1129 = vsel %vm1127, %v1123, 0
        %1131 = vmatprep.subr.mxu0 0.0
        %1132 = vmatpush1.msra.mxu0 0.0
        %1133 = vmatprep.subr.mxu0 0.0
        %1134 = vmatpush1.msra.mxu0 0.0
        %1135 = vmatprep.subr.mxu0 0.0
        %1136 = vmatpush1.msra.mxu0 0.0
        %1137 = vmatprep.subr.mxu0 0.0
        %1138 = vmatpush1.msra.mxu0 0.0
        %1139 = vmatprep.subr.mxu0 0.0
        %1140 = vmatpush1.msra.mxu0 0.0
        %1141 = vmatprep.subr.mxu0 0.0
        %1142 = vmatpush1.msra.mxu0 0.0
        %1143 = vmatprep.subr.mxu0 0.0
        %1144 = vmatpush1.msra.mxu0 0.0
        %1145 = vmatprep.subr.mxu0 0.0
        %1146 = vmatpush1.msra.mxu0 0.0
        %1147 = vmatprep.subr.mxu0 0.0
        %1148 = vmatpush1.msra.mxu0 0.0
        %1149 = vmatprep.subr.mxu0 0.0
        %1150 = vmatpush1.msra.mxu0 0.0
        %1151 = vmatprep.subr.mxu0 0.0
        %1152 = vmatpush1.msra.mxu0 0.0
        %1153 = vmatprep.subr.mxu0 0.0
        %1154 = vmatpush1.msra.mxu0 0.0
        %1155 = vmatprep.subr.mxu0 0.0
        %1156 = vmatpush1.msra.mxu0 %v261
        %1157 = vmatprep.subr.mxu0 0.0
        %1158 = vmatpush1.msra.mxu0 %v260
        %1159 = vmatprep.subr.mxu0 0.0
        %1160 = vmatpush1.msra.mxu0 %v259
        %1161 = vmatprep.subr.mxu0 0.0
        %1162 = vmatpush1.msra.mxu0 %v258
        %1163 = vmatprep.subr.mxu0 0.0
        %1164 = vmatpush2.msra.mxu0 0.0
        %1165 = vmatprep.subr.mxu0 0.0
        %1166 = vmatpush2.msra.mxu0 0.0
        %1167 = vmatprep.subr.mxu0 0.0
        %1168 = vmatpush2.msra.mxu0 0.0
        %1169 = vmatprep.subr.mxu0 0.0
        %1170 = vmatpush2.msra.mxu0 0.0
        %1171 = vmatprep.subr.mxu0 0.0
        %1172 = vmatpush2.msra.mxu0 0.0
        %1173 = vmatprep.subr.mxu0 0.0
        %1174 = vmatpush2.msra.mxu0 0.0
        %1175 = vmatprep.subr.mxu0 0.0
        %1176 = vmatpush2.msra.mxu0 0.0
        %1177 = vmatprep.subr.mxu0 0.0
        %1178 = vmatpush2.msra.mxu0 0.0
        %1179 = vmatprep.subr.mxu0 0.0
        %1180 = vmatpush2.msra.mxu0 0.0
        %1181 = vmatprep.subr.mxu0 0.0
        %1182 = vmatpush2.msra.mxu0 0.0
        %1183 = vmatprep.subr.mxu0 0.0
        %1184 = vmatpush2.msra.mxu0 0.0
        %1185 = vmatprep.subr.mxu0 0.0
        %1186 = vmatpush2.msra.mxu0 0.0
        %1187 = vmatprep.subr.mxu0 0.0
        %1188 = vmatpush2.msra.mxu0 0.0
        %1189 = vmatprep.subr.mxu0 0.0
        %1190 = vmatpush2.msra.mxu0 0.0
        %1191 = vmatprep.subr.mxu0 0.0
        %1192 = vmatpush2.msra.mxu0 0.0
        %1193 = vmatprep.subr.mxu0 0.0
        %1194 = vmatpush2.msra.mxu0 0.0
        %1195 = vmatprep.mubr.f32.mxu0 0.0
        %1196 = vmatmul.mubr.f32.gmra.mxu0 %v1129
        %v1197 = vpop.f32.mrf.mxu0
        %v1198 = vadd.f32 0.0, %v1197
        %v1199 = vpop.f32.mrf.mxu0
        %1200 = vdwg.mxu0
        %v1201 = vadd.f32 %v1126, %v1198
        %v1202 = vxor.u32 %v1201, 2147483648
        %v1203 = vmul.f32 %v1202, 1.442695
        %v1204 = vpow.pop %v1203
        %v1205 = vadd.f32 %v1204, 1.0
        %v1206 = vrcp.pop %v1205
        %v1207 = vmul.f32 1.0, %v1206
        %v1208 = vtanh.pop %v1201
        %1210 = vrot.lane.b32.xlu0 %v1124, 32
        %v1211 = vpop.permute.xlu0 %1210
        %v1213 = vmul.f32 %v1207, %v1211
        %1215 = vrot.lane.b32.xlu0 %v1208, 64
        %v1216 = vpop.permute.xlu0 %1215
        %v1218 = vmul.f32 %v1207, %v1216
        %1220 = vrot.lane.b32.xlu0 %v1218, 32
        %v1221 = vpop.permute.xlu0 %1220
        %v1223 = vadd.f32 %v1213, %v1221
        %v1224 = vtanh.pop %v1223
        %1226 = vrot.lane.b32.xlu0 %v1224, 64
        %v1227 = vpop.permute.xlu0 %1226
        %v1229 = vmul.f32 %v1207, %v1227
        %1231 = vrot.lane.b32.xlu0 %v1229, 32
        %v1232 = vpop.permute.xlu0 %1231
        %s1234 = scalar_lea.vmem %s245, 14
        %vm1235 = vcmask 254976
        %1236 = vst.msk [vmem:[%s1234] sm:$0x3] %vm1235, %v1232
        %s1237 = scalar_lea.vmem %s222, 12
        %v1238 = vld [vmem:[%s1237] sm:$0x3]
        %v1239 = vsel %vm1127, %v1232, 0
        %1241 = vmatprep.subr.mxu0 0.0
        %1242 = vmatpush1.msra.mxu0 0.0
        %1243 = vmatprep.subr.mxu0 0.0
        %1244 = vmatpush1.msra.mxu0 0.0
        %1245 = vmatprep.subr.mxu0 0.0
        %1246 = vmatpush1.msra.mxu0 0.0
        %1247 = vmatprep.subr.mxu0 0.0
        %1248 = vmatpush1.msra.mxu0 0.0
        %1249 = vmatprep.subr.mxu0 0.0
        %1250 = vmatpush1.msra.mxu0 0.0
        %1251 = vmatprep.subr.mxu0 0.0
        %1252 = vmatpush1.msra.mxu0 0.0
        %1253 = vmatprep.subr.mxu0 0.0
        %1254 = vmatpush1.msra.mxu0 0.0
        %1255 = vmatprep.subr.mxu0 0.0
        %1256 = vmatpush1.msra.mxu0 0.0
        %1257 = vmatprep.subr.mxu0 0.0
        %1258 = vmatpush1.msra.mxu0 0.0
        %1259 = vmatprep.subr.mxu0 0.0
        %1260 = vmatpush1.msra.mxu0 0.0
        %1261 = vmatprep.subr.mxu0 0.0
        %1262 = vmatpush1.msra.mxu0 0.0
        %1263 = vmatprep.subr.mxu0 0.0
        %1264 = vmatpush1.msra.mxu0 0.0
        %1265 = vmatprep.subr.mxu0 0.0
        %1266 = vmatpush1.msra.mxu0 %v261
        %1267 = vmatprep.subr.mxu0 0.0
        %1268 = vmatpush1.msra.mxu0 %v260
        %1269 = vmatprep.subr.mxu0 0.0
        %1270 = vmatpush1.msra.mxu0 %v259
        %1271 = vmatprep.subr.mxu0 0.0
        %1272 = vmatpush1.msra.mxu0 %v258
        %1273 = vmatprep.subr.mxu0 0.0
        %1274 = vmatpush2.msra.mxu0 0.0
        %1275 = vmatprep.subr.mxu0 0.0
        %1276 = vmatpush2.msra.mxu0 0.0
        %1277 = vmatprep.subr.mxu0 0.0
        %1278 = vmatpush2.msra.mxu0 0.0
        %1279 = vmatprep.subr.mxu0 0.0
        %1280 = vmatpush2.msra.mxu0 0.0
        %1281 = vmatprep.subr.mxu0 0.0
        %1282 = vmatpush2.msra.mxu0 0.0
        %1283 = vmatprep.subr.mxu0 0.0
        %1284 = vmatpush2.msra.mxu0 0.0
        %1285 = vmatprep.subr.mxu0 0.0
        %1286 = vmatpush2.msra.mxu0 0.0
        %1287 = vmatprep.subr.mxu0 0.0
        %1288 = vmatpush2.msra.mxu0 0.0
        %1289 = vmatprep.subr.mxu0 0.0
        %1290 = vmatpush2.msra.mxu0 0.0
        %1291 = vmatprep.subr.mxu0 0.0
        %1292 = vmatpush2.msra.mxu0 0.0
        %1293 = vmatprep.subr.mxu0 0.0
        %1294 = vmatpush2.msra.mxu0 0.0
        %1295 = vmatprep.subr.mxu0 0.0
        %1296 = vmatpush2.msra.mxu0 0.0
        %1297 = vmatprep.subr.mxu0 0.0
        %1298 = vmatpush2.msra.mxu0 0.0
        %1299 = vmatprep.subr.mxu0 0.0
        %1300 = vmatpush2.msra.mxu0 0.0
        %1301 = vmatprep.subr.mxu0 0.0
        %1302 = vmatpush2.msra.mxu0 0.0
        %1303 = vmatprep.subr.mxu0 0.0
        %1304 = vmatpush2.msra.mxu0 0.0
        %1305 = vmatprep.mubr.f32.mxu0 0.0
        %1306 = vmatmul.mubr.f32.gmra.mxu0 %v1239
        %v1307 = vpop.f32.mrf.mxu0
        %v1308 = vadd.f32 0.0, %v1307
        %v1309 = vpop.f32.mrf.mxu0
        %1310 = vdwg.mxu0
        %v1311 = vadd.f32 %v1238, %v1308
        %v1312 = vxor.u32 %v1311, 2147483648
        %v1313 = vmul.f32 %v1312, 1.442695
        %v1314 = vpow.pop %v1313
        %v1315 = vadd.f32 %v1314, 1.0
        %v1316 = vrcp.pop %v1315
        %v1317 = vmul.f32 1.0, %v1316
        %v1318 = vtanh.pop %v1311
        %v1319 = vmul.f32 %v1317, %v1223
        %1321 = vrot.lane.b32.xlu0 %v1318, 64
        %v1322 = vpop.permute.xlu0 %1321
        %v1324 = vmul.f32 %v1317, %v1322
        %1326 = vrot.lane.b32.xlu0 %v1324, 32
        %v1327 = vpop.permute.xlu0 %1326
        %v1329 = vadd.f32 %v1319, %v1327
        %v1330 = vtanh.pop %v1329
        %1332 = vrot.lane.b32.xlu0 %v1330, 64
        %v1333 = vpop.permute.xlu0 %1332
        %v1335 = vmul.f32 %v1317, %v1333
        %1337 = vrot.lane.b32.xlu0 %v1335, 32
        %v1338 = vpop.permute.xlu0 %1337
        %s1340 = scalar_lea.vmem %s245, 12
        %1341 = vst.msk [vmem:[%s1340] sm:$0x3] %vm1235, %v1338
        %s1342 = scalar_lea.vmem %s222, 10
        %v1343 = vld [vmem:[%s1342] sm:$0x3]
        %v1344 = vsel %vm1127, %v1338, 0
        %1346 = vmatprep.subr.mxu0 0.0
        %1347 = vmatpush1.msra.mxu0 0.0
        %1348 = vmatprep.subr.mxu0 0.0
        %1349 = vmatpush1.msra.mxu0 0.0
        %1350 = vmatprep.subr.mxu0 0.0
        %1351 = vmatpush1.msra.mxu0 0.0
        %1352 = vmatprep.subr.mxu0 0.0
        %1353 = vmatpush1.msra.mxu0 0.0
        %1354 = vmatprep.subr.mxu0 0.0
        %1355 = vmatpush1.msra.mxu0 0.0
        %1356 = vmatprep.subr.mxu0 0.0
        %1357 = vmatpush1.msra.mxu0 0.0
        %1358 = vmatprep.subr.mxu0 0.0
        %1359 = vmatpush1.msra.mxu0 0.0
        %1360 = vmatprep.subr.mxu0 0.0
        %1361 = vmatpush1.msra.mxu0 0.0
        %1362 = vmatprep.subr.mxu0 0.0
        %1363 = vmatpush1.msra.mxu0 0.0
        %1364 = vmatprep.subr.mxu0 0.0
        %1365 = vmatpush1.msra.mxu0 0.0
        %1366 = vmatprep.subr.mxu0 0.0
        %1367 = vmatpush1.msra.mxu0 0.0
        %1368 = vmatprep.subr.mxu0 0.0
        %1369 = vmatpush1.msra.mxu0 0.0
        %1370 = vmatprep.subr.mxu0 0.0
        %1371 = vmatpush1.msra.mxu0 %v261
        %1372 = vmatprep.subr.mxu0 0.0
        %1373 = vmatpush1.msra.mxu0 %v260
        %1374 = vmatprep.subr.mxu0 0.0
        %1375 = vmatpush1.msra.mxu0 %v259
        %1376 = vmatprep.subr.mxu0 0.0
        %1377 = vmatpush1.msra.mxu0 %v258
        %1378 = vmatprep.subr.mxu0 0.0
        %1379 = vmatpush2.msra.mxu0 0.0
        %1380 = vmatprep.subr.mxu0 0.0
        %1381 = vmatpush2.msra.mxu0 0.0
        %1382 = vmatprep.subr.mxu0 0.0
        %1383 = vmatpush2.msra.mxu0 0.0
        %1384 = vmatprep.subr.mxu0 0.0
        %1385 = vmatpush2.msra.mxu0 0.0
        %1386 = vmatprep.subr.mxu0 0.0
        %1387 = vmatpush2.msra.mxu0 0.0
        %1388 = vmatprep.subr.mxu0 0.0
        %1389 = vmatpush2.msra.mxu0 0.0
        %1390 = vmatprep.subr.mxu0 0.0
        %1391 = vmatpush2.msra.mxu0 0.0
        %1392 = vmatprep.subr.mxu0 0.0
        %1393 = vmatpush2.msra.mxu0 0.0
        %1394 = vmatprep.subr.mxu0 0.0
        %1395 = vmatpush2.msra.mxu0 0.0
        %1396 = vmatprep.subr.mxu0 0.0
        %1397 = vmatpush2.msra.mxu0 0.0
        %1398 = vmatprep.subr.mxu0 0.0
        %1399 = vmatpush2.msra.mxu0 0.0
        %1400 = vmatprep.subr.mxu0 0.0
        %1401 = vmatpush2.msra.mxu0 0.0
        %1402 = vmatprep.subr.mxu0 0.0
        %1403 = vmatpush2.msra.mxu0 0.0
        %1404 = vmatprep.subr.mxu0 0.0
        %1405 = vmatpush2.msra.mxu0 0.0
        %1406 = vmatprep.subr.mxu0 0.0
        %1407 = vmatpush2.msra.mxu0 0.0
        %1408 = vmatprep.subr.mxu0 0.0
        %1409 = vmatpush2.msra.mxu0 0.0
        %1410 = vmatprep.mubr.f32.mxu0 0.0
        %1411 = vmatmul.mubr.f32.gmra.mxu0 %v1344
        %v1412 = vpop.f32.mrf.mxu0
        %v1413 = vadd.f32 0.0, %v1412
        %v1414 = vpop.f32.mrf.mxu0
        %1415 = vdwg.mxu0
        %v1416 = vadd.f32 %v1343, %v1413
        %v1417 = vxor.u32 %v1416, 2147483648
        %v1418 = vmul.f32 %v1417, 1.442695
        %v1419 = vpow.pop %v1418
        %v1420 = vadd.f32 %v1419, 1.0
        %v1421 = vrcp.pop %v1420
        %v1422 = vmul.f32 1.0, %v1421
        %v1423 = vtanh.pop %v1416
        %v1424 = vmul.f32 %v1422, %v1329
        %1426 = vrot.lane.b32.xlu0 %v1423, 64
        %v1427 = vpop.permute.xlu0 %1426
        %v1429 = vmul.f32 %v1422, %v1427
        %1431 = vrot.lane.b32.xlu0 %v1429, 32
        %v1432 = vpop.permute.xlu0 %1431
        %v1434 = vadd.f32 %v1424, %v1432
        %v1435 = vtanh.pop %v1434
        %1437 = vrot.lane.b32.xlu0 %v1435, 64
        %v1438 = vpop.permute.xlu0 %1437
        %v1440 = vmul.f32 %v1422, %v1438
        %1442 = vrot.lane.b32.xlu0 %v1440, 32
        %v1443 = vpop.permute.xlu0 %1442
        %s1445 = scalar_lea.vmem %s245, 10
        %1446 = vst.msk [vmem:[%s1445] sm:$0x3] %vm1235, %v1443
        %s1447 = scalar_lea.vmem %s222, 8
        %v1448 = vld [vmem:[%s1447] sm:$0x3]
        %v1449 = vsel %vm1127, %v1443, 0
        %1451 = vmatprep.subr.mxu0 0.0
        %1452 = vmatpush1.msra.mxu0 0.0
        %1453 = vmatprep.subr.mxu0 0.0
        %1454 = vmatpush1.msra.mxu0 0.0
        %1455 = vmatprep.subr.mxu0 0.0
        %1456 = vmatpush1.msra.mxu0 0.0
        %1457 = vmatprep.subr.mxu0 0.0
        %1458 = vmatpush1.msra.mxu0 0.0
        %1459 = vmatprep.subr.mxu0 0.0
        %1460 = vmatpush1.msra.mxu0 0.0
        %1461 = vmatprep.subr.mxu0 0.0
        %1462 = vmatpush1.msra.mxu0 0.0
        %1463 = vmatprep.subr.mxu0 0.0
        %1464 = vmatpush1.msra.mxu0 0.0
        %1465 = vmatprep.subr.mxu0 0.0
        %1466 = vmatpush1.msra.mxu0 0.0
        %1467 = vmatprep.subr.mxu0 0.0
        %1468 = vmatpush1.msra.mxu0 0.0
        %1469 = vmatprep.subr.mxu0 0.0
        %1470 = vmatpush1.msra.mxu0 0.0
        %1471 = vmatprep.subr.mxu0 0.0
        %1472 = vmatpush1.msra.mxu0 0.0
        %1473 = vmatprep.subr.mxu0 0.0
        %1474 = vmatpush1.msra.mxu0 0.0
        %1475 = vmatprep.subr.mxu0 0.0
        %1476 = vmatpush1.msra.mxu0 %v261
        %1477 = vmatprep.subr.mxu0 0.0
        %1478 = vmatpush1.msra.mxu0 %v260
        %1479 = vmatprep.subr.mxu0 0.0
        %1480 = vmatpush1.msra.mxu0 %v259
        %1481 = vmatprep.subr.mxu0 0.0
        %1482 = vmatpush1.msra.mxu0 %v258
        %1483 = vmatprep.subr.mxu0 0.0
        %1484 = vmatpush2.msra.mxu0 0.0
        %1485 = vmatprep.subr.mxu0 0.0
        %1486 = vmatpush2.msra.mxu0 0.0
        %1487 = vmatprep.subr.mxu0 0.0
        %1488 = vmatpush2.msra.mxu0 0.0
        %1489 = vmatprep.subr.mxu0 0.0
        %1490 = vmatpush2.msra.mxu0 0.0
        %1491 = vmatprep.subr.mxu0 0.0
        %1492 = vmatpush2.msra.mxu0 0.0
        %1493 = vmatprep.subr.mxu0 0.0
        %1494 = vmatpush2.msra.mxu0 0.0
        %1495 = vmatprep.subr.mxu0 0.0
        %1496 = vmatpush2.msra.mxu0 0.0
        %1497 = vmatprep.subr.mxu0 0.0
        %1498 = vmatpush2.msra.mxu0 0.0
        %1499 = vmatprep.subr.mxu0 0.0
        %1500 = vmatpush2.msra.mxu0 0.0
        %1501 = vmatprep.subr.mxu0 0.0
        %1502 = vmatpush2.msra.mxu0 0.0
        %1503 = vmatprep.subr.mxu0 0.0
        %1504 = vmatpush2.msra.mxu0 0.0
        %1505 = vmatprep.subr.mxu0 0.0
        %1506 = vmatpush2.msra.mxu0 0.0
        %1507 = vmatprep.subr.mxu0 0.0
        %1508 = vmatpush2.msra.mxu0 0.0
        %1509 = vmatprep.subr.mxu0 0.0
        %1510 = vmatpush2.msra.mxu0 0.0
        %1511 = vmatprep.subr.mxu0 0.0
        %1512 = vmatpush2.msra.mxu0 0.0
        %1513 = vmatprep.subr.mxu0 0.0
        %1514 = vmatpush2.msra.mxu0 0.0
        %1515 = vmatprep.mubr.f32.mxu0 0.0
        %1516 = vmatmul.mubr.f32.gmra.mxu0 %v1449
        %v1517 = vpop.f32.mrf.mxu0
        %v1518 = vadd.f32 0.0, %v1517
        %v1519 = vpop.f32.mrf.mxu0
        %1520 = vdwg.mxu0
        %v1521 = vadd.f32 %v1448, %v1518
        %v1522 = vxor.u32 %v1521, 2147483648
        %v1523 = vmul.f32 %v1522, 1.442695
        %v1524 = vpow.pop %v1523
        %v1525 = vadd.f32 %v1524, 1.0
        %v1526 = vrcp.pop %v1525
        %v1527 = vmul.f32 1.0, %v1526
        %v1528 = vtanh.pop %v1521
        %v1529 = vmul.f32 %v1527, %v1434
        %1531 = vrot.lane.b32.xlu0 %v1528, 64
        %v1532 = vpop.permute.xlu0 %1531
        %v1534 = vmul.f32 %v1527, %v1532
        %1536 = vrot.lane.b32.xlu0 %v1534, 32
        %v1537 = vpop.permute.xlu0 %1536
        %v1539 = vadd.f32 %v1529, %v1537
        %v1540 = vtanh.pop %v1539
        %1542 = vrot.lane.b32.xlu0 %v1540, 64
        %v1543 = vpop.permute.xlu0 %1542
        %v1545 = vmul.f32 %v1527, %v1543
        %1547 = vrot.lane.b32.xlu0 %v1545, 32
        %v1548 = vpop.permute.xlu0 %1547
        %s1550 = scalar_lea.vmem %s245, 8
        %1551 = vst.msk [vmem:[%s1550] sm:$0x3] %vm1235, %v1548
        %s1552 = scalar_lea.vmem %s222, 6
        %v1553 = vld [vmem:[%s1552] sm:$0x3]
        %v1554 = vsel %vm1127, %v1548, 0
        %1556 = vmatprep.subr.mxu0 0.0
        %1557 = vmatpush1.msra.mxu0 0.0
        %1558 = vmatprep.subr.mxu0 0.0
        %1559 = vmatpush1.msra.mxu0 0.0
        %1560 = vmatprep.subr.mxu0 0.0
        %1561 = vmatpush1.msra.mxu0 0.0
        %1562 = vmatprep.subr.mxu0 0.0
        %1563 = vmatpush1.msra.mxu0 0.0
        %1564 = vmatprep.subr.mxu0 0.0
        %1565 = vmatpush1.msra.mxu0 0.0
        %1566 = vmatprep.subr.mxu0 0.0
        %1567 = vmatpush1.msra.mxu0 0.0
        %1568 = vmatprep.subr.mxu0 0.0
        %1569 = vmatpush1.msra.mxu0 0.0
        %1570 = vmatprep.subr.mxu0 0.0
        %1571 = vmatpush1.msra.mxu0 0.0
        %1572 = vmatprep.subr.mxu0 0.0
        %1573 = vmatpush1.msra.mxu0 0.0
        %1574 = vmatprep.subr.mxu0 0.0
        %1575 = vmatpush1.msra.mxu0 0.0
        %1576 = vmatprep.subr.mxu0 0.0
        %1577 = vmatpush1.msra.mxu0 0.0
        %1578 = vmatprep.subr.mxu0 0.0
        %1579 = vmatpush1.msra.mxu0 0.0
        %1580 = vmatprep.subr.mxu0 0.0
        %1581 = vmatpush1.msra.mxu0 %v261
        %1582 = vmatprep.subr.mxu0 0.0
        %1583 = vmatpush1.msra.mxu0 %v260
        %1584 = vmatprep.subr.mxu0 0.0
        %1585 = vmatpush1.msra.mxu0 %v259
        %1586 = vmatprep.subr.mxu0 0.0
        %1587 = vmatpush1.msra.mxu0 %v258
        %1588 = vmatprep.subr.mxu0 0.0
        %1589 = vmatpush2.msra.mxu0 0.0
        %1590 = vmatprep.subr.mxu0 0.0
        %1591 = vmatpush2.msra.mxu0 0.0
        %1592 = vmatprep.subr.mxu0 0.0
        %1593 = vmatpush2.msra.mxu0 0.0
        %1594 = vmatprep.subr.mxu0 0.0
        %1595 = vmatpush2.msra.mxu0 0.0
        %1596 = vmatprep.subr.mxu0 0.0
        %1597 = vmatpush2.msra.mxu0 0.0
        %1598 = vmatprep.subr.mxu0 0.0
        %1599 = vmatpush2.msra.mxu0 0.0
        %1600 = vmatprep.subr.mxu0 0.0
        %1601 = vmatpush2.msra.mxu0 0.0
        %1602 = vmatprep.subr.mxu0 0.0
        %1603 = vmatpush2.msra.mxu0 0.0
        %1604 = vmatprep.subr.mxu0 0.0
        %1605 = vmatpush2.msra.mxu0 0.0
        %1606 = vmatprep.subr.mxu0 0.0
        %1607 = vmatpush2.msra.mxu0 0.0
        %1608 = vmatprep.subr.mxu0 0.0
        %1609 = vmatpush2.msra.mxu0 0.0
        %1610 = vmatprep.subr.mxu0 0.0
        %1611 = vmatpush2.msra.mxu0 0.0
        %1612 = vmatprep.subr.mxu0 0.0
        %1613 = vmatpush2.msra.mxu0 0.0
        %1614 = vmatprep.subr.mxu0 0.0
        %1615 = vmatpush2.msra.mxu0 0.0
        %1616 = vmatprep.subr.mxu0 0.0
        %1617 = vmatpush2.msra.mxu0 0.0
        %1618 = vmatprep.subr.mxu0 0.0
        %1619 = vmatpush2.msra.mxu0 0.0
        %1620 = vmatprep.mubr.f32.mxu0 0.0
        %1621 = vmatmul.mubr.f32.gmra.mxu0 %v1554
        %v1622 = vpop.f32.mrf.mxu0
        %v1623 = vadd.f32 0.0, %v1622
        %v1624 = vpop.f32.mrf.mxu0
        %1625 = vdwg.mxu0
        %v1626 = vadd.f32 %v1553, %v1623
        %v1627 = vxor.u32 %v1626, 2147483648
        %v1628 = vmul.f32 %v1627, 1.442695
        %v1629 = vpow.pop %v1628
        %v1630 = vadd.f32 %v1629, 1.0
        %v1631 = vrcp.pop %v1630
        %v1632 = vmul.f32 1.0, %v1631
        %v1633 = vtanh.pop %v1626
        %v1634 = vmul.f32 %v1632, %v1539
        %1636 = vrot.lane.b32.xlu0 %v1633, 64
        %v1637 = vpop.permute.xlu0 %1636
        %v1639 = vmul.f32 %v1632, %v1637
        %1641 = vrot.lane.b32.xlu0 %v1639, 32
        %v1642 = vpop.permute.xlu0 %1641
        %v1644 = vadd.f32 %v1634, %v1642
        %v1645 = vtanh.pop %v1644
        %1647 = vrot.lane.b32.xlu0 %v1645, 64
        %v1648 = vpop.permute.xlu0 %1647
        %v1650 = vmul.f32 %v1632, %v1648
        %1652 = vrot.lane.b32.xlu0 %v1650, 32
        %v1653 = vpop.permute.xlu0 %1652
        %s1655 = scalar_lea.vmem %s245, 6
        %1656 = vst.msk [vmem:[%s1655] sm:$0x3] %vm1235, %v1653
        %s1657 = scalar_lea.vmem %s222, 4
        %v1658 = vld [vmem:[%s1657] sm:$0x3]
        %v1659 = vsel %vm1127, %v1653, 0
        %1661 = vmatprep.subr.mxu0 0.0
        %1662 = vmatpush1.msra.mxu0 0.0
        %1663 = vmatprep.subr.mxu0 0.0
        %1664 = vmatpush1.msra.mxu0 0.0
        %1665 = vmatprep.subr.mxu0 0.0
        %1666 = vmatpush1.msra.mxu0 0.0
        %1667 = vmatprep.subr.mxu0 0.0
        %1668 = vmatpush1.msra.mxu0 0.0
        %1669 = vmatprep.subr.mxu0 0.0
        %1670 = vmatpush1.msra.mxu0 0.0
        %1671 = vmatprep.subr.mxu0 0.0
        %1672 = vmatpush1.msra.mxu0 0.0
        %1673 = vmatprep.subr.mxu0 0.0
        %1674 = vmatpush1.msra.mxu0 0.0
        %1675 = vmatprep.subr.mxu0 0.0
        %1676 = vmatpush1.msra.mxu0 0.0
        %1677 = vmatprep.subr.mxu0 0.0
        %1678 = vmatpush1.msra.mxu0 0.0
        %1679 = vmatprep.subr.mxu0 0.0
        %1680 = vmatpush1.msra.mxu0 0.0
        %1681 = vmatprep.subr.mxu0 0.0
        %1682 = vmatpush1.msra.mxu0 0.0
        %1683 = vmatprep.subr.mxu0 0.0
        %1684 = vmatpush1.msra.mxu0 0.0
        %1685 = vmatprep.subr.mxu0 0.0
        %1686 = vmatpush1.msra.mxu0 %v261
        %1687 = vmatprep.subr.mxu0 0.0
        %1688 = vmatpush1.msra.mxu0 %v260
        %1689 = vmatprep.subr.mxu0 0.0
        %1690 = vmatpush1.msra.mxu0 %v259
        %1691 = vmatprep.subr.mxu0 0.0
        %1692 = vmatpush1.msra.mxu0 %v258
        %1693 = vmatprep.subr.mxu0 0.0
        %1694 = vmatpush2.msra.mxu0 0.0
        %1695 = vmatprep.subr.mxu0 0.0
        %1696 = vmatpush2.msra.mxu0 0.0
        %1697 = vmatprep.subr.mxu0 0.0
        %1698 = vmatpush2.msra.mxu0 0.0
        %1699 = vmatprep.subr.mxu0 0.0
        %1700 = vmatpush2.msra.mxu0 0.0
        %1701 = vmatprep.subr.mxu0 0.0
        %1702 = vmatpush2.msra.mxu0 0.0
        %1703 = vmatprep.subr.mxu0 0.0
        %1704 = vmatpush2.msra.mxu0 0.0
        %1705 = vmatprep.subr.mxu0 0.0
        %1706 = vmatpush2.msra.mxu0 0.0
        %1707 = vmatprep.subr.mxu0 0.0
        %1708 = vmatpush2.msra.mxu0 0.0
        %1709 = vmatprep.subr.mxu0 0.0
        %1710 = vmatpush2.msra.mxu0 0.0
        %1711 = vmatprep.subr.mxu0 0.0
        %1712 = vmatpush2.msra.mxu0 0.0
        %1713 = vmatprep.subr.mxu0 0.0
        %1714 = vmatpush2.msra.mxu0 0.0
        %1715 = vmatprep.subr.mxu0 0.0
        %1716 = vmatpush2.msra.mxu0 0.0
        %1717 = vmatprep.subr.mxu0 0.0
        %1718 = vmatpush2.msra.mxu0 0.0
        %1719 = vmatprep.subr.mxu0 0.0
        %1720 = vmatpush2.msra.mxu0 0.0
        %1721 = vmatprep.subr.mxu0 0.0
        %1722 = vmatpush2.msra.mxu0 0.0
        %1723 = vmatprep.subr.mxu0 0.0
        %1724 = vmatpush2.msra.mxu0 0.0
        %1725 = vmatprep.mubr.f32.mxu0 0.0
        %1726 = vmatmul.mubr.f32.gmra.mxu0 %v1659
        %v1727 = vpop.f32.mrf.mxu0
        %v1728 = vadd.f32 0.0, %v1727
        %v1729 = vpop.f32.mrf.mxu0
        %1730 = vdwg.mxu0
        %v1731 = vadd.f32 %v1658, %v1728
        %v1732 = vxor.u32 %v1731, 2147483648
        %v1733 = vmul.f32 %v1732, 1.442695
        %v1734 = vpow.pop %v1733
        %v1735 = vadd.f32 %v1734, 1.0
        %v1736 = vrcp.pop %v1735
        %v1737 = vmul.f32 1.0, %v1736
        %v1738 = vtanh.pop %v1731
        %v1739 = vmul.f32 %v1737, %v1644
        %1741 = vrot.lane.b32.xlu0 %v1738, 64
        %v1742 = vpop.permute.xlu0 %1741
        %v1744 = vmul.f32 %v1737, %v1742
        %1746 = vrot.lane.b32.xlu0 %v1744, 32
        %v1747 = vpop.permute.xlu0 %1746
        %v1749 = vadd.f32 %v1739, %v1747
        %v1750 = vtanh.pop %v1749
        %1752 = vrot.lane.b32.xlu0 %v1750, 64
        %v1753 = vpop.permute.xlu0 %1752
        %v1755 = vmul.f32 %v1737, %v1753
        %1757 = vrot.lane.b32.xlu0 %v1755, 32
        %v1758 = vpop.permute.xlu0 %1757
        %s1760 = scalar_lea.vmem %s245, 4
        %1761 = vst.msk [vmem:[%s1760] sm:$0x3] %vm1235, %v1758
        %s1762 = scalar_lea.vmem %s222, 2
        %v1763 = vld [vmem:[%s1762] sm:$0x3]
        %v1764 = vsel %vm1127, %v1758, 0
        %1766 = vmatprep.subr.mxu0 0.0
        %1767 = vmatpush1.msra.mxu0 0.0
        %1768 = vmatprep.subr.mxu0 0.0
        %1769 = vmatpush1.msra.mxu0 0.0
        %1770 = vmatprep.subr.mxu0 0.0
        %1771 = vmatpush1.msra.mxu0 0.0
        %1772 = vmatprep.subr.mxu0 0.0
        %1773 = vmatpush1.msra.mxu0 0.0
        %1774 = vmatprep.subr.mxu0 0.0
        %1775 = vmatpush1.msra.mxu0 0.0
        %1776 = vmatprep.subr.mxu0 0.0
        %1777 = vmatpush1.msra.mxu0 0.0
        %1778 = vmatprep.subr.mxu0 0.0
        %1779 = vmatpush1.msra.mxu0 0.0
        %1780 = vmatprep.subr.mxu0 0.0
        %1781 = vmatpush1.msra.mxu0 0.0
        %1782 = vmatprep.subr.mxu0 0.0
        %1783 = vmatpush1.msra.mxu0 0.0
        %1784 = vmatprep.subr.mxu0 0.0
        %1785 = vmatpush1.msra.mxu0 0.0
        %1786 = vmatprep.subr.mxu0 0.0
        %1787 = vmatpush1.msra.mxu0 0.0
        %1788 = vmatprep.subr.mxu0 0.0
        %1789 = vmatpush1.msra.mxu0 0.0
        %1790 = vmatprep.subr.mxu0 0.0
        %1791 = vmatpush1.msra.mxu0 %v261
        %1792 = vmatprep.subr.mxu0 0.0
        %1793 = vmatpush1.msra.mxu0 %v260
        %1794 = vmatprep.subr.mxu0 0.0
        %1795 = vmatpush1.msra.mxu0 %v259
        %1796 = vmatprep.subr.mxu0 0.0
        %1797 = vmatpush1.msra.mxu0 %v258
        %1798 = vmatprep.subr.mxu0 0.0
        %1799 = vmatpush2.msra.mxu0 0.0
        %1800 = vmatprep.subr.mxu0 0.0
        %1801 = vmatpush2.msra.mxu0 0.0
        %1802 = vmatprep.subr.mxu0 0.0
        %1803 = vmatpush2.msra.mxu0 0.0
        %1804 = vmatprep.subr.mxu0 0.0
        %1805 = vmatpush2.msra.mxu0 0.0
        %1806 = vmatprep.subr.mxu0 0.0
        %1807 = vmatpush2.msra.mxu0 0.0
        %1808 = vmatprep.subr.mxu0 0.0
        %1809 = vmatpush2.msra.mxu0 0.0
        %1810 = vmatprep.subr.mxu0 0.0
        %1811 = vmatpush2.msra.mxu0 0.0
        %1812 = vmatprep.subr.mxu0 0.0
        %1813 = vmatpush2.msra.mxu0 0.0
        %1814 = vmatprep.subr.mxu0 0.0
        %1815 = vmatpush2.msra.mxu0 0.0
        %1816 = vmatprep.subr.mxu0 0.0
        %1817 = vmatpush2.msra.mxu0 0.0
        %1818 = vmatprep.subr.mxu0 0.0
        %1819 = vmatpush2.msra.mxu0 0.0
        %1820 = vmatprep.subr.mxu0 0.0
        %1821 = vmatpush2.msra.mxu0 0.0
        %1822 = vmatprep.subr.mxu0 0.0
        %1823 = vmatpush2.msra.mxu0 0.0
        %1824 = vmatprep.subr.mxu0 0.0
        %1825 = vmatpush2.msra.mxu0 0.0
        %1826 = vmatprep.subr.mxu0 0.0
        %1827 = vmatpush2.msra.mxu0 0.0
        %1828 = vmatprep.subr.mxu0 0.0
        %1829 = vmatpush2.msra.mxu0 0.0
        %1830 = vmatprep.mubr.f32.mxu0 0.0
        %1831 = vmatmul.mubr.f32.gmra.mxu0 %v1764
        %v1832 = vpop.f32.mrf.mxu0
        %v1833 = vadd.f32 0.0, %v1832
        %v1834 = vpop.f32.mrf.mxu0
        %1835 = vdwg.mxu0
        %v1836 = vadd.f32 %v1763, %v1833
        %v1837 = vxor.u32 %v1836, 2147483648
        %v1838 = vmul.f32 %v1837, 1.442695
        %v1839 = vpow.pop %v1838
        %v1840 = vadd.f32 %v1839, 1.0
        %v1841 = vrcp.pop %v1840
        %v1842 = vmul.f32 1.0, %v1841
        %v1843 = vtanh.pop %v1836
        %v1844 = vmul.f32 %v1842, %v1749
        %1846 = vrot.lane.b32.xlu0 %v1843, 64
        %v1847 = vpop.permute.xlu0 %1846
        %v1849 = vmul.f32 %v1842, %v1847
        %1851 = vrot.lane.b32.xlu0 %v1849, 32
        %v1852 = vpop.permute.xlu0 %1851
        %v1854 = vadd.f32 %v1844, %v1852
        %v1855 = vtanh.pop %v1854
        %1857 = vrot.lane.b32.xlu0 %v1855, 64
        %v1858 = vpop.permute.xlu0 %1857
        %v1860 = vmul.f32 %v1842, %v1858
        %1862 = vrot.lane.b32.xlu0 %v1860, 32
        %v1863 = vpop.permute.xlu0 %1862
        %s1865 = scalar_lea.vmem %s245, 2
        %1866 = vst.msk [vmem:[%s1865] sm:$0x3] %vm1235, %v1863
        %v1867 = vld [vmem:[%s222] sm:$0x3]
        %v1868 = vsel %vm1127, %v1863, 0
        %1870 = vmatprep.subr.mxu0 0.0
        %1871 = vmatpush1.msra.mxu0 0.0
        %1872 = vmatprep.subr.mxu0 0.0
        %1873 = vmatpush1.msra.mxu0 0.0
        %1874 = vmatprep.subr.mxu0 0.0
        %1875 = vmatpush1.msra.mxu0 0.0
        %1876 = vmatprep.subr.mxu0 0.0
        %1877 = vmatpush1.msra.mxu0 0.0
        %1878 = vmatprep.subr.mxu0 0.0
        %1879 = vmatpush1.msra.mxu0 0.0
        %1880 = vmatprep.subr.mxu0 0.0
        %1881 = vmatpush1.msra.mxu0 0.0
        %1882 = vmatprep.subr.mxu0 0.0
        %1883 = vmatpush1.msra.mxu0 0.0
        %1884 = vmatprep.subr.mxu0 0.0
        %1885 = vmatpush1.msra.mxu0 0.0
        %1886 = vmatprep.subr.mxu0 0.0
        %1887 = vmatpush1.msra.mxu0 0.0
        %1888 = vmatprep.subr.mxu0 0.0
        %1889 = vmatpush1.msra.mxu0 0.0
        %1890 = vmatprep.subr.mxu0 0.0
        %1891 = vmatpush1.msra.mxu0 0.0
        %1892 = vmatprep.subr.mxu0 0.0
        %1893 = vmatpush1.msra.mxu0 0.0
        %1894 = vmatprep.subr.mxu0 0.0
        %1895 = vmatpush1.msra.mxu0 %v261
        %1896 = vmatprep.subr.mxu0 0.0
        %1897 = vmatpush1.msra.mxu0 %v260
        %1898 = vmatprep.subr.mxu0 0.0
        %1899 = vmatpush1.msra.mxu0 %v259
        %1900 = vmatprep.subr.mxu0 0.0
        %1901 = vmatpush1.msra.mxu0 %v258
        %1902 = vmatprep.subr.mxu0 0.0
        %1903 = vmatpush2.msra.mxu0 0.0
        %1904 = vmatprep.subr.mxu0 0.0
        %1905 = vmatpush2.msra.mxu0 0.0
        %1906 = vmatprep.subr.mxu0 0.0
        %1907 = vmatpush2.msra.mxu0 0.0
        %1908 = vmatprep.subr.mxu0 0.0
        %1909 = vmatpush2.msra.mxu0 0.0
        %1910 = vmatprep.subr.mxu0 0.0
        %1911 = vmatpush2.msra.mxu0 0.0
        %1912 = vmatprep.subr.mxu0 0.0
        %1913 = vmatpush2.msra.mxu0 0.0
        %1914 = vmatprep.subr.mxu0 0.0
        %1915 = vmatpush2.msra.mxu0 0.0
        %1916 = vmatprep.subr.mxu0 0.0
        %1917 = vmatpush2.msra.mxu0 0.0
        %1918 = vmatprep.subr.mxu0 0.0
        %1919 = vmatpush2.msra.mxu0 0.0
        %1920 = vmatprep.subr.mxu0 0.0
        %1921 = vmatpush2.msra.mxu0 0.0
        %1922 = vmatprep.subr.mxu0 0.0
        %1923 = vmatpush2.msra.mxu0 0.0
        %1924 = vmatprep.subr.mxu0 0.0
        %1925 = vmatpush2.msra.mxu0 0.0
        %1926 = vmatprep.subr.mxu0 0.0
        %1927 = vmatpush2.msra.mxu0 0.0
        %1928 = vmatprep.subr.mxu0 0.0
        %1929 = vmatpush2.msra.mxu0 0.0
        %1930 = vmatprep.subr.mxu0 0.0
        %1931 = vmatpush2.msra.mxu0 0.0
        %1932 = vmatprep.subr.mxu0 0.0
        %1933 = vmatpush2.msra.mxu0 0.0
        %1934 = vmatprep.mubr.f32.mxu0 0.0
        %1935 = vmatmul.mubr.f32.gmra.mxu0 %v1868
        %v1936 = vpop.f32.mrf.mxu0
        %v1937 = vadd.f32 0.0, %v1936
        %v1938 = vpop.f32.mrf.mxu0
        %1939 = vdwg.mxu0
        %v1940 = vadd.f32 %v1867, %v1937
        %v1941 = vxor.u32 %v1940, 2147483648
        %v1942 = vmul.f32 %v1941, 1.442695
        %v1943 = vpow.pop %v1942
        %v1944 = vadd.f32 %v1943, 1.0
        %v1945 = vrcp.pop %v1944
        %v1946 = vmul.f32 1.0, %v1945
        %v1947 = vtanh.pop %v1940
        %v1948 = vmul.f32 %v1946, %v1854
        %1950 = vrot.lane.b32.xlu0 %v1947, 64
        %v1951 = vpop.permute.xlu0 %1950
        %v1953 = vmul.f32 %v1946, %v1951
        %1955 = vrot.lane.b32.xlu0 %v1953, 32
        %v1956 = vpop.permute.xlu0 %1955
        %v1958 = vadd.f32 %v1948, %v1956
        %v1959 = vtanh.pop %v1958
        %1961 = vrot.lane.b32.xlu0 %v1959, 64
        %v1962 = vpop.permute.xlu0 %1961
        %v1964 = vmul.f32 %v1946, %v1962
        %1966 = vrot.lane.b32.xlu0 %v1964, 32
        %v1967 = vpop.permute.xlu0 %1966
        %1969 = vst.msk [vmem:[%s245] sm:$0x3] %vm1235, %v1967
        %1970 = vst.msk [vmem:[#allocation2] sm:$0x3] %vm1235, %v1967
        %1972 = vrot.lane.b32.xlu0 %v1958, 96
        %v1973 = vpop.permute.xlu0 %1972
        %1975 = vst.msk [vmem:[#allocation3] sm:$0x3] %vm1235, %v1973
      $region40: #{decoder_forward_pallas.6} parent=27 // pred_fallthru
        _
      %s1976 = smul.u32 %s18, 2
      %s1977 = ssub.s32 0, %s1976
      %s1978 = smul.u32 %s17, %s1977
      %s1979 = sadd.s32 %s18, %s1978
      %s1980 = smul.u32 8, %s1979
      %p1981 = scmp.lt.s32.totalorder %s17, 1
      %s1982 = scalar_select %p1981, %s17, 1
      %p1983 = scmp.lt.s32.totalorder %s1980, 7
      %s1984 = scalar_select %p1983, %s1980, 7
      %s1985 = smul.addr %s1982, 8
      %s1986 = sadd.s32 %s1984, %s1985
      %s1987 = smul.addr %s1986, 2
      %s1988 = scalar_lea.vmem %s2, %s1987
      // Predicated region
      $region41: #{decoder_forward_pallas.6} parent=27 // pred_check
        %p1989 = pneg %p115
      $region42: #{decoder_forward_pallas.6} parent=27 // pred_check_branch
        %1991 = sbr.rel (%p1989) target = $region44
      $region43: #{decoder_forward_pallas.6} parent=27 // pred_region
        %s1992 = smul.u32 %s18, 2
        %s1993 = ssub.s32 0, %s1992
        %s1994 = smul.u32 %s17, %s1993
        %s1995 = sadd.s32 %s18, %s1994
        %s1996 = smul.u32 8, %s1995
      $region44: #{decoder_forward_pallas.6} parent=27 // pred_fallthru
        _
    $region28: #{decoder_forward_pallas.6} parent=5 // pred_fallthru
      _
    %p1997 = scmp.le.s32.totalorder 2, %s8
    // Predicated region
    $region45: #{decoder_forward_pallas.6} parent=5 // pred_check
      %p1998 = pneg %p1997
    $region46: #{decoder_forward_pallas.6} parent=5 // pred_check_branch
      %2000 = sbr.rel (%p1998) target = $region48
    $region47: #{decoder_forward_pallas.6} parent=5 // pred_region
      %s2001 = ssub.s32 %s8, 2
      // Predicated region
      $region49: #{decoder_forward_pallas.6} parent=47 // pred_check
        %p2002 = pneg %p121
      $region50: #{decoder_forward_pallas.6} parent=47 // pred_check_branch
        %2004 = sbr.rel (%p2002) target = $region52
      $region51: #{decoder_forward_pallas.6} parent=47 // pred_region
        %s2005 = smul.u32 %s20, 2
        %s2006 = ssub.s32 0, %s2005
        %s2007 = smul.u32 %s19, %s2006
        %s2008 = sadd.s32 %s20, %s2007
        %s2009 = smul.u32 8, %s2008
        %p2010 = scmp.lt.s32.totalorder %s19, 1
        %s2011 = scalar_select %p2010, %s19, 1
        %p2012 = scmp.lt.s32.totalorder %s2009, 7
        %s2013 = scalar_select %p2012, %s2009, 7
        %s2014 = smul.addr %s2011, 8
        %s2015 = sadd.s32 %s2013, %s2014
        %s2016 = smul.addr %s2015, 2
        %s2017 = scalar_lea.vmem %s2, %s2016
      $region52: #{decoder_forward_pallas.6} parent=47 // pred_fallthru
        _
    $region48: #{decoder_forward_pallas.6} parent=5 // pred_fallthru
      _
  $region6: #{decoder_forward_pallas.6} parent=0 // loop_footer
    %s12 = sadd.s32 1, %s8
  $region7: #{decoder_forward_pallas.6} parent=0 // loop_footer_branch
    %7 = sbr.rel target = $region3
  $region8: #{decoder_forward_pallas.6} parent=0 // loop_exit
    _

</llo_original>
